<compile_context>
chip_gen: v5e
topology: v5e:2x2
jax: 0.10.0
libtpu: 0.0.40
codegen_flags: <defaults>
</compile_context>

<pallas_src>
import functools
import math

import jax
import jax.numpy as jnp
from jax.experimental import pallas as pl
from jax.experimental.pallas import tpu as pltpu


# ----------------------------------------------------------------------------
# Fused Pallas kernel: grid = (batch, 2 * num_s_tiles); phase 0 = t2l, phase 1 = l2t
# ----------------------------------------------------------------------------
def _fused_kernel(n_heads, head_dim, eps,
                  x_ref, lat_ref, q1_ref,
                  wkv1_ref, wq2_ref, wo1_ref, wkv2_ref, wo2_ref, bias_ref,
                  o_ref,
                  m_sc, l_sc, acc_sc, kv_sc, obuf_sc):
    D = n_heads * head_dim
    scale = 1.0 / math.sqrt(head_dim)
    ns = pl.num_programs(1) // 2          # number of S-tiles
    t = pl.program_id(1)

    bias = bias_ref[...]                  # (8, 2D) f32 packed biases / LN params
    b_kv1 = bias[0:1, :]                  # (1, 2D)
    b_kv2 = bias[1:2, :]                  # (1, 2D)
    b_o1 = bias[2:3, :D]                  # (1, D)
    gamma = bias[3:4, :D]
    beta = bias[4:5, :D]
    b_q2 = bias[5:6, :D]
    b_o2 = bias[6:7, :D]

    # ---- per-batch init of the online-softmax state ---------------------------------
    @pl.when(t == 0)
    def _init():
        m_sc[...] = jnp.full_like(m_sc, -jnp.inf)
        l_sc[...] = jnp.zeros_like(l_sc)
        acc_sc[...] = jnp.zeros_like(acc_sc)

    # ---- phase 0: token -> latent attention, online softmax over S-tiles ------------
    @pl.when(t < ns)
    def _t2l_accumulate():
        xt = x_ref[0].astype(jnp.bfloat16)                                    # (tS, D)
        kv1 = jnp.dot(xt, wkv1_ref[...], preferred_element_type=jnp.float32) + b_kv1
        k1 = kv1[:, :D].astype(jnp.bfloat16)
        v1 = kv1[:, D:].astype(jnp.bfloat16)
        q1 = q1_ref[...]                                                      # (L, D) bf16
        for h in range(n_heads):                                              # small static unroll
            sl = slice(h * head_dim, (h + 1) * head_dim)
            # q_h @ k_h^T via transposed contraction (no materialized transpose)
            s = jax.lax.dot_general(q1[:, sl], k1[:, sl],
                                    (((1,), (1,)), ((), ())),
                                    preferred_element_type=jnp.float32) * scale  # (L, tS)
            m_old = m_sc[h]                                                   # (L, 1)
            m_new = jnp.maximum(m_old, jnp.max(s, axis=-1, keepdims=True))
            alpha = jnp.exp(m_old - m_new)
            p = jnp.exp(s - m_new)
            l_sc[h] = alpha * l_sc[h] + jnp.sum(p, axis=-1, keepdims=True)
            acc_sc[:, sl] = alpha * acc_sc[:, sl] + jnp.dot(
                p.astype(jnp.bfloat16), v1[:, sl], preferred_element_type=jnp.float32)
            m_sc[h] = m_new

    # ---- end of phase 0: finalize latents (residual + LN) and K/V for l2t -----------
    @pl.when(t == ns - 1)
    def _finalize_latents():
        for h in range(n_heads):
            sl = slice(h * head_dim, (h + 1) * head_dim)
            l = l_sc[h]                                                       # (L, 1)
            r = pl.reciprocal(l, approx=True)                                 # EUP slot
            r = r * (2.0 - l * r)                                             # Newton step
            acc_sc[:, sl] = acc_sc[:, sl] * r
        # ONE full-contraction output projection (un-folded from the head loop)
        lat_prime = jnp.dot(acc_sc[...].astype(jnp.bfloat16), wo1_ref[...],
                            preferred_element_type=jnp.float32) + b_o1        # (L, D)
        h_res = lat_ref[...].astype(jnp.float32) + lat_prime
        mu = jnp.mean(h_res, axis=-1, keepdims=True)
        var = jnp.mean((h_res - mu) ** 2, axis=-1, keepdims=True)
        upd = (h_res - mu) * jax.lax.rsqrt(var + eps) * gamma + beta
        kv2 = jnp.dot(upd.astype(jnp.bfloat16), wkv2_ref[...],
                      preferred_element_type=jnp.float32) + b_kv2             # (L, 2D)
        kv_sc[...] = kv2.astype(kv_sc.dtype)                                  # resident for phase 1

    # ---- phase 1: latent -> token attention, one output tile per step ---------------
    @pl.when(t >= ns)
    def _l2t():
        xt = x_ref[0].astype(jnp.bfloat16)                                    # (tS, D)
        q2 = jnp.dot(xt, wq2_ref[...], preferred_element_type=jnp.float32) + b_q2
        q2 = q2.astype(jnp.bfloat16)
        k2 = kv_sc[:, :D]                                                     # (L, D) bf16
        v2 = kv_sc[:, D:]
        for h in range(n_heads):
            sl = slice(h * head_dim, (h + 1) * head_dim)
            s = jax.lax.dot_general(q2[:, sl], k2[:, sl],
                                    (((1,), (1,)), ((), ())),
                                    preferred_element_type=jnp.float32) * scale  # (tS, L)
            s = s - jnp.max(s, axis=-1, keepdims=True)
            p = jnp.exp(s)
            denom = jnp.sum(p, axis=-1, keepdims=True)
            r = pl.reciprocal(denom, approx=True)
            r = r * (2.0 - denom * r)
            obuf_sc[:, sl] = jnp.dot((p * r).astype(jnp.bfloat16), v2[:, sl],
                                     preferred_element_type=jnp.float32)
        out = jnp.dot(obuf_sc[...].astype(jnp.bfloat16), wo2_ref[...],
                      preferred_element_type=jnp.float32) + b_o2              # (tS, D)
        o_ref[0] = out.astype(o_ref.dtype)


# ----------------------------------------------------------------------------
# Wrapper: host-side weight packing + single pallas_call
# ----------------------------------------------------------------------------
def _pick_seq_tile(S, max_tile=512):
    """Largest S-tile <= max_tile that divides S and is sublane-aligned (multiple of 8)."""
    if S <= max_tile:
        return S
    for ts in range(max_tile - max_tile % 8, 7, -8):
        if S % ts == 0:
            return ts
    return S  # TODO(synk): pad ragged S to a multiple of 8 instead of falling back


def _vmem_limit_bytes():
    # ~3/4 of physical VMEM, capped at 100 MiB (=> ~96 MiB on v5e/v6e, ~48 MiB on v7x).
    try:
        cap = int(pltpu.get_tpu_info().vmem_capacity_bytes)
        return min(cap * 3 // 4, 100 * 1024 * 1024)
    except Exception:   # conservative default if the query is unavailable
        return 32 * 1024 * 1024


def global_latent_attention_forward(params, x, n_heads, single_buffer_weights=True):
    B, S, D = x.shape
    L = params["latents"].shape[1]
    head_dim = D // n_heads

    wq1, wk1, wv1, bq1, bk1, bv1, wo1, bo1 = params["attn_t2l"]
    wq2, wk2, wv2, bq2, bk2, bv2, wo2, bo2 = params["attn_l2t"]

    lat = params["latents"].reshape(L, D)                           # f32, residual path
    # Batch-invariant latent-Q projection hoisted out of the kernel (computed once by XLA).
    q1 = (lat @ wq1.T + bq1).astype(jnp.bfloat16)

    bf = lambda w: w.astype(jnp.bfloat16)
    w_kv1 = bf(jnp.concatenate([wk1.T, wv1.T], axis=1))             # (D, 2D)  x   -> K|V (t2l)
    w_q2 = bf(wq2.T)                                                # (D, D)   x   -> Q   (l2t)
    w_o1 = bf(wo1.T)                                                # (D, D)   t2l out proj
    w_kv2 = bf(jnp.concatenate([wk2.T, wv2.T], axis=1))             # (D, 2D)  lat -> K|V (l2t)
    w_o2 = bf(wo2.T)                                                # (D, D)   l2t out proj

    pad = jnp.zeros((D,), jnp.float32)
    biases = jnp.stack([
        jnp.concatenate([bk1, bv1]),                                # row 0: b_kv1 (2D)
        jnp.concatenate([bk2, bv2]),                                # row 1: b_kv2 (2D)
        jnp.concatenate([bo1, pad]),                                # row 2: b_o1
        jnp.concatenate([params["ln_gamma"], pad]),                 # row 3: gamma
        jnp.concatenate([params["ln_beta"], pad]),                  # row 4: beta
        jnp.concatenate([bq2, pad]),                                # row 5: b_q2
        jnp.concatenate([bo2, pad]),                                # row 6: b_o2
        jnp.concatenate([pad, pad]),                                # row 7: padding
    ]).astype(jnp.float32)                                          # (8, 2D)

    tS = _pick_seq_tile(S)
    ns = S // tS

    if single_buffer_weights:
        # Constant-index blocks: no double buffering (pure VMEM saving).
        const = lambda shape: pl.BlockSpec(shape, lambda b, t: (0, 0),
                                           pipeline_mode=pl.Buffered(1))
    else:
        const = lambda shape: pl.BlockSpec(shape, lambda b, t: (0, 0))

    kern = functools.partial(_fused_kernel, n_heads, head_dim, 1e-5)
    return pl.pallas_call(
        kern,
        out_shape=jax.ShapeDtypeStruct((B, S, D), x.dtype),
        grid=(B, 2 * ns),                        # phase 0: t < ns (t2l), phase 1: t >= ns (l2t)
        in_specs=[
            pl.BlockSpec((1, tS, D), lambda b, t: (b, t % ns, 0)),  # x tile (re-streamed per phase)
            const((L, D)),                                          # latents (residual path, f32)
            const((L, D)),                                          # q1 (hoisted latent Q, bf16)
            const((D, 2 * D)),                                      # w_kv1
            const((D, D)),                                          # w_q2
            const((D, D)),                                          # w_o1
            const((D, 2 * D)),                                      # w_kv2
            const((D, D)),                                          # w_o2
            const((8, 2 * D)),                                      # packed biases / LN params
        ],
        out_specs=pl.BlockSpec(
            (1, tS, D), lambda b, t: (b, jnp.where(t < ns, 0, t - ns), 0)),
        scratch_shapes=[
            pltpu.VMEM((n_heads, L, 1), jnp.float32),   # m   (online-softmax max, per head)
            pltpu.VMEM((n_heads, L, 1), jnp.float32),   # l   (online-softmax denom, per head)
            pltpu.VMEM((L, D), jnp.float32),            # acc (unnormalized t2l head outputs)
            pltpu.VMEM((L, 2 * D), jnp.bfloat16),       # K|V of updated latents (for phase 1)
            pltpu.VMEM((tS, D), jnp.float32),           # l2t head outputs before out-proj
        ],
        compiler_params=pltpu.CompilerParams(
            dimension_semantics=("parallel", "arbitrary"),
            vmem_limit_bytes=_vmem_limit_bytes(),
        ),
    )(x, lat, q1, w_kv1, w_q2, w_o1, w_kv2, w_o2, biases)


# ----------------------------------------------------------------------------
# Parameter init (deterministic, PyTorch-shaped)
# ----------------------------------------------------------------------------
def _xavier_uniform(key, shape, fan_in, fan_out):
    a = math.sqrt(6.0 / (fan_in + fan_out))
    return jax.random.uniform(key, shape, jnp.float32, -a, a)


def init_params(key, d_model, n_heads, num_latents):
    ks = jax.random.split(key, 17)
    D = d_model

    def mha_params(keys):
        # PyTorch nn.MultiheadAttention layout: weights (D_out, D_in), applied as x @ W.T + b
        wq = _xavier_uniform(keys[0], (D, D), D, D)
        wk = _xavier_uniform(keys[1], (D, D), D, D)
        wv = _xavier_uniform(keys[2], (D, D), D, D)
        bq = 0.02 * jax.random.normal(keys[3], (D,), jnp.float32)
        bk = 0.02 * jax.random.normal(keys[4], (D,), jnp.float32)
        bv = 0.02 * jax.random.normal(keys[5], (D,), jnp.float32)
        wo = _xavier_uniform(keys[6], (D, D), D, D)
        bo = 0.02 * jax.random.normal(keys[7], (D,), jnp.float32)
        return (wq, wk, wv, bq, bk, bv, wo, bo)

    return {
        "latents": _xavier_uniform(ks[0], (1, num_latents, D), num_latents * D, D),
        "attn_t2l": mha_params(ks[1:9]),
        "attn_l2t": mha_params(ks[9:17]),
        "ln_gamma": jnp.ones((D,), jnp.float32),
        "ln_beta": jnp.zeros((D,), jnp.float32),
    }


# ----------------------------------------------------------------------------
# Pure-JAX reference (for correctness check)
# ----------------------------------------------------------------------------
def _mha_ref(q, k, v, params, n_heads):
    wq, wk, wv, bq, bk, bv, wo, bo = params
    B, Lq, D = q.shape
    hd = D // n_heads
    Q = q @ wq.T + bq
    K = k @ wk.T + bk
    V = v @ wv.T + bv
    Qh = Q.reshape(B, Lq, n_heads, hd).transpose(0, 2, 1, 3)
    Kh = K.reshape(B, -1, n_heads, hd).transpose(0, 2, 1, 3)
    Vh = V.reshape(B, -1, n_heads, hd).transpose(0, 2, 1, 3)
    s = jnp.einsum("bhqd,bhkd->bhqk", Qh, Kh) / math.sqrt(hd)
    p = jax.nn.softmax(s, axis=-1)
    o = jnp.einsum("bhqk,bhkd->bhqd", p, Vh).transpose(0, 2, 1, 3).reshape(B, Lq, D)
    return o @ wo.T + bo


def _forward_ref(params, x, n_heads):
    B = x.shape[0]
    L, D = params["latents"].shape[1], params["latents"].shape[2]
    latents = jnp.broadcast_to(params["latents"], (B, L, D))
    lat_prime = _mha_ref(latents, x, x, params["attn_t2l"], n_heads)
    h = latents + lat_prime
    mu = jnp.mean(h, axis=-1, keepdims=True)
    var = jnp.mean((h - mu) ** 2, axis=-1, keepdims=True)
    updated = (h - mu) * jax.lax.rsqrt(var + 1e-5) * params["ln_gamma"] + params["ln_beta"]
    return _mha_ref(x, updated, updated, params["attn_l2t"], n_heads)


# ----------------------------------------------------------------------------
if __name__ == "__main__":
    d_model, n_heads, num_latents = 32, 4, 4
    batch, seq_len = 2, 8

    root = jax.random.PRNGKey(0)
    k_param, k_x = jax.random.split(root)
    params = init_params(k_param, d_model, n_heads, num_latents)
    x = jax.random.normal(k_x, (batch, seq_len, d_model), jnp.float32)

    fwd = jax.jit(functools.partial(global_latent_attention_forward, n_heads=n_heads))
    try:
        out = jax.block_until_ready(fwd(params, x))
    except Exception:
        # Fallback for JAX versions without pl.Buffered(1) single-buffering support.
        fwd = jax.jit(functools.partial(global_latent_attention_forward, n_heads=n_heads,
                                        single_buffer_weights=False))
        out = jax.block_until_ready(fwd(params, x))

    ref = _forward_ref(params, x, n_heads)
    assert out.shape == (batch, seq_len, d_model)
    err = float(jnp.max(jnp.abs(out - ref)))
    # bf16 MXU operands + approx-reciprocal -> looser tolerance vs. the pure-f32 reference.
    assert jnp.allclose(out, ref, atol=5e-2, rtol=5e-2), \
        f"mismatch vs JAX reference (max abs err {err})"

    print("KERNEL_OK")
</pallas_src>

<mosaic_0001>
module attributes {stable_mosaic.version = 11 : i64} {
  func.func @_fused_kernel(%arg0: i32, %arg1: i32, %arg2: memref<1x8x32xf32, #tpu.memory_space<vmem>>, %arg3: memref<4x32xf32, #tpu.memory_space<vmem>>, %arg4: memref<4x32xbf16, #tpu.memory_space<vmem>>, %arg5: memref<32x64xbf16, #tpu.memory_space<vmem>>, %arg6: memref<32x32xbf16, #tpu.memory_space<vmem>>, %arg7: memref<32x32xbf16, #tpu.memory_space<vmem>>, %arg8: memref<32x64xbf16, #tpu.memory_space<vmem>>, %arg9: memref<32x32xbf16, #tpu.memory_space<vmem>>, %arg10: memref<8x64xf32, #tpu.memory_space<vmem>>, %arg11: memref<1x8x32xf32, #tpu.memory_space<vmem>>, %arg12: memref<4x4x1xf32, #tpu.memory_space<vmem>>, %arg13: memref<4x4x1xf32, #tpu.memory_space<vmem>>, %arg14: memref<4x32xf32, #tpu.memory_space<vmem>>, %arg15: memref<4x64xbf16, #tpu.memory_space<vmem>>, %arg16: memref<8x32xf32, #tpu.memory_space<vmem>>) attributes {dimension_semantics = [#tpu.dimension_semantics<parallel>, #tpu.dimension_semantics<arbitrary>], iteration_bounds = array<i64: 2, 2>, scalar_prefetch = 0 : i64, scratch_operands = 5 : i64, tpu.core_type = #tpu.core_type<tc>, window_params = [{transform_indices = @transform_0, window_bounds = array<i64: 1, 8, 32>}, {pipeline_mode = #tpu.pipeline_mode<synchronous>, transform_indices = @transform_1, window_bounds = array<i64: 4, 32>}, {pipeline_mode = #tpu.pipeline_mode<synchronous>, transform_indices = @transform_2, window_bounds = array<i64: 4, 32>}, {pipeline_mode = #tpu.pipeline_mode<synchronous>, transform_indices = @transform_3, window_bounds = array<i64: 32, 64>}, {pipeline_mode = #tpu.pipeline_mode<synchronous>, transform_indices = @transform_4, window_bounds = array<i64: 32, 32>}, {pipeline_mode = #tpu.pipeline_mode<synchronous>, transform_indices = @transform_5, window_bounds = array<i64: 32, 32>}, {pipeline_mode = #tpu.pipeline_mode<synchronous>, transform_indices = @transform_6, window_bounds = array<i64: 32, 64>}, {pipeline_mode = #tpu.pipeline_mode<synchronous>, transform_indices = @transform_7, window_bounds = array<i64: 32, 32>}, {pipeline_mode = #tpu.pipeline_mode<synchronous>, transform_indices = @transform_8, window_bounds = array<i64: 8, 64>}, {transform_indices = @transform_9, window_bounds = array<i64: 1, 8, 32>}]} {
    %c0 = arith.constant 0 : index
    %c0_0 = arith.constant 0 : index
    %0 = vector.load %arg10[%c0, %c0_0] : memref<8x64xf32, #tpu.memory_space<vmem>>, vector<8x64xf32>
    %1 = vector.extract_strided_slice %0 {offsets = [0, 0], sizes = [1, 64], strides = [1, 1]} : vector<8x64xf32> to vector<1x64xf32>
    %2 = vector.extract_strided_slice %0 {offsets = [1, 0], sizes = [1, 64], strides = [1, 1]} : vector<8x64xf32> to vector<1x64xf32>
    %3 = vector.extract_strided_slice %0 {offsets = [2, 0], sizes = [1, 32], strides = [1, 1]} : vector<8x64xf32> to vector<1x32xf32>
    %4 = vector.extract_strided_slice %0 {offsets = [3, 0], sizes = [1, 32], strides = [1, 1]} : vector<8x64xf32> to vector<1x32xf32>
    %5 = vector.extract_strided_slice %0 {offsets = [4, 0], sizes = [1, 32], strides = [1, 1]} : vector<8x64xf32> to vector<1x32xf32>
    %6 = vector.extract_strided_slice %0 {offsets = [5, 0], sizes = [1, 32], strides = [1, 1]} : vector<8x64xf32> to vector<1x32xf32>
    %7 = vector.extract_strided_slice %0 {offsets = [6, 0], sizes = [1, 32], strides = [1, 1]} : vector<8x64xf32> to vector<1x32xf32>
    %c0_i32 = arith.constant 0 : i32
    %8 = arith.cmpi eq, %arg1, %c0_i32 : i32
    %9 = arith.extui %8 : i1 to i32
    %c0_i32_1 = arith.constant 0 : i32
    %10 = arith.cmpi ne, %9, %c0_i32_1 : i32
    scf.if %10 {
      %cst = arith.constant 0xFF800000 : f32
      %20 = vector.broadcast %cst : f32 to vector<4x4x1xf32>
      %c0_7 = arith.constant 0 : index
      %c0_8 = arith.constant 0 : index
      %c0_9 = arith.constant 0 : index
      %21 = vector.load %arg12[%c0_7, %c0_8, %c0_9] : memref<4x4x1xf32, #tpu.memory_space<vmem>>, vector<4x4x1xf32>
      tpu.vector_store %arg12[%c0_7, %c0_8, %c0_9], %20 {strides = array<i32>} : memref<4x4x1xf32, #tpu.memory_space<vmem>>, vector<4x4x1xf32>,
      %cst_10 = arith.constant 0.000000e+00 : f32
      %22 = vector.broadcast %cst_10 : f32 to vector<4x4x1xf32>
      %c0_11 = arith.constant 0 : index
      %c0_12 = arith.constant 0 : index
      %c0_13 = arith.constant 0 : index
      %23 = vector.load %arg13[%c0_11, %c0_12, %c0_13] : memref<4x4x1xf32, #tpu.memory_space<vmem>>, vector<4x4x1xf32>
      tpu.vector_store %arg13[%c0_11, %c0_12, %c0_13], %22 {strides = array<i32>} : memref<4x4x1xf32, #tpu.memory_space<vmem>>, vector<4x4x1xf32>,
      %cst_14 = arith.constant 0.000000e+00 : f32
      %24 = vector.broadcast %cst_14 : f32 to vector<4x32xf32>
      %c0_15 = arith.constant 0 : index
      %c0_16 = arith.constant 0 : index
      %25 = vector.load %arg14[%c0_15, %c0_16] : memref<4x32xf32, #tpu.memory_space<vmem>>, vector<4x32xf32>
      tpu.vector_store %arg14[%c0_15, %c0_16], %24 {strides = array<i32>} : memref<4x32xf32, #tpu.memory_space<vmem>>, vector<4x32xf32>,
    } else {
    }
    %c1_i32 = arith.constant 1 : i32
    %11 = arith.cmpi slt, %arg1, %c1_i32 : i32
    %12 = arith.extui %11 : i1 to i32
    %c0_i32_2 = arith.constant 0 : i32
    %13 = arith.cmpi ne, %12, %c0_i32_2 : i32
    scf.if %13 {
      %c0_7 = arith.constant 0 : index
      %c0_8 = arith.constant 0 : index
      %c0_9 = arith.constant 0 : index
      %20 = vector.load %arg2[%c0_7, %c0_8, %c0_9] : memref<1x8x32xf32, #tpu.memory_space<vmem>>, vector<1x8x32xf32>
      %21 = vector.shape_cast %20 : vector<1x8x32xf32> to vector<8x32xf32>
      %22 = arith.truncf %21 : vector<8x32xf32> to vector<8x32xbf16>
      %c0_10 = arith.constant 0 : index
      %c0_11 = arith.constant 0 : index
      %23 = vector.load %arg5[%c0_10, %c0_11] : memref<32x64xbf16, #tpu.memory_space<vmem>>, vector<32x64xbf16>
      %cst = arith.constant dense<0.000000e+00> : vector<8x64xf32>
      %24 = tpu.matmul %22, %23, %cst {dimension_numbers = #tpu.dot_dimension_numbers<[1], [0], [0], [1], [0, 0, 1, 1], [], []>} : vector<8x32xbf16>, vector<32x64xbf16>, vector<8x64xf32> -> vector<8x64xf32>
      %25 = vector.broadcast %1 : vector<1x64xf32> to vector<8x64xf32>
      %26 = arith.addf %24, %25 : vector<8x64xf32>
      %27 = vector.extract_strided_slice %26 {offsets = [0, 0], sizes = [8, 32], strides = [1, 1]} : vector<8x64xf32> to vector<8x32xf32>
      %28 = arith.truncf %27 : vector<8x32xf32> to vector<8x32xbf16>
      %29 = vector.extract_strided_slice %26 {offsets = [0, 32], sizes = [8, 32], strides = [1, 1]} : vector<8x64xf32> to vector<8x32xf32>
      %30 = arith.truncf %29 : vector<8x32xf32> to vector<8x32xbf16>
      %c0_12 = arith.constant 0 : index
      %c0_13 = arith.constant 0 : index
      %31 = vector.load %arg4[%c0_12, %c0_13] : memref<4x32xbf16, #tpu.memory_space<vmem>>, vector<4x32xbf16>
      %32 = vector.extract_strided_slice %31 {offsets = [0, 0], sizes = [4, 8], strides = [1, 1]} : vector<4x32xbf16> to vector<4x8xbf16>
      %33 = vector.extract_strided_slice %28 {offsets = [0, 0], sizes = [8, 8], strides = [1, 1]} : vector<8x32xbf16> to vector<8x8xbf16>
      %cst_14 = arith.constant dense<0.000000e+00> : vector<4x8xf32>
      %34 = tpu.matmul %32, %33, %cst_14 {dimension_numbers = #tpu.dot_dimension_numbers<[1], [1], [0], [0], [0, 0, 1, 0], [], []>} : vector<4x8xbf16>, vector<8x8xbf16>, vector<4x8xf32> -> vector<4x8xf32>
      %cst_15 = arith.constant 0.353553385 : f32
      %35 = vector.broadcast %cst_15 : f32 to vector<4x8xf32>
      %36 = arith.mulf %34, %35 : vector<4x8xf32>
      %c0_16 = arith.constant 0 : index
      %c0_17 = arith.constant 0 : index
      %c0_18 = arith.constant 0 : index
      %37 = vector.load %arg12[%c0_16, %c0_17, %c0_18] : memref<4x4x1xf32, #tpu.memory_space<vmem>>, vector<1x4x1xf32>
      %38 = vector.shape_cast %37 : vector<1x4x1xf32> to vector<4x1xf32>
      %cst_19 = arith.constant dense<0xFF800000> : vector<4xf32>
      %39 = vector.multi_reduction <maximumf>, %36, %cst_19 [1] : vector<4x8xf32> to vector<4xf32>
      %40 = vector.shape_cast %39 : vector<4xf32> to vector<4x1xf32>
      %41 = arith.maximumf %38, %40 : vector<4x1xf32>
      %42 = arith.subf %38, %41 : vector<4x1xf32>
      %43 = math.exp %42 : vector<4x1xf32>
      %44 = vector.broadcast %41 : vector<4x1xf32> to vector<4x8xf32>
      %45 = arith.subf %36, %44 : vector<4x8xf32>
      %46 = math.exp %45 : vector<4x8xf32>
      %c0_20 = arith.constant 0 : index
      %c0_21 = arith.constant 0 : index
      %c0_22 = arith.constant 0 : index
      %47 = vector.load %arg13[%c0_20, %c0_21, %c0_22] : memref<4x4x1xf32, #tpu.memory_space<vmem>>, vector<1x4x1xf32>
      %48 = vector.shape_cast %47 : vector<1x4x1xf32> to vector<4x1xf32>
      %49 = arith.mulf %43, %48 : vector<4x1xf32>
      %cst_23 = arith.constant dense<0.000000e+00> : vector<4xf32>
      %50 = vector.multi_reduction <add>, %46, %cst_23 [1] : vector<4x8xf32> to vector<4xf32>
      %51 = vector.shape_cast %50 : vector<4xf32> to vector<4x1xf32>
      %52 = arith.addf %49, %51 : vector<4x1xf32>
      %c0_24 = arith.constant 0 : index
      %c0_25 = arith.constant 0 : index
      %c0_26 = arith.constant 0 : index
      %53 = vector.load %arg13[%c0_24, %c0_25, %c0_26] : memref<4x4x1xf32, #tpu.memory_space<vmem>>, vector<1x4x1xf32>
      %54 = vector.shape_cast %53 : vector<1x4x1xf32> to vector<4x1xf32>
      %55 = vector.shape_cast %52 : vector<4x1xf32> to vector<1x4x1xf32>
      tpu.vector_store %arg13[%c0_24, %c0_25, %c0_26], %55 {strides = array<i32>} : memref<4x4x1xf32, #tpu.memory_space<vmem>>, vector<1x4x1xf32>,
      %c0_27 = arith.constant 0 : index
      %c0_28 = arith.constant 0 : index
      %56 = vector.load %arg14[%c0_27, %c0_28] : memref<4x32xf32, #tpu.memory_space<vmem>>, vector<4x8xf32>
      %57 = vector.broadcast %43 : vector<4x1xf32> to vector<4x8xf32>
      %58 = arith.mulf %57, %56 : vector<4x8xf32>
      %59 = arith.truncf %46 : vector<4x8xf32> to vector<4x8xbf16>
      %60 = vector.extract_strided_slice %30 {offsets = [0, 0], sizes = [8, 8], strides = [1, 1]} : vector<8x32xbf16> to vector<8x8xbf16>
      %cst_29 = arith.constant dense<0.000000e+00> : vector<4x8xf32>
      %61 = tpu.matmul %59, %60, %cst_29 {dimension_numbers = #tpu.dot_dimension_numbers<[1], [0], [0], [1], [0, 0, 1, 1], [], []>} : vector<4x8xbf16>, vector<8x8xbf16>, vector<4x8xf32> -> vector<4x8xf32>
      %62 = arith.addf %58, %61 : vector<4x8xf32>
      %c0_30 = arith.constant 0 : index
      %c0_31 = arith.constant 0 : index
      %63 = vector.load %arg14[%c0_30, %c0_31] : memref<4x32xf32, #tpu.memory_space<vmem>>, vector<4x8xf32>
      tpu.vector_store %arg14[%c0_30, %c0_31], %62 {strides = array<i32>} : memref<4x32xf32, #tpu.memory_space<vmem>>, vector<4x8xf32>,
      %c0_32 = arith.constant 0 : index
      %c0_33 = arith.constant 0 : index
      %c0_34 = arith.constant 0 : index
      %64 = vector.load %arg12[%c0_32, %c0_33, %c0_34] : memref<4x4x1xf32, #tpu.memory_space<vmem>>, vector<1x4x1xf32>
      %65 = vector.shape_cast %64 : vector<1x4x1xf32> to vector<4x1xf32>
      %66 = vector.shape_cast %41 : vector<4x1xf32> to vector<1x4x1xf32>
      tpu.vector_store %arg12[%c0_32, %c0_33, %c0_34], %66 {strides = array<i32>} : memref<4x4x1xf32, #tpu.memory_space<vmem>>, vector<1x4x1xf32>,
      %67 = vector.extract_strided_slice %31 {offsets = [0, 8], sizes = [4, 8], strides = [1, 1]} : vector<4x32xbf16> to vector<4x8xbf16>
      %68 = vector.extract_strided_slice %28 {offsets = [0, 8], sizes = [8, 8], strides = [1, 1]} : vector<8x32xbf16> to vector<8x8xbf16>
      %cst_35 = arith.constant dense<0.000000e+00> : vector<4x8xf32>
      %69 = tpu.matmul %67, %68, %cst_35 {dimension_numbers = #tpu.dot_dimension_numbers<[1], [1], [0], [0], [0, 0, 1, 0], [], []>} : vector<4x8xbf16>, vector<8x8xbf16>, vector<4x8xf32> -> vector<4x8xf32>
      %cst_36 = arith.constant 0.353553385 : f32
      %70 = vector.broadcast %cst_36 : f32 to vector<4x8xf32>
      %71 = arith.mulf %69, %70 : vector<4x8xf32>
      %c1 = arith.constant 1 : index
      %c0_37 = arith.constant 0 : index
      %c0_38 = arith.constant 0 : index
      %72 = vector.load %arg12[%c1, %c0_37, %c0_38] : memref<4x4x1xf32, #tpu.memory_space<vmem>>, vector<1x4x1xf32>
      %73 = vector.shape_cast %72 : vector<1x4x1xf32> to vector<4x1xf32>
      %cst_39 = arith.constant dense<0xFF800000> : vector<4xf32>
      %74 = vector.multi_reduction <maximumf>, %71, %cst_39 [1] : vector<4x8xf32> to vector<4xf32>
      %75 = vector.shape_cast %74 : vector<4xf32> to vector<4x1xf32>
      %76 = arith.maximumf %73, %75 : vector<4x1xf32>
      %77 = arith.subf %73, %76 : vector<4x1xf32>
      %78 = math.exp %77 : vector<4x1xf32>
      %79 = vector.broadcast %76 : vector<4x1xf32> to vector<4x8xf32>
      %80 = arith.subf %71, %79 : vector<4x8xf32>
      %81 = math.exp %80 : vector<4x8xf32>
      %c1_40 = arith.constant 1 : index
      %c0_41 = arith.constant 0 : index
      %c0_42 = arith.constant 0 : index
      %82 = vector.load %arg13[%c1_40, %c0_41, %c0_42] : memref<4x4x1xf32, #tpu.memory_space<vmem>>, vector<1x4x1xf32>
      %83 = vector.shape_cast %82 : vector<1x4x1xf32> to vector<4x1xf32>
      %84 = arith.mulf %78, %83 : vector<4x1xf32>
      %cst_43 = arith.constant dense<0.000000e+00> : vector<4xf32>
      %85 = vector.multi_reduction <add>, %81, %cst_43 [1] : vector<4x8xf32> to vector<4xf32>
      %86 = vector.shape_cast %85 : vector<4xf32> to vector<4x1xf32>
      %87 = arith.addf %84, %86 : vector<4x1xf32>
      %c1_44 = arith.constant 1 : index
      %c0_45 = arith.constant 0 : index
      %c0_46 = arith.constant 0 : index
      %88 = vector.load %arg13[%c1_44, %c0_45, %c0_46] : memref<4x4x1xf32, #tpu.memory_space<vmem>>, vector<1x4x1xf32>
      %89 = vector.shape_cast %88 : vector<1x4x1xf32> to vector<4x1xf32>
      %90 = vector.shape_cast %87 : vector<4x1xf32> to vector<1x4x1xf32>
      tpu.vector_store %arg13[%c1_44, %c0_45, %c0_46], %90 {strides = array<i32>} : memref<4x4x1xf32, #tpu.memory_space<vmem>>, vector<1x4x1xf32>,
      %c0_47 = arith.constant 0 : index
      %c8 = arith.constant 8 : index
      %91 = vector.load %arg14[%c0_47, %c8] : memref<4x32xf32, #tpu.memory_space<vmem>>, vector<4x8xf32>
      %92 = vector.broadcast %78 : vector<4x1xf32> to vector<4x8xf32>
      %93 = arith.mulf %92, %91 : vector<4x8xf32>
      %94 = arith.truncf %81 : vector<4x8xf32> to vector<4x8xbf16>
      %95 = vector.extract_strided_slice %30 {offsets = [0, 8], sizes = [8, 8], strides = [1, 1]} : vector<8x32xbf16> to vector<8x8xbf16>
      %cst_48 = arith.constant dense<0.000000e+00> : vector<4x8xf32>
      %96 = tpu.matmul %94, %95, %cst_48 {dimension_numbers = #tpu.dot_dimension_numbers<[1], [0], [0], [1], [0, 0, 1, 1], [], []>} : vector<4x8xbf16>, vector<8x8xbf16>, vector<4x8xf32> -> vector<4x8xf32>
      %97 = arith.addf %93, %96 : vector<4x8xf32>
      %c0_49 = arith.constant 0 : index
      %c8_50 = arith.constant 8 : index
      %98 = vector.load %arg14[%c0_49, %c8_50] : memref<4x32xf32, #tpu.memory_space<vmem>>, vector<4x8xf32>
      tpu.vector_store %arg14[%c0_49, %c8_50], %97 {strides = array<i32>} : memref<4x32xf32, #tpu.memory_space<vmem>>, vector<4x8xf32>,
      %c1_51 = arith.constant 1 : index
      %c0_52 = arith.constant 0 : index
      %c0_53 = arith.constant 0 : index
      %99 = vector.load %arg12[%c1_51, %c0_52, %c0_53] : memref<4x4x1xf32, #tpu.memory_space<vmem>>, vector<1x4x1xf32>
      %100 = vector.shape_cast %99 : vector<1x4x1xf32> to vector<4x1xf32>
      %101 = vector.shape_cast %76 : vector<4x1xf32> to vector<1x4x1xf32>
      tpu.vector_store %arg12[%c1_51, %c0_52, %c0_53], %101 {strides = array<i32>} : memref<4x4x1xf32, #tpu.memory_space<vmem>>, vector<1x4x1xf32>,
      %102 = vector.extract_strided_slice %31 {offsets = [0, 16], sizes = [4, 8], strides = [1, 1]} : vector<4x32xbf16> to vector<4x8xbf16>
      %103 = vector.extract_strided_slice %28 {offsets = [0, 16], sizes = [8, 8], strides = [1, 1]} : vector<8x32xbf16> to vector<8x8xbf16>
      %cst_54 = arith.constant dense<0.000000e+00> : vector<4x8xf32>
      %104 = tpu.matmul %102, %103, %cst_54 {dimension_numbers = #tpu.dot_dimension_numbers<[1], [1], [0], [0], [0, 0, 1, 0], [], []>} : vector<4x8xbf16>, vector<8x8xbf16>, vector<4x8xf32> -> vector<4x8xf32>
      %cst_55 = arith.constant 0.353553385 : f32
      %105 = vector.broadcast %cst_55 : f32 to vector<4x8xf32>
      %106 = arith.mulf %104, %105 : vector<4x8xf32>
      %c2 = arith.constant 2 : index
      %c0_56 = arith.constant 0 : index
      %c0_57 = arith.constant 0 : index
      %107 = vector.load %arg12[%c2, %c0_56, %c0_57] : memref<4x4x1xf32, #tpu.memory_space<vmem>>, vector<1x4x1xf32>
      %108 = vector.shape_cast %107 : vector<1x4x1xf32> to vector<4x1xf32>
      %cst_58 = arith.constant dense<0xFF800000> : vector<4xf32>
      %109 = vector.multi_reduction <maximumf>, %106, %cst_58 [1] : vector<4x8xf32> to vector<4xf32>
      %110 = vector.shape_cast %109 : vector<4xf32> to vector<4x1xf32>
      %111 = arith.maximumf %108, %110 : vector<4x1xf32>
      %112 = arith.subf %108, %111 : vector<4x1xf32>
      %113 = math.exp %112 : vector<4x1xf32>
      %114 = vector.broadcast %111 : vector<4x1xf32> to vector<4x8xf32>
      %115 = arith.subf %106, %114 : vector<4x8xf32>
      %116 = math.exp %115 : vector<4x8xf32>
      %c2_59 = arith.constant 2 : index
      %c0_60 = arith.constant 0 : index
      %c0_61 = arith.constant 0 : index
      %117 = vector.load %arg13[%c2_59, %c0_60, %c0_61] : memref<4x4x1xf32, #tpu.memory_space<vmem>>, vector<1x4x1xf32>
      %118 = vector.shape_cast %117 : vector<1x4x1xf32> to vector<4x1xf32>
      %119 = arith.mulf %113, %118 : vector<4x1xf32>
      %cst_62 = arith.constant dense<0.000000e+00> : vector<4xf32>
      %120 = vector.multi_reduction <add>, %116, %cst_62 [1] : vector<4x8xf32> to vector<4xf32>
      %121 = vector.shape_cast %120 : vector<4xf32> to vector<4x1xf32>
      %122 = arith.addf %119, %121 : vector<4x1xf32>
      %c2_63 = arith.constant 2 : index
      %c0_64 = arith.constant 0 : index
      %c0_65 = arith.constant 0 : index
      %123 = vector.load %arg13[%c2_63, %c0_64, %c0_65] : memref<4x4x1xf32, #tpu.memory_space<vmem>>, vector<1x4x1xf32>
      %124 = vector.shape_cast %123 : vector<1x4x1xf32> to vector<4x1xf32>
      %125 = vector.shape_cast %122 : vector<4x1xf32> to vector<1x4x1xf32>
      tpu.vector_store %arg13[%c2_63, %c0_64, %c0_65], %125 {strides = array<i32>} : memref<4x4x1xf32, #tpu.memory_space<vmem>>, vector<1x4x1xf32>,
      %c0_66 = arith.constant 0 : index
      %c16 = arith.constant 16 : index
      %126 = vector.load %arg14[%c0_66, %c16] : memref<4x32xf32, #tpu.memory_space<vmem>>, vector<4x8xf32>
      %127 = vector.broadcast %113 : vector<4x1xf32> to vector<4x8xf32>
      %128 = arith.mulf %127, %126 : vector<4x8xf32>
      %129 = arith.truncf %116 : vector<4x8xf32> to vector<4x8xbf16>
      %130 = vector.extract_strided_slice %30 {offsets = [0, 16], sizes = [8, 8], strides = [1, 1]} : vector<8x32xbf16> to vector<8x8xbf16>
      %cst_67 = arith.constant dense<0.000000e+00> : vector<4x8xf32>
      %131 = tpu.matmul %129, %130, %cst_67 {dimension_numbers = #tpu.dot_dimension_numbers<[1], [0], [0], [1], [0, 0, 1, 1], [], []>} : vector<4x8xbf16>, vector<8x8xbf16>, vector<4x8xf32> -> vector<4x8xf32>
      %132 = arith.addf %128, %131 : vector<4x8xf32>
      %c0_68 = arith.constant 0 : index
      %c16_69 = arith.constant 16 : index
      %133 = vector.load %arg14[%c0_68, %c16_69] : memref<4x32xf32, #tpu.memory_space<vmem>>, vector<4x8xf32>
      tpu.vector_store %arg14[%c0_68, %c16_69], %132 {strides = array<i32>} : memref<4x32xf32, #tpu.memory_space<vmem>>, vector<4x8xf32>,
      %c2_70 = arith.constant 2 : index
      %c0_71 = arith.constant 0 : index
      %c0_72 = arith.constant 0 : index
      %134 = vector.load %arg12[%c2_70, %c0_71, %c0_72] : memref<4x4x1xf32, #tpu.memory_space<vmem>>, vector<1x4x1xf32>
      %135 = vector.shape_cast %134 : vector<1x4x1xf32> to vector<4x1xf32>
      %136 = vector.shape_cast %111 : vector<4x1xf32> to vector<1x4x1xf32>
      tpu.vector_store %arg12[%c2_70, %c0_71, %c0_72], %136 {strides = array<i32>} : memref<4x4x1xf32, #tpu.memory_space<vmem>>, vector<1x4x1xf32>,
      %137 = vector.extract_strided_slice %31 {offsets = [0, 24], sizes = [4, 8], strides = [1, 1]} : vector<4x32xbf16> to vector<4x8xbf16>
      %138 = vector.extract_strided_slice %28 {offsets = [0, 24], sizes = [8, 8], strides = [1, 1]} : vector<8x32xbf16> to vector<8x8xbf16>
      %cst_73 = arith.constant dense<0.000000e+00> : vector<4x8xf32>
      %139 = tpu.matmul %137, %138, %cst_73 {dimension_numbers = #tpu.dot_dimension_numbers<[1], [1], [0], [0], [0, 0, 1, 0], [], []>} : vector<4x8xbf16>, vector<8x8xbf16>, vector<4x8xf32> -> vector<4x8xf32>
      %cst_74 = arith.constant 0.353553385 : f32
      %140 = vector.broadcast %cst_74 : f32 to vector<4x8xf32>
      %141 = arith.mulf %139, %140 : vector<4x8xf32>
      %c3 = arith.constant 3 : index
      %c0_75 = arith.constant 0 : index
      %c0_76 = arith.constant 0 : index
      %142 = vector.load %arg12[%c3, %c0_75, %c0_76] : memref<4x4x1xf32, #tpu.memory_space<vmem>>, vector<1x4x1xf32>
      %143 = vector.shape_cast %142 : vector<1x4x1xf32> to vector<4x1xf32>
      %cst_77 = arith.constant dense<0xFF800000> : vector<4xf32>
      %144 = vector.multi_reduction <maximumf>, %141, %cst_77 [1] : vector<4x8xf32> to vector<4xf32>
      %145 = vector.shape_cast %144 : vector<4xf32> to vector<4x1xf32>
      %146 = arith.maximumf %143, %145 : vector<4x1xf32>
      %147 = arith.subf %143, %146 : vector<4x1xf32>
      %148 = math.exp %147 : vector<4x1xf32>
      %149 = vector.broadcast %146 : vector<4x1xf32> to vector<4x8xf32>
      %150 = arith.subf %141, %149 : vector<4x8xf32>
      %151 = math.exp %150 : vector<4x8xf32>
      %c3_78 = arith.constant 3 : index
      %c0_79 = arith.constant 0 : index
      %c0_80 = arith.constant 0 : index
      %152 = vector.load %arg13[%c3_78, %c0_79, %c0_80] : memref<4x4x1xf32, #tpu.memory_space<vmem>>, vector<1x4x1xf32>
      %153 = vector.shape_cast %152 : vector<1x4x1xf32> to vector<4x1xf32>
      %154 = arith.mulf %148, %153 : vector<4x1xf32>
      %cst_81 = arith.constant dense<0.000000e+00> : vector<4xf32>
      %155 = vector.multi_reduction <add>, %151, %cst_81 [1] : vector<4x8xf32> to vector<4xf32>
      %156 = vector.shape_cast %155 : vector<4xf32> to vector<4x1xf32>
      %157 = arith.addf %154, %156 : vector<4x1xf32>
      %c3_82 = arith.constant 3 : index
      %c0_83 = arith.constant 0 : index
      %c0_84 = arith.constant 0 : index
      %158 = vector.load %arg13[%c3_82, %c0_83, %c0_84] : memref<4x4x1xf32, #tpu.memory_space<vmem>>, vector<1x4x1xf32>
      %159 = vector.shape_cast %158 : vector<1x4x1xf32> to vector<4x1xf32>
      %160 = vector.shape_cast %157 : vector<4x1xf32> to vector<1x4x1xf32>
      tpu.vector_store %arg13[%c3_82, %c0_83, %c0_84], %160 {strides = array<i32>} : memref<4x4x1xf32, #tpu.memory_space<vmem>>, vector<1x4x1xf32>,
      %c0_85 = arith.constant 0 : index
      %c24 = arith.constant 24 : index
      %161 = vector.load %arg14[%c0_85, %c24] : memref<4x32xf32, #tpu.memory_space<vmem>>, vector<4x8xf32>
      %162 = vector.broadcast %148 : vector<4x1xf32> to vector<4x8xf32>
      %163 = arith.mulf %162, %161 : vector<4x8xf32>
      %164 = arith.truncf %151 : vector<4x8xf32> to vector<4x8xbf16>
      %165 = vector.extract_strided_slice %30 {offsets = [0, 24], sizes = [8, 8], strides = [1, 1]} : vector<8x32xbf16> to vector<8x8xbf16>
      %cst_86 = arith.constant dense<0.000000e+00> : vector<4x8xf32>
      %166 = tpu.matmul %164, %165, %cst_86 {dimension_numbers = #tpu.dot_dimension_numbers<[1], [0], [0], [1], [0, 0, 1, 1], [], []>} : vector<4x8xbf16>, vector<8x8xbf16>, vector<4x8xf32> -> vector<4x8xf32>
      %167 = arith.addf %163, %166 : vector<4x8xf32>
      %c0_87 = arith.constant 0 : index
      %c24_88 = arith.constant 24 : index
      %168 = vector.load %arg14[%c0_87, %c24_88] : memref<4x32xf32, #tpu.memory_space<vmem>>, vector<4x8xf32>
      tpu.vector_store %arg14[%c0_87, %c24_88], %167 {strides = array<i32>} : memref<4x32xf32, #tpu.memory_space<vmem>>, vector<4x8xf32>,
      %c3_89 = arith.constant 3 : index
      %c0_90 = arith.constant 0 : index
      %c0_91 = arith.constant 0 : index
      %169 = vector.load %arg12[%c3_89, %c0_90, %c0_91] : memref<4x4x1xf32, #tpu.memory_space<vmem>>, vector<1x4x1xf32>
      %170 = vector.shape_cast %169 : vector<1x4x1xf32> to vector<4x1xf32>
      %171 = vector.shape_cast %146 : vector<4x1xf32> to vector<1x4x1xf32>
      tpu.vector_store %arg12[%c3_89, %c0_90, %c0_91], %171 {strides = array<i32>} : memref<4x4x1xf32, #tpu.memory_space<vmem>>, vector<1x4x1xf32>,
    } else {
    }
    %c0_i32_3 = arith.constant 0 : i32
    %14 = arith.cmpi eq, %arg1, %c0_i32_3 : i32
    %15 = arith.extui %14 : i1 to i32
    %c0_i32_4 = arith.constant 0 : i32
    %16 = arith.cmpi ne, %15, %c0_i32_4 : i32
    scf.if %16 {
      %c0_7 = arith.constant 0 : index
      %c0_8 = arith.constant 0 : index
      %c0_9 = arith.constant 0 : index
      %20 = vector.load %arg13[%c0_7, %c0_8, %c0_9] : memref<4x4x1xf32, #tpu.memory_space<vmem>>, vector<1x4x1xf32>
      %21 = vector.shape_cast %20 : vector<1x4x1xf32> to vector<4x1xf32>
      %22 = tpu.reciprocal %21 {approx = true} : vector<4x1xf32> -> vector<4x1xf32>
      %23 = arith.mulf %21, %22 : vector<4x1xf32>
      %cst = arith.constant 2.000000e+00 : f32
      %24 = vector.broadcast %cst : f32 to vector<4x1xf32>
      %25 = arith.subf %24, %23 : vector<4x1xf32>
      %26 = arith.mulf %22, %25 : vector<4x1xf32>
      %c0_10 = arith.constant 0 : index
      %c0_11 = arith.constant 0 : index
      %27 = vector.load %arg14[%c0_10, %c0_11] : memref<4x32xf32, #tpu.memory_space<vmem>>, vector<4x8xf32>
      %28 = vector.broadcast %26 : vector<4x1xf32> to vector<4x8xf32>
      %29 = arith.mulf %27, %28 : vector<4x8xf32>
      %c0_12 = arith.constant 0 : index
      %c0_13 = arith.constant 0 : index
      %30 = vector.load %arg14[%c0_12, %c0_13] : memref<4x32xf32, #tpu.memory_space<vmem>>, vector<4x8xf32>
      tpu.vector_store %arg14[%c0_12, %c0_13], %29 {strides = array<i32>} : memref<4x32xf32, #tpu.memory_space<vmem>>, vector<4x8xf32>,
      %c1 = arith.constant 1 : index
      %c0_14 = arith.constant 0 : index
      %c0_15 = arith.constant 0 : index
      %31 = vector.load %arg13[%c1, %c0_14, %c0_15] : memref<4x4x1xf32, #tpu.memory_space<vmem>>, vector<1x4x1xf32>
      %32 = vector.shape_cast %31 : vector<1x4x1xf32> to vector<4x1xf32>
      %33 = tpu.reciprocal %32 {approx = true} : vector<4x1xf32> -> vector<4x1xf32>
      %34 = arith.mulf %32, %33 : vector<4x1xf32>
      %cst_16 = arith.constant 2.000000e+00 : f32
      %35 = vector.broadcast %cst_16 : f32 to vector<4x1xf32>
      %36 = arith.subf %35, %34 : vector<4x1xf32>
      %37 = arith.mulf %33, %36 : vector<4x1xf32>
      %c0_17 = arith.constant 0 : index
      %c8 = arith.constant 8 : index
      %38 = vector.load %arg14[%c0_17, %c8] : memref<4x32xf32, #tpu.memory_space<vmem>>, vector<4x8xf32>
      %39 = vector.broadcast %37 : vector<4x1xf32> to vector<4x8xf32>
      %40 = arith.mulf %38, %39 : vector<4x8xf32>
      %c0_18 = arith.constant 0 : index
      %c8_19 = arith.constant 8 : index
      %41 = vector.load %arg14[%c0_18, %c8_19] : memref<4x32xf32, #tpu.memory_space<vmem>>, vector<4x8xf32>
      tpu.vector_store %arg14[%c0_18, %c8_19], %40 {strides = array<i32>} : memref<4x32xf32, #tpu.memory_space<vmem>>, vector<4x8xf32>,
      %c2 = arith.constant 2 : index
      %c0_20 = arith.constant 0 : index
      %c0_21 = arith.constant 0 : index
      %42 = vector.load %arg13[%c2, %c0_20, %c0_21] : memref<4x4x1xf32, #tpu.memory_space<vmem>>, vector<1x4x1xf32>
      %43 = vector.shape_cast %42 : vector<1x4x1xf32> to vector<4x1xf32>
      %44 = tpu.reciprocal %43 {approx = true} : vector<4x1xf32> -> vector<4x1xf32>
      %45 = arith.mulf %43, %44 : vector<4x1xf32>
      %cst_22 = arith.constant 2.000000e+00 : f32
      %46 = vector.broadcast %cst_22 : f32 to vector<4x1xf32>
      %47 = arith.subf %46, %45 : vector<4x1xf32>
      %48 = arith.mulf %44, %47 : vector<4x1xf32>
      %c0_23 = arith.constant 0 : index
      %c16 = arith.constant 16 : index
      %49 = vector.load %arg14[%c0_23, %c16] : memref<4x32xf32, #tpu.memory_space<vmem>>, vector<4x8xf32>
      %50 = vector.broadcast %48 : vector<4x1xf32> to vector<4x8xf32>
      %51 = arith.mulf %49, %50 : vector<4x8xf32>
      %c0_24 = arith.constant 0 : index
      %c16_25 = arith.constant 16 : index
      %52 = vector.load %arg14[%c0_24, %c16_25] : memref<4x32xf32, #tpu.memory_space<vmem>>, vector<4x8xf32>
      tpu.vector_store %arg14[%c0_24, %c16_25], %51 {strides = array<i32>} : memref<4x32xf32, #tpu.memory_space<vmem>>, vector<4x8xf32>,
      %c3 = arith.constant 3 : index
      %c0_26 = arith.constant 0 : index
      %c0_27 = arith.constant 0 : index
      %53 = vector.load %arg13[%c3, %c0_26, %c0_27] : memref<4x4x1xf32, #tpu.memory_space<vmem>>, vector<1x4x1xf32>
      %54 = vector.shape_cast %53 : vector<1x4x1xf32> to vector<4x1xf32>
      %55 = tpu.reciprocal %54 {approx = true} : vector<4x1xf32> -> vector<4x1xf32>
      %56 = arith.mulf %54, %55 : vector<4x1xf32>
      %cst_28 = arith.constant 2.000000e+00 : f32
      %57 = vector.broadcast %cst_28 : f32 to vector<4x1xf32>
      %58 = arith.subf %57, %56 : vector<4x1xf32>
      %59 = arith.mulf %55, %58 : vector<4x1xf32>
      %c0_29 = arith.constant 0 : index
      %c24 = arith.constant 24 : index
      %60 = vector.load %arg14[%c0_29, %c24] : memref<4x32xf32, #tpu.memory_space<vmem>>, vector<4x8xf32>
      %61 = vector.broadcast %59 : vector<4x1xf32> to vector<4x8xf32>
      %62 = arith.mulf %60, %61 : vector<4x8xf32>
      %c0_30 = arith.constant 0 : index
      %c24_31 = arith.constant 24 : index
      %63 = vector.load %arg14[%c0_30, %c24_31] : memref<4x32xf32, #tpu.memory_space<vmem>>, vector<4x8xf32>
      tpu.vector_store %arg14[%c0_30, %c24_31], %62 {strides = array<i32>} : memref<4x32xf32, #tpu.memory_space<vmem>>, vector<4x8xf32>,
      %c0_32 = arith.constant 0 : index
      %c0_33 = arith.constant 0 : index
      %64 = vector.load %arg14[%c0_32, %c0_33] : memref<4x32xf32, #tpu.memory_space<vmem>>, vector<4x32xf32>
      %65 = arith.truncf %64 : vector<4x32xf32> to vector<4x32xbf16>
      %c0_34 = arith.constant 0 : index
      %c0_35 = arith.constant 0 : index
      %66 = vector.load %arg7[%c0_34, %c0_35] : memref<32x32xbf16, #tpu.memory_space<vmem>>, vector<32x32xbf16>
      %cst_36 = arith.constant dense<0.000000e+00> : vector<4x32xf32>
      %67 = tpu.matmul %65, %66, %cst_36 {dimension_numbers = #tpu.dot_dimension_numbers<[1], [0], [0], [1], [0, 0, 1, 1], [], []>} : vector<4x32xbf16>, vector<32x32xbf16>, vector<4x32xf32> -> vector<4x32xf32>
      %68 = vector.broadcast %3 : vector<1x32xf32> to vector<4x32xf32>
      %69 = arith.addf %67, %68 : vector<4x32xf32>
      %c0_37 = arith.constant 0 : index
      %c0_38 = arith.constant 0 : index
      %70 = vector.load %arg3[%c0_37, %c0_38] : memref<4x32xf32, #tpu.memory_space<vmem>>, vector<4x32xf32>
      %71 = arith.addf %70, %69 : vector<4x32xf32>
      %cst_39 = arith.constant dense<0.000000e+00> : vector<4xf32>
      %72 = vector.multi_reduction <add>, %71, %cst_39 [1] : vector<4x32xf32> to vector<4xf32>
      %73 = vector.shape_cast %72 : vector<4xf32> to vector<4x1xf32>
      %cst_40 = arith.constant 3.200000e+01 : f32
      %74 = vector.broadcast %cst_40 : f32 to vector<4x1xf32>
      %75 = arith.divf %73, %74 : vector<4x1xf32>
      %76 = vector.broadcast %75 : vector<4x1xf32> to vector<4x32xf32>
      %77 = arith.subf %71, %76 : vector<4x32xf32>
      %78 = arith.mulf %77, %77 : vector<4x32xf32>
      %cst_41 = arith.constant dense<0.000000e+00> : vector<4xf32>
      %79 = vector.multi_reduction <add>, %78, %cst_41 [1] : vector<4x32xf32> to vector<4xf32>
      %80 = vector.shape_cast %79 : vector<4xf32> to vector<4x1xf32>
      %cst_42 = arith.constant 3.200000e+01 : f32
      %81 = vector.broadcast %cst_42 : f32 to vector<4x1xf32>
      %82 = arith.divf %80, %81 : vector<4x1xf32>
      %83 = vector.broadcast %75 : vector<4x1xf32> to vector<4x32xf32>
      %84 = arith.subf %71, %83 : vector<4x32xf32>
      %cst_43 = arith.constant 9.99999974E-6 : f32
      %85 = vector.broadcast %cst_43 : f32 to vector<4x1xf32>
      %86 = arith.addf %82, %85 : vector<4x1xf32>
      %87 = math.rsqrt %86 : vector<4x1xf32>
      %88 = vector.broadcast %87 : vector<4x1xf32> to vector<4x32xf32>
      %89 = arith.mulf %84, %88 : vector<4x32xf32>
      %90 = vector.broadcast %4 : vector<1x32xf32> to vector<4x32xf32>
      %91 = arith.mulf %89, %90 : vector<4x32xf32>
      %92 = vector.broadcast %5 : vector<1x32xf32> to vector<4x32xf32>
      %93 = arith.addf %91, %92 : vector<4x32xf32>
      %94 = arith.truncf %93 : vector<4x32xf32> to vector<4x32xbf16>
      %c0_44 = arith.constant 0 : index
      %c0_45 = arith.constant 0 : index
      %95 = vector.load %arg8[%c0_44, %c0_45] : memref<32x64xbf16, #tpu.memory_space<vmem>>, vector<32x64xbf16>
      %cst_46 = arith.constant dense<0.000000e+00> : vector<4x64xf32>
      %96 = tpu.matmul %94, %95, %cst_46 {dimension_numbers = #tpu.dot_dimension_numbers<[1], [0], [0], [1], [0, 0, 1, 1], [], []>} : vector<4x32xbf16>, vector<32x64xbf16>, vector<4x64xf32> -> vector<4x64xf32>
      %97 = vector.broadcast %2 : vector<1x64xf32> to vector<4x64xf32>
      %98 = arith.addf %96, %97 : vector<4x64xf32>
      %99 = arith.truncf %98 : vector<4x64xf32> to vector<4x64xbf16>
      %c0_47 = arith.constant 0 : index
      %c0_48 = arith.constant 0 : index
      %100 = vector.load %arg15[%c0_47, %c0_48] : memref<4x64xbf16, #tpu.memory_space<vmem>>, vector<4x64xbf16>
      tpu.vector_store %arg15[%c0_47, %c0_48], %99 {strides = array<i32>} : memref<4x64xbf16, #tpu.memory_space<vmem>>, vector<4x64xbf16>,
    } else {
    }
    %c1_i32_5 = arith.constant 1 : i32
    %17 = arith.cmpi sge, %arg1, %c1_i32_5 : i32
    %18 = arith.extui %17 : i1 to i32
    %c0_i32_6 = arith.constant 0 : i32
    %19 = arith.cmpi ne, %18, %c0_i32_6 : i32
    scf.if %19 {
      %c0_7 = arith.constant 0 : index
      %c0_8 = arith.constant 0 : index
      %c0_9 = arith.constant 0 : index
      %20 = vector.load %arg2[%c0_7, %c0_8, %c0_9] : memref<1x8x32xf32, #tpu.memory_space<vmem>>, vector<1x8x32xf32>
      %21 = vector.shape_cast %20 : vector<1x8x32xf32> to vector<8x32xf32>
      %22 = arith.truncf %21 : vector<8x32xf32> to vector<8x32xbf16>
      %c0_10 = arith.constant 0 : index
      %c0_11 = arith.constant 0 : index
      %23 = vector.load %arg6[%c0_10, %c0_11] : memref<32x32xbf16, #tpu.memory_space<vmem>>, vector<32x32xbf16>
      %cst = arith.constant dense<0.000000e+00> : vector<8x32xf32>
      %24 = tpu.matmul %22, %23, %cst {dimension_numbers = #tpu.dot_dimension_numbers<[1], [0], [0], [1], [0, 0, 1, 1], [], []>} : vector<8x32xbf16>, vector<32x32xbf16>, vector<8x32xf32> -> vector<8x32xf32>
      %25 = vector.broadcast %6 : vector<1x32xf32> to vector<8x32xf32>
      %26 = arith.addf %24, %25 : vector<8x32xf32>
      %27 = arith.truncf %26 : vector<8x32xf32> to vector<8x32xbf16>
      %c0_12 = arith.constant 0 : index
      %c0_13 = arith.constant 0 : index
      %28 = vector.load %arg15[%c0_12, %c0_13] : memref<4x64xbf16, #tpu.memory_space<vmem>>, vector<4x32xbf16>
      %c0_14 = arith.constant 0 : index
      %c32 = arith.constant 32 : index
      %29 = vector.load %arg15[%c0_14, %c32] : memref<4x64xbf16, #tpu.memory_space<vmem>>, vector<4x32xbf16>
      %30 = vector.extract_strided_slice %27 {offsets = [0, 0], sizes = [8, 8], strides = [1, 1]} : vector<8x32xbf16> to vector<8x8xbf16>
      %31 = vector.extract_strided_slice %28 {offsets = [0, 0], sizes = [4, 8], strides = [1, 1]} : vector<4x32xbf16> to vector<4x8xbf16>
      %cst_15 = arith.constant dense<0.000000e+00> : vector<8x4xf32>
      %32 = tpu.matmul %30, %31, %cst_15 {dimension_numbers = #tpu.dot_dimension_numbers<[1], [1], [0], [0], [0, 0, 1, 0], [], []>} : vector<8x8xbf16>, vector<4x8xbf16>, vector<8x4xf32> -> vector<8x4xf32>
      %cst_16 = arith.constant 0.353553385 : f32
      %33 = vector.broadcast %cst_16 : f32 to vector<8x4xf32>
      %34 = arith.mulf %32, %33 : vector<8x4xf32>
      %cst_17 = arith.constant dense<0xFF800000> : vector<8xf32>
      %35 = vector.multi_reduction <maximumf>, %34, %cst_17 [1] : vector<8x4xf32> to vector<8xf32>
      %36 = vector.shape_cast %35 : vector<8xf32> to vector<8x1xf32>
      %37 = vector.broadcast %36 : vector<8x1xf32> to vector<8x4xf32>
      %38 = arith.subf %34, %37 : vector<8x4xf32>
      %39 = math.exp %38 : vector<8x4xf32>
      %cst_18 = arith.constant dense<0.000000e+00> : vector<8xf32>
      %40 = vector.multi_reduction <add>, %39, %cst_18 [1] : vector<8x4xf32> to vector<8xf32>
      %41 = vector.shape_cast %40 : vector<8xf32> to vector<8x1xf32>
      %42 = tpu.reciprocal %41 {approx = true} : vector<8x1xf32> -> vector<8x1xf32>
      %43 = arith.mulf %41, %42 : vector<8x1xf32>
      %cst_19 = arith.constant 2.000000e+00 : f32
      %44 = vector.broadcast %cst_19 : f32 to vector<8x1xf32>
      %45 = arith.subf %44, %43 : vector<8x1xf32>
      %46 = arith.mulf %42, %45 : vector<8x1xf32>
      %47 = vector.broadcast %46 : vector<8x1xf32> to vector<8x4xf32>
      %48 = arith.mulf %39, %47 : vector<8x4xf32>
      %49 = arith.truncf %48 : vector<8x4xf32> to vector<8x4xbf16>
      %50 = vector.extract_strided_slice %29 {offsets = [0, 0], sizes = [4, 8], strides = [1, 1]} : vector<4x32xbf16> to vector<4x8xbf16>
      %cst_20 = arith.constant dense<0.000000e+00> : vector<8x8xf32>
      %51 = tpu.matmul %49, %50, %cst_20 {dimension_numbers = #tpu.dot_dimension_numbers<[1], [0], [0], [1], [0, 0, 1, 1], [], []>} : vector<8x4xbf16>, vector<4x8xbf16>, vector<8x8xf32> -> vector<8x8xf32>
      %c0_21 = arith.constant 0 : index
      %c0_22 = arith.constant 0 : index
      %52 = vector.load %arg16[%c0_21, %c0_22] : memref<8x32xf32, #tpu.memory_space<vmem>>, vector<8x8xf32>
      tpu.vector_store %arg16[%c0_21, %c0_22], %51 {strides = array<i32>} : memref<8x32xf32, #tpu.memory_space<vmem>>, vector<8x8xf32>,
      %53 = vector.extract_strided_slice %27 {offsets = [0, 8], sizes = [8, 8], strides = [1, 1]} : vector<8x32xbf16> to vector<8x8xbf16>
      %54 = vector.extract_strided_slice %28 {offsets = [0, 8], sizes = [4, 8], strides = [1, 1]} : vector<4x32xbf16> to vector<4x8xbf16>
      %cst_23 = arith.constant dense<0.000000e+00> : vector<8x4xf32>
      %55 = tpu.matmul %53, %54, %cst_23 {dimension_numbers = #tpu.dot_dimension_numbers<[1], [1], [0], [0], [0, 0, 1, 0], [], []>} : vector<8x8xbf16>, vector<4x8xbf16>, vector<8x4xf32> -> vector<8x4xf32>
      %cst_24 = arith.constant 0.353553385 : f32
      %56 = vector.broadcast %cst_24 : f32 to vector<8x4xf32>
      %57 = arith.mulf %55, %56 : vector<8x4xf32>
      %cst_25 = arith.constant dense<0xFF800000> : vector<8xf32>
      %58 = vector.multi_reduction <maximumf>, %57, %cst_25 [1] : vector<8x4xf32> to vector<8xf32>
      %59 = vector.shape_cast %58 : vector<8xf32> to vector<8x1xf32>
      %60 = vector.broadcast %59 : vector<8x1xf32> to vector<8x4xf32>
      %61 = arith.subf %57, %60 : vector<8x4xf32>
      %62 = math.exp %61 : vector<8x4xf32>
      %cst_26 = arith.constant dense<0.000000e+00> : vector<8xf32>
      %63 = vector.multi_reduction <add>, %62, %cst_26 [1] : vector<8x4xf32> to vector<8xf32>
      %64 = vector.shape_cast %63 : vector<8xf32> to vector<8x1xf32>
      %65 = tpu.reciprocal %64 {approx = true} : vector<8x1xf32> -> vector<8x1xf32>
      %66 = arith.mulf %64, %65 : vector<8x1xf32>
      %cst_27 = arith.constant 2.000000e+00 : f32
      %67 = vector.broadcast %cst_27 : f32 to vector<8x1xf32>
      %68 = arith.subf %67, %66 : vector<8x1xf32>
      %69 = arith.mulf %65, %68 : vector<8x1xf32>
      %70 = vector.broadcast %69 : vector<8x1xf32> to vector<8x4xf32>
      %71 = arith.mulf %62, %70 : vector<8x4xf32>
      %72 = arith.truncf %71 : vector<8x4xf32> to vector<8x4xbf16>
      %73 = vector.extract_strided_slice %29 {offsets = [0, 8], sizes = [4, 8], strides = [1, 1]} : vector<4x32xbf16> to vector<4x8xbf16>
      %cst_28 = arith.constant dense<0.000000e+00> : vector<8x8xf32>
      %74 = tpu.matmul %72, %73, %cst_28 {dimension_numbers = #tpu.dot_dimension_numbers<[1], [0], [0], [1], [0, 0, 1, 1], [], []>} : vector<8x4xbf16>, vector<4x8xbf16>, vector<8x8xf32> -> vector<8x8xf32>
      %c0_29 = arith.constant 0 : index
      %c8 = arith.constant 8 : index
      %75 = vector.load %arg16[%c0_29, %c8] : memref<8x32xf32, #tpu.memory_space<vmem>>, vector<8x8xf32>
      tpu.vector_store %arg16[%c0_29, %c8], %74 {strides = array<i32>} : memref<8x32xf32, #tpu.memory_space<vmem>>, vector<8x8xf32>,
      %76 = vector.extract_strided_slice %27 {offsets = [0, 16], sizes = [8, 8], strides = [1, 1]} : vector<8x32xbf16> to vector<8x8xbf16>
      %77 = vector.extract_strided_slice %28 {offsets = [0, 16], sizes = [4, 8], strides = [1, 1]} : vector<4x32xbf16> to vector<4x8xbf16>
      %cst_30 = arith.constant dense<0.000000e+00> : vector<8x4xf32>
      %78 = tpu.matmul %76, %77, %cst_30 {dimension_numbers = #tpu.dot_dimension_numbers<[1], [1], [0], [0], [0, 0, 1, 0], [], []>} : vector<8x8xbf16>, vector<4x8xbf16>, vector<8x4xf32> -> vector<8x4xf32>
      %cst_31 = arith.constant 0.353553385 : f32
      %79 = vector.broadcast %cst_31 : f32 to vector<8x4xf32>
      %80 = arith.mulf %78, %79 : vector<8x4xf32>
      %cst_32 = arith.constant dense<0xFF800000> : vector<8xf32>
      %81 = vector.multi_reduction <maximumf>, %80, %cst_32 [1] : vector<8x4xf32> to vector<8xf32>
      %82 = vector.shape_cast %81 : vector<8xf32> to vector<8x1xf32>
      %83 = vector.broadcast %82 : vector<8x1xf32> to vector<8x4xf32>
      %84 = arith.subf %80, %83 : vector<8x4xf32>
      %85 = math.exp %84 : vector<8x4xf32>
      %cst_33 = arith.constant dense<0.000000e+00> : vector<8xf32>
      %86 = vector.multi_reduction <add>, %85, %cst_33 [1] : vector<8x4xf32> to vector<8xf32>
      %87 = vector.shape_cast %86 : vector<8xf32> to vector<8x1xf32>
      %88 = tpu.reciprocal %87 {approx = true} : vector<8x1xf32> -> vector<8x1xf32>
      %89 = arith.mulf %87, %88 : vector<8x1xf32>
      %cst_34 = arith.constant 2.000000e+00 : f32
      %90 = vector.broadcast %cst_34 : f32 to vector<8x1xf32>
      %91 = arith.subf %90, %89 : vector<8x1xf32>
      %92 = arith.mulf %88, %91 : vector<8x1xf32>
      %93 = vector.broadcast %92 : vector<8x1xf32> to vector<8x4xf32>
      %94 = arith.mulf %85, %93 : vector<8x4xf32>
      %95 = arith.truncf %94 : vector<8x4xf32> to vector<8x4xbf16>
      %96 = vector.extract_strided_slice %29 {offsets = [0, 16], sizes = [4, 8], strides = [1, 1]} : vector<4x32xbf16> to vector<4x8xbf16>
      %cst_35 = arith.constant dense<0.000000e+00> : vector<8x8xf32>
      %97 = tpu.matmul %95, %96, %cst_35 {dimension_numbers = #tpu.dot_dimension_numbers<[1], [0], [0], [1], [0, 0, 1, 1], [], []>} : vector<8x4xbf16>, vector<4x8xbf16>, vector<8x8xf32> -> vector<8x8xf32>
      %c0_36 = arith.constant 0 : index
      %c16 = arith.constant 16 : index
      %98 = vector.load %arg16[%c0_36, %c16] : memref<8x32xf32, #tpu.memory_space<vmem>>, vector<8x8xf32>
      tpu.vector_store %arg16[%c0_36, %c16], %97 {strides = array<i32>} : memref<8x32xf32, #tpu.memory_space<vmem>>, vector<8x8xf32>,
      %99 = vector.extract_strided_slice %27 {offsets = [0, 24], sizes = [8, 8], strides = [1, 1]} : vector<8x32xbf16> to vector<8x8xbf16>
      %100 = vector.extract_strided_slice %28 {offsets = [0, 24], sizes = [4, 8], strides = [1, 1]} : vector<4x32xbf16> to vector<4x8xbf16>
      %cst_37 = arith.constant dense<0.000000e+00> : vector<8x4xf32>
      %101 = tpu.matmul %99, %100, %cst_37 {dimension_numbers = #tpu.dot_dimension_numbers<[1], [1], [0], [0], [0, 0, 1, 0], [], []>} : vector<8x8xbf16>, vector<4x8xbf16>, vector<8x4xf32> -> vector<8x4xf32>
      %cst_38 = arith.constant 0.353553385 : f32
      %102 = vector.broadcast %cst_38 : f32 to vector<8x4xf32>
      %103 = arith.mulf %101, %102 : vector<8x4xf32>
      %cst_39 = arith.constant dense<0xFF800000> : vector<8xf32>
      %104 = vector.multi_reduction <maximumf>, %103, %cst_39 [1] : vector<8x4xf32> to vector<8xf32>
      %105 = vector.shape_cast %104 : vector<8xf32> to vector<8x1xf32>
      %106 = vector.broadcast %105 : vector<8x1xf32> to vector<8x4xf32>
      %107 = arith.subf %103, %106 : vector<8x4xf32>
      %108 = math.exp %107 : vector<8x4xf32>
      %cst_40 = arith.constant dense<0.000000e+00> : vector<8xf32>
      %109 = vector.multi_reduction <add>, %108, %cst_40 [1] : vector<8x4xf32> to vector<8xf32>
      %110 = vector.shape_cast %109 : vector<8xf32> to vector<8x1xf32>
      %111 = tpu.reciprocal %110 {approx = true} : vector<8x1xf32> -> vector<8x1xf32>
      %112 = arith.mulf %110, %111 : vector<8x1xf32>
      %cst_41 = arith.constant 2.000000e+00 : f32
      %113 = vector.broadcast %cst_41 : f32 to vector<8x1xf32>
      %114 = arith.subf %113, %112 : vector<8x1xf32>
      %115 = arith.mulf %111, %114 : vector<8x1xf32>
      %116 = vector.broadcast %115 : vector<8x1xf32> to vector<8x4xf32>
      %117 = arith.mulf %108, %116 : vector<8x4xf32>
      %118 = arith.truncf %117 : vector<8x4xf32> to vector<8x4xbf16>
      %119 = vector.extract_strided_slice %29 {offsets = [0, 24], sizes = [4, 8], strides = [1, 1]} : vector<4x32xbf16> to vector<4x8xbf16>
      %cst_42 = arith.constant dense<0.000000e+00> : vector<8x8xf32>
      %120 = tpu.matmul %118, %119, %cst_42 {dimension_numbers = #tpu.dot_dimension_numbers<[1], [0], [0], [1], [0, 0, 1, 1], [], []>} : vector<8x4xbf16>, vector<4x8xbf16>, vector<8x8xf32> -> vector<8x8xf32>
      %c0_43 = arith.constant 0 : index
      %c24 = arith.constant 24 : index
      %121 = vector.load %arg16[%c0_43, %c24] : memref<8x32xf32, #tpu.memory_space<vmem>>, vector<8x8xf32>
      tpu.vector_store %arg16[%c0_43, %c24], %120 {strides = array<i32>} : memref<8x32xf32, #tpu.memory_space<vmem>>, vector<8x8xf32>,
      %c0_44 = arith.constant 0 : index
      %c0_45 = arith.constant 0 : index
      %122 = vector.load %arg16[%c0_44, %c0_45] : memref<8x32xf32, #tpu.memory_space<vmem>>, vector<8x32xf32>
      %123 = arith.truncf %122 : vector<8x32xf32> to vector<8x32xbf16>
      %c0_46 = arith.constant 0 : index
      %c0_47 = arith.constant 0 : index
      %124 = vector.load %arg9[%c0_46, %c0_47] : memref<32x32xbf16, #tpu.memory_space<vmem>>, vector<32x32xbf16>
      %cst_48 = arith.constant dense<0.000000e+00> : vector<8x32xf32>
      %125 = tpu.matmul %123, %124, %cst_48 {dimension_numbers = #tpu.dot_dimension_numbers<[1], [0], [0], [1], [0, 0, 1, 1], [], []>} : vector<8x32xbf16>, vector<32x32xbf16>, vector<8x32xf32> -> vector<8x32xf32>
      %126 = vector.broadcast %7 : vector<1x32xf32> to vector<8x32xf32>
      %127 = arith.addf %125, %126 : vector<8x32xf32>
      %c0_49 = arith.constant 0 : index
      %c0_50 = arith.constant 0 : index
      %c0_51 = arith.constant 0 : index
      %128 = vector.load %arg11[%c0_49, %c0_50, %c0_51] : memref<1x8x32xf32, #tpu.memory_space<vmem>>, vector<1x8x32xf32>
      %129 = vector.shape_cast %128 : vector<1x8x32xf32> to vector<8x32xf32>
      %130 = vector.shape_cast %127 : vector<8x32xf32> to vector<1x8x32xf32>
      tpu.vector_store %arg11[%c0_49, %c0_50, %c0_51], %130 {strides = array<i32>} : memref<1x8x32xf32, #tpu.memory_space<vmem>>, vector<1x8x32xf32>,
    } else {
    }
    return
  }
  func.func @transform_0(%arg0: i32, %arg1: i32) -> (i32, i32, i32) {
    %c1_i32 = arith.constant 1 : i32
    %c0_i32 = arith.constant 0 : i32
    %0 = arith.cmpi eq, %c1_i32, %c0_i32 : i32
    %c1_i32_0 = arith.constant 1 : i32
    %1 = arith.select %0, %c1_i32_0, %c1_i32 : i32
    %2 = arith.remsi %arg1, %1 : i32
    %c0_i32_1 = arith.constant 0 : i32
    %3 = arith.cmpi ne, %2, %c0_i32_1 : i32
    %c0_i32_2 = arith.constant 0 : i32
    %4 = arith.cmpi slt, %2, %c0_i32_2 : i32
    %c0_i32_3 = arith.constant 0 : i32
    %5 = arith.cmpi slt, %1, %c0_i32_3 : i32
    %6 = arith.xori %4, %5 : i1
    %7 = arith.andi %6, %3 : i1
    %8 = arith.addi %2, %1 : i32
    %9 = arith.select %7, %8, %2 : i32
    %c0_i32_4 = arith.constant 0 : i32
    %c0_i32_5 = arith.constant 0 : i32
    return %arg0, %9, %c0_i32_4 : i32, i32, i32
  }
  func.func @transform_1(%arg0: i32, %arg1: i32) -> (i32, i32) {
    %c0_i32 = arith.constant 0 : i32
    %c0_i32_0 = arith.constant 0 : i32
    %c0_i32_1 = arith.constant 0 : i32
    return %c0_i32, %c0_i32_0 : i32, i32
  }
  func.func @transform_2(%arg0: i32, %arg1: i32) -> (i32, i32) {
    %c0_i32 = arith.constant 0 : i32
    %c0_i32_0 = arith.constant 0 : i32
    %c0_i32_1 = arith.constant 0 : i32
    return %c0_i32, %c0_i32_0 : i32, i32
  }
  func.func @transform_3(%arg0: i32, %arg1: i32) -> (i32, i32) {
    %c0_i32 = arith.constant 0 : i32
    %c0_i32_0 = arith.constant 0 : i32
    %c0_i32_1 = arith.constant 0 : i32
    return %c0_i32, %c0_i32_0 : i32, i32
  }
  func.func @transform_4(%arg0: i32, %arg1: i32) -> (i32, i32) {
    %c0_i32 = arith.constant 0 : i32
    %c0_i32_0 = arith.constant 0 : i32
    %c0_i32_1 = arith.constant 0 : i32
    return %c0_i32, %c0_i32_0 : i32, i32
  }
  func.func @transform_5(%arg0: i32, %arg1: i32) -> (i32, i32) {
    %c0_i32 = arith.constant 0 : i32
    %c0_i32_0 = arith.constant 0 : i32
    %c0_i32_1 = arith.constant 0 : i32
    return %c0_i32, %c0_i32_0 : i32, i32
  }
  func.func @transform_6(%arg0: i32, %arg1: i32) -> (i32, i32) {
    %c0_i32 = arith.constant 0 : i32
    %c0_i32_0 = arith.constant 0 : i32
    %c0_i32_1 = arith.constant 0 : i32
    return %c0_i32, %c0_i32_0 : i32, i32
  }
  func.func @transform_7(%arg0: i32, %arg1: i32) -> (i32, i32) {
    %c0_i32 = arith.constant 0 : i32
    %c0_i32_0 = arith.constant 0 : i32
    %c0_i32_1 = arith.constant 0 : i32
    return %c0_i32, %c0_i32_0 : i32, i32
  }
  func.func @transform_8(%arg0: i32, %arg1: i32) -> (i32, i32) {
    %c0_i32 = arith.constant 0 : i32
    %c0_i32_0 = arith.constant 0 : i32
    %c0_i32_1 = arith.constant 0 : i32
    return %c0_i32, %c0_i32_0 : i32, i32
  }
  func.func @transform_9(%arg0: i32, %arg1: i32) -> (i32, i32, i32) {
    %c1_i32 = arith.constant 1 : i32
    %0 = arith.cmpi slt, %arg1, %c1_i32 : i32
    %c1_i32_0 = arith.constant 1 : i32
    %1 = arith.subi %arg1, %c1_i32_0 : i32
    %c0_i32 = arith.constant 0 : i32
    %2 = arith.select %0, %c0_i32, %1 : i32
    %c0_i32_1 = arith.constant 0 : i32
    %c0_i32_2 = arith.constant 0 : i32
    return %arg0, %2, %c0_i32_1 : i32, i32, i32
  }
}

module attributes {stable_mosaic.version = 11 : i64} {
  func.func @_fused_kernel(%arg0: i32, %arg1: i32, %arg2: memref<1x8x32xf32, #tpu.memory_space<vmem>>, %arg3: memref<4x32xf32, #tpu.memory_space<vmem>>, %arg4: memref<4x32xbf16, #tpu.memory_space<vmem>>, %arg5: memref<32x64xbf16, #tpu.memory_space<vmem>>, %arg6: memref<32x32xbf16, #tpu.memory_space<vmem>>, %arg7: memref<32x32xbf16, #tpu.memory_space<vmem>>, %arg8: memref<32x64xbf16, #tpu.memory_space<vmem>>, %arg9: memref<32x32xbf16, #tpu.memory_space<vmem>>, %arg10: memref<8x64xf32, #tpu.memory_space<vmem>>, %arg11: memref<1x8x32xf32, #tpu.memory_space<vmem>>, %arg12: memref<4x4x1xf32, #tpu.memory_space<vmem>>, %arg13: memref<4x4x1xf32, #tpu.memory_space<vmem>>, %arg14: memref<4x32xf32, #tpu.memory_space<vmem>>, %arg15: memref<4x64xbf16, #tpu.memory_space<vmem>>, %arg16: memref<8x32xf32, #tpu.memory_space<vmem>>) attributes {dimension_semantics = [#tpu.dimension_semantics<parallel>, #tpu.dimension_semantics<arbitrary>], iteration_bounds = array<i64: 2, 2>, scalar_prefetch = 0 : i64, scratch_operands = 5 : i64, tpu.core_type = #tpu.core_type<tc>, window_params = [{transform_indices = @transform_0, window_bounds = array<i64: 1, 8, 32>}, {pipeline_mode = #tpu.pipeline_mode<synchronous>, transform_indices = @transform_1, window_bounds = array<i64: 4, 32>}, {pipeline_mode = #tpu.pipeline_mode<synchronous>, transform_indices = @transform_2, window_bounds = array<i64: 4, 32>}, {pipeline_mode = #tpu.pipeline_mode<synchronous>, transform_indices = @transform_3, window_bounds = array<i64: 32, 64>}, {pipeline_mode = #tpu.pipeline_mode<synchronous>, transform_indices = @transform_4, window_bounds = array<i64: 32, 32>}, {pipeline_mode = #tpu.pipeline_mode<synchronous>, transform_indices = @transform_5, window_bounds = array<i64: 32, 32>}, {pipeline_mode = #tpu.pipeline_mode<synchronous>, transform_indices = @transform_6, window_bounds = array<i64: 32, 64>}, {pipeline_mode = #tpu.pipeline_mode<synchronous>, transform_indices = @transform_7, window_bounds = array<i64: 32, 32>}, {pipeline_mode = #tpu.pipeline_mode<synchronous>, transform_indices = @transform_8, window_bounds = array<i64: 8, 64>}, {transform_indices = @transform_9, window_bounds = array<i64: 1, 8, 32>}]} {
    %c0 = arith.constant 0 : index
    %c0_0 = arith.constant 0 : index
    %0 = vector.load %arg10[%c0, %c0_0] : memref<8x64xf32, #tpu.memory_space<vmem>>, vector<8x64xf32>
    %1 = vector.extract_strided_slice %0 {offsets = [0, 0], sizes = [1, 64], strides = [1, 1]} : vector<8x64xf32> to vector<1x64xf32>
    %2 = vector.extract_strided_slice %0 {offsets = [1, 0], sizes = [1, 64], strides = [1, 1]} : vector<8x64xf32> to vector<1x64xf32>
    %3 = vector.extract_strided_slice %0 {offsets = [2, 0], sizes = [1, 32], strides = [1, 1]} : vector<8x64xf32> to vector<1x32xf32>
    %4 = vector.extract_strided_slice %0 {offsets = [3, 0], sizes = [1, 32], strides = [1, 1]} : vector<8x64xf32> to vector<1x32xf32>
    %5 = vector.extract_strided_slice %0 {offsets = [4, 0], sizes = [1, 32], strides = [1, 1]} : vector<8x64xf32> to vector<1x32xf32>
    %6 = vector.extract_strided_slice %0 {offsets = [5, 0], sizes = [1, 32], strides = [1, 1]} : vector<8x64xf32> to vector<1x32xf32>
    %7 = vector.extract_strided_slice %0 {offsets = [6, 0], sizes = [1, 32], strides = [1, 1]} : vector<8x64xf32> to vector<1x32xf32>
    %c0_i32 = arith.constant 0 : i32
    %8 = arith.cmpi eq, %arg1, %c0_i32 : i32
    %9 = arith.extui %8 : i1 to i32
    %c0_i32_1 = arith.constant 0 : i32
    %10 = arith.cmpi ne, %9, %c0_i32_1 : i32
    scf.if %10 {
      %cst = arith.constant 0xFF800000 : f32
      %20 = vector.broadcast %cst : f32 to vector<4x4x1xf32>
      %c0_7 = arith.constant 0 : index
      %c0_8 = arith.constant 0 : index
      %c0_9 = arith.constant 0 : index
      %21 = vector.load %arg12[%c0_7, %c0_8, %c0_9] : memref<4x4x1xf32, #tpu.memory_space<vmem>>, vector<4x4x1xf32>
      tpu.vector_store %arg12[%c0_7, %c0_8, %c0_9], %20 {strides = array<i32>} : memref<4x4x1xf32, #tpu.memory_space<vmem>>, vector<4x4x1xf32>,
      %cst_10 = arith.constant 0.000000e+00 : f32
      %22 = vector.broadcast %cst_10 : f32 to vector<4x4x1xf32>
      %c0_11 = arith.constant 0 : index
      %c0_12 = arith.constant 0 : index
      %c0_13 = arith.constant 0 : index
      %23 = vector.load %arg13[%c0_11, %c0_12, %c0_13] : memref<4x4x1xf32, #tpu.memory_space<vmem>>, vector<4x4x1xf32>
      tpu.vector_store %arg13[%c0_11, %c0_12, %c0_13], %22 {strides = array<i32>} : memref<4x4x1xf32, #tpu.memory_space<vmem>>, vector<4x4x1xf32>,
      %cst_14 = arith.constant 0.000000e+00 : f32
      %24 = vector.broadcast %cst_14 : f32 to vector<4x32xf32>
      %c0_15 = arith.constant 0 : index
      %c0_16 = arith.constant 0 : index
      %25 = vector.load %arg14[%c0_15, %c0_16] : memref<4x32xf32, #tpu.memory_space<vmem>>, vector<4x32xf32>
      tpu.vector_store %arg14[%c0_15, %c0_16], %24 {strides = array<i32>} : memref<4x32xf32, #tpu.memory_space<vmem>>, vector<4x32xf32>,
    } else {
    }
    %c1_i32 = arith.constant 1 : i32
    %11 = arith.cmpi slt, %arg1, %c1_i32 : i32
    %12 = arith.extui %11 : i1 to i32
    %c0_i32_2 = arith.constant 0 : i32
    %13 = arith.cmpi ne, %12, %c0_i32_2 : i32
    scf.if %13 {
      %c0_7 = arith.constant 0 : index
      %c0_8 = arith.constant 0 : index
      %c0_9 = arith.constant 0 : index
      %20 = vector.load %arg2[%c0_7, %c0_8, %c0_9] : memref<1x8x32xf32, #tpu.memory_space<vmem>>, vector<1x8x32xf32>
      %21 = vector.shape_cast %20 : vector<1x8x32xf32> to vector<8x32xf32>
      %22 = arith.truncf %21 : vector<8x32xf32> to vector<8x32xbf16>
      %c0_10 = arith.constant 0 : index
      %c0_11 = arith.constant 0 : index
      %23 = vector.load %arg5[%c0_10, %c0_11] : memref<32x64xbf16, #tpu.memory_space<vmem>>, vector<32x64xbf16>
      %cst = arith.constant dense<0.000000e+00> : vector<8x64xf32>
      %24 = tpu.matmul %22, %23, %cst {dimension_numbers = #tpu.dot_dimension_numbers<[1], [0], [0], [1], [0, 0, 1, 1], [], []>} : vector<8x32xbf16>, vector<32x64xbf16>, vector<8x64xf32> -> vector<8x64xf32>
      %25 = vector.broadcast %1 : vector<1x64xf32> to vector<8x64xf32>
      %26 = arith.addf %24, %25 : vector<8x64xf32>
      %27 = vector.extract_strided_slice %26 {offsets = [0, 0], sizes = [8, 32], strides = [1, 1]} : vector<8x64xf32> to vector<8x32xf32>
      %28 = arith.truncf %27 : vector<8x32xf32> to vector<8x32xbf16>
      %29 = vector.extract_strided_slice %26 {offsets = [0, 32], sizes = [8, 32], strides = [1, 1]} : vector<8x64xf32> to vector<8x32xf32>
      %30 = arith.truncf %29 : vector<8x32xf32> to vector<8x32xbf16>
      %c0_12 = arith.constant 0 : index
      %c0_13 = arith.constant 0 : index
      %31 = vector.load %arg4[%c0_12, %c0_13] : memref<4x32xbf16, #tpu.memory_space<vmem>>, vector<4x32xbf16>
      %32 = vector.extract_strided_slice %31 {offsets = [0, 0], sizes = [4, 8], strides = [1, 1]} : vector<4x32xbf16> to vector<4x8xbf16>
      %33 = vector.extract_strided_slice %28 {offsets = [0, 0], sizes = [8, 8], strides = [1, 1]} : vector<8x32xbf16> to vector<8x8xbf16>
      %cst_14 = arith.constant dense<0.000000e+00> : vector<4x8xf32>
      %34 = tpu.matmul %32, %33, %cst_14 {dimension_numbers = #tpu.dot_dimension_numbers<[1], [1], [0], [0], [0, 0, 1, 0], [], []>} : vector<4x8xbf16>, vector<8x8xbf16>, vector<4x8xf32> -> vector<4x8xf32>
      %cst_15 = arith.constant 0.353553385 : f32
      %35 = vector.broadcast %cst_15 : f32 to vector<4x8xf32>
      %36 = arith.mulf %34, %35 : vector<4x8xf32>
      %c0_16 = arith.constant 0 : index
      %c0_17 = arith.constant 0 : index
      %c0_18 = arith.constant 0 : index
      %37 = vector.load %arg12[%c0_16, %c0_17, %c0_18] : memref<4x4x1xf32, #tpu.memory_space<vmem>>, vector<1x4x1xf32>
      %38 = vector.shape_cast %37 : vector<1x4x1xf32> to vector<4x1xf32>
      %cst_19 = arith.constant dense<0xFF800000> : vector<4xf32>
      %39 = vector.multi_reduction <maximumf>, %36, %cst_19 [1] : vector<4x8xf32> to vector<4xf32>
      %40 = vector.shape_cast %39 : vector<4xf32> to vector<4x1xf32>
      %41 = arith.maximumf %38, %40 : vector<4x1xf32>
      %42 = arith.subf %38, %41 : vector<4x1xf32>
      %43 = math.exp %42 : vector<4x1xf32>
      %44 = vector.broadcast %41 : vector<4x1xf32> to vector<4x8xf32>
      %45 = arith.subf %36, %44 : vector<4x8xf32>
      %46 = math.exp %45 : vector<4x8xf32>
      %c0_20 = arith.constant 0 : index
      %c0_21 = arith.constant 0 : index
      %c0_22 = arith.constant 0 : index
      %47 = vector.load %arg13[%c0_20, %c0_21, %c0_22] : memref<4x4x1xf32, #tpu.memory_space<vmem>>, vector<1x4x1xf32>
      %48 = vector.shape_cast %47 : vector<1x4x1xf32> to vector<4x1xf32>
      %49 = arith.mulf %43, %48 : vector<4x1xf32>
      %cst_23 = arith.constant dense<0.000000e+00> : vector<4xf32>
      %50 = vector.multi_reduction <add>, %46, %cst_23 [1] : vector<4x8xf32> to vector<4xf32>
      %51 = vector.shape_cast %50 : vector<4xf32> to vector<4x1xf32>
      %52 = arith.addf %49, %51 : vector<4x1xf32>
      %c0_24 = arith.constant 0 : index
      %c0_25 = arith.constant 0 : index
      %c0_26 = arith.constant 0 : index
      %53 = vector.load %arg13[%c0_24, %c0_25, %c0_26] : memref<4x4x1xf32, #tpu.memory_space<vmem>>, vector<1x4x1xf32>
      %54 = vector.shape_cast %53 : vector<1x4x1xf32> to vector<4x1xf32>
      %55 = vector.shape_cast %52 : vector<4x1xf32> to vector<1x4x1xf32>
      tpu.vector_store %arg13[%c0_24, %c0_25, %c0_26], %55 {strides = array<i32>} : memref<4x4x1xf32, #tpu.memory_space<vmem>>, vector<1x4x1xf32>,
      %c0_27 = arith.constant 0 : index
      %c0_28 = arith.constant 0 : index
      %56 = vector.load %arg14[%c0_27, %c0_28] : memref<4x32xf32, #tpu.memory_space<vmem>>, vector<4x8xf32>
      %57 = vector.broadcast %43 : vector<4x1xf32> to vector<4x8xf32>
      %58 = arith.mulf %57, %56 : vector<4x8xf32>
      %59 = arith.truncf %46 : vector<4x8xf32> to vector<4x8xbf16>
      %60 = vector.extract_strided_slice %30 {offsets = [0, 0], sizes = [8, 8], strides = [1, 1]} : vector<8x32xbf16> to vector<8x8xbf16>
      %cst_29 = arith.constant dense<0.000000e+00> : vector<4x8xf32>
      %61 = tpu.matmul %59, %60, %cst_29 {dimension_numbers = #tpu.dot_dimension_numbers<[1], [0], [0], [1], [0, 0, 1, 1], [], []>} : vector<4x8xbf16>, vector<8x8xbf16>, vector<4x8xf32> -> vector<4x8xf32>
      %62 = arith.addf %58, %61 : vector<4x8xf32>
      %c0_30 = arith.constant 0 : index
      %c0_31 = arith.constant 0 : index
      %63 = vector.load %arg14[%c0_30, %c0_31] : memref<4x32xf32, #tpu.memory_space<vmem>>, vector<4x8xf32>
      tpu.vector_store %arg14[%c0_30, %c0_31], %62 {strides = array<i32>} : memref<4x32xf32, #tpu.memory_space<vmem>>, vector<4x8xf32>,
      %c0_32 = arith.constant 0 : index
      %c0_33 = arith.constant 0 : index
      %c0_34 = arith.constant 0 : index
      %64 = vector.load %arg12[%c0_32, %c0_33, %c0_34] : memref<4x4x1xf32, #tpu.memory_space<vmem>>, vector<1x4x1xf32>
      %65 = vector.shape_cast %64 : vector<1x4x1xf32> to vector<4x1xf32>
      %66 = vector.shape_cast %41 : vector<4x1xf32> to vector<1x4x1xf32>
      tpu.vector_store %arg12[%c0_32, %c0_33, %c0_34], %66 {strides = array<i32>} : memref<4x4x1xf32, #tpu.memory_space<vmem>>, vector<1x4x1xf32>,
      %67 = vector.extract_strided_slice %31 {offsets = [0, 8], sizes = [4, 8], strides = [1, 1]} : vector<4x32xbf16> to vector<4x8xbf16>
      %68 = vector.extract_strided_slice %28 {offsets = [0, 8], sizes = [8, 8], strides = [1, 1]} : vector<8x32xbf16> to vector<8x8xbf16>
      %cst_35 = arith.constant dense<0.000000e+00> : vector<4x8xf32>
      %69 = tpu.matmul %67, %68, %cst_35 {dimension_numbers = #tpu.dot_dimension_numbers<[1], [1], [0], [0], [0, 0, 1, 0], [], []>} : vector<4x8xbf16>, vector<8x8xbf16>, vector<4x8xf32> -> vector<4x8xf32>
      %cst_36 = arith.constant 0.353553385 : f32
      %70 = vector.broadcast %cst_36 : f32 to vector<4x8xf32>
      %71 = arith.mulf %69, %70 : vector<4x8xf32>
      %c1 = arith.constant 1 : index
      %c0_37 = arith.constant 0 : index
      %c0_38 = arith.constant 0 : index
      %72 = vector.load %arg12[%c1, %c0_37, %c0_38] : memref<4x4x1xf32, #tpu.memory_space<vmem>>, vector<1x4x1xf32>
      %73 = vector.shape_cast %72 : vector<1x4x1xf32> to vector<4x1xf32>
      %cst_39 = arith.constant dense<0xFF800000> : vector<4xf32>
      %74 = vector.multi_reduction <maximumf>, %71, %cst_39 [1] : vector<4x8xf32> to vector<4xf32>
      %75 = vector.shape_cast %74 : vector<4xf32> to vector<4x1xf32>
      %76 = arith.maximumf %73, %75 : vector<4x1xf32>
      %77 = arith.subf %73, %76 : vector<4x1xf32>
      %78 = math.exp %77 : vector<4x1xf32>
      %79 = vector.broadcast %76 : vector<4x1xf32> to vector<4x8xf32>
      %80 = arith.subf %71, %79 : vector<4x8xf32>
      %81 = math.exp %80 : vector<4x8xf32>
      %c1_40 = arith.constant 1 : index
      %c0_41 = arith.constant 0 : index
      %c0_42 = arith.constant 0 : index
      %82 = vector.load %arg13[%c1_40, %c0_41, %c0_42] : memref<4x4x1xf32, #tpu.memory_space<vmem>>, vector<1x4x1xf32>
      %83 = vector.shape_cast %82 : vector<1x4x1xf32> to vector<4x1xf32>
      %84 = arith.mulf %78, %83 : vector<4x1xf32>
      %cst_43 = arith.constant dense<0.000000e+00> : vector<4xf32>
      %85 = vector.multi_reduction <add>, %81, %cst_43 [1] : vector<4x8xf32> to vector<4xf32>
      %86 = vector.shape_cast %85 : vector<4xf32> to vector<4x1xf32>
      %87 = arith.addf %84, %86 : vector<4x1xf32>
      %c1_44 = arith.constant 1 : index
      %c0_45 = arith.constant 0 : index
      %c0_46 = arith.constant 0 : index
      %88 = vector.load %arg13[%c1_44, %c0_45, %c0_46] : memref<4x4x1xf32, #tpu.memory_space<vmem>>, vector<1x4x1xf32>
      %89 = vector.shape_cast %88 : vector<1x4x1xf32> to vector<4x1xf32>
      %90 = vector.shape_cast %87 : vector<4x1xf32> to vector<1x4x1xf32>
      tpu.vector_store %arg13[%c1_44, %c0_45, %c0_46], %90 {strides = array<i32>} : memref<4x4x1xf32, #tpu.memory_space<vmem>>, vector<1x4x1xf32>,
      %c0_47 = arith.constant 0 : index
      %c8 = arith.constant 8 : index
      %91 = vector.load %arg14[%c0_47, %c8] : memref<4x32xf32, #tpu.memory_space<vmem>>, vector<4x8xf32>
      %92 = vector.broadcast %78 : vector<4x1xf32> to vector<4x8xf32>
      %93 = arith.mulf %92, %91 : vector<4x8xf32>
      %94 = arith.truncf %81 : vector<4x8xf32> to vector<4x8xbf16>
      %95 = vector.extract_strided_slice %30 {offsets = [0, 8], sizes = [8, 8], strides = [1, 1]} : vector<8x32xbf16> to vector<8x8xbf16>
      %cst_48 = arith.constant dense<0.000000e+00> : vector<4x8xf32>
      %96 = tpu.matmul %94, %95, %cst_48 {dimension_numbers = #tpu.dot_dimension_numbers<[1], [0], [0], [1], [0, 0, 1, 1], [], []>} : vector<4x8xbf16>, vector<8x8xbf16>, vector<4x8xf32> -> vector<4x8xf32>
      %97 = arith.addf %93, %96 : vector<4x8xf32>
      %c0_49 = arith.constant 0 : index
      %c8_50 = arith.constant 8 : index
      %98 = vector.load %arg14[%c0_49, %c8_50] : memref<4x32xf32, #tpu.memory_space<vmem>>, vector<4x8xf32>
      tpu.vector_store %arg14[%c0_49, %c8_50], %97 {strides = array<i32>} : memref<4x32xf32, #tpu.memory_space<vmem>>, vector<4x8xf32>,
      %c1_51 = arith.constant 1 : index
      %c0_52 = arith.constant 0 : index
      %c0_53 = arith.constant 0 : index
      %99 = vector.load %arg12[%c1_51, %c0_52, %c0_53] : memref<4x4x1xf32, #tpu.memory_space<vmem>>, vector<1x4x1xf32>
      %100 = vector.shape_cast %99 : vector<1x4x1xf32> to vector<4x1xf32>
      %101 = vector.shape_cast %76 : vector<4x1xf32> to vector<1x4x1xf32>
      tpu.vector_store %arg12[%c1_51, %c0_52, %c0_53], %101 {strides = array<i32>} : memref<4x4x1xf32, #tpu.memory_space<vmem>>, vector<1x4x1xf32>,
      %102 = vector.extract_strided_slice %31 {offsets = [0, 16], sizes = [4, 8], strides = [1, 1]} : vector<4x32xbf16> to vector<4x8xbf16>
      %103 = vector.extract_strided_slice %28 {offsets = [0, 16], sizes = [8, 8], strides = [1, 1]} : vector<8x32xbf16> to vector<8x8xbf16>
      %cst_54 = arith.constant dense<0.000000e+00> : vector<4x8xf32>
      %104 = tpu.matmul %102, %103, %cst_54 {dimension_numbers = #tpu.dot_dimension_numbers<[1], [1], [0], [0], [0, 0, 1, 0], [], []>} : vector<4x8xbf16>, vector<8x8xbf16>, vector<4x8xf32> -> vector<4x8xf32>
      %cst_55 = arith.constant 0.353553385 : f32
      %105 = vector.broadcast %cst_55 : f32 to vector<4x8xf32>
      %106 = arith.mulf %104, %105 : vector<4x8xf32>
      %c2 = arith.constant 2 : index
      %c0_56 = arith.constant 0 : index
      %c0_57 = arith.constant 0 : index
      %107 = vector.load %arg12[%c2, %c0_56, %c0_57] : memref<4x4x1xf32, #tpu.memory_space<vmem>>, vector<1x4x1xf32>
      %108 = vector.shape_cast %107 : vector<1x4x1xf32> to vector<4x1xf32>
      %cst_58 = arith.constant dense<0xFF800000> : vector<4xf32>
      %109 = vector.multi_reduction <maximumf>, %106, %cst_58 [1] : vector<4x8xf32> to vector<4xf32>
      %110 = vector.shape_cast %109 : vector<4xf32> to vector<4x1xf32>
      %111 = arith.maximumf %108, %110 : vector<4x1xf32>
      %112 = arith.subf %108, %111 : vector<4x1xf32>
      %113 = math.exp %112 : vector<4x1xf32>
      %114 = vector.broadcast %111 : vector<4x1xf32> to vector<4x8xf32>
      %115 = arith.subf %106, %114 : vector<4x8xf32>
      %116 = math.exp %115 : vector<4x8xf32>
      %c2_59 = arith.constant 2 : index
      %c0_60 = arith.constant 0 : index
      %c0_61 = arith.constant 0 : index
      %117 = vector.load %arg13[%c2_59, %c0_60, %c0_61] : memref<4x4x1xf32, #tpu.memory_space<vmem>>, vector<1x4x1xf32>
      %118 = vector.shape_cast %117 : vector<1x4x1xf32> to vector<4x1xf32>
      %119 = arith.mulf %113, %118 : vector<4x1xf32>
      %cst_62 = arith.constant dense<0.000000e+00> : vector<4xf32>
      %120 = vector.multi_reduction <add>, %116, %cst_62 [1] : vector<4x8xf32> to vector<4xf32>
      %121 = vector.shape_cast %120 : vector<4xf32> to vector<4x1xf32>
      %122 = arith.addf %119, %121 : vector<4x1xf32>
      %c2_63 = arith.constant 2 : index
      %c0_64 = arith.constant 0 : index
      %c0_65 = arith.constant 0 : index
      %123 = vector.load %arg13[%c2_63, %c0_64, %c0_65] : memref<4x4x1xf32, #tpu.memory_space<vmem>>, vector<1x4x1xf32>
      %124 = vector.shape_cast %123 : vector<1x4x1xf32> to vector<4x1xf32>
      %125 = vector.shape_cast %122 : vector<4x1xf32> to vector<1x4x1xf32>
      tpu.vector_store %arg13[%c2_63, %c0_64, %c0_65], %125 {strides = array<i32>} : memref<4x4x1xf32, #tpu.memory_space<vmem>>, vector<1x4x1xf32>,
      %c0_66 = arith.constant 0 : index
      %c16 = arith.constant 16 : index
      %126 = vector.load %arg14[%c0_66, %c16] : memref<4x32xf32, #tpu.memory_space<vmem>>, vector<4x8xf32>
      %127 = vector.broadcast %113 : vector<4x1xf32> to vector<4x8xf32>
      %128 = arith.mulf %127, %126 : vector<4x8xf32>
      %129 = arith.truncf %116 : vector<4x8xf32> to vector<4x8xbf16>
      %130 = vector.extract_strided_slice %30 {offsets = [0, 16], sizes = [8, 8], strides = [1, 1]} : vector<8x32xbf16> to vector<8x8xbf16>
      %cst_67 = arith.constant dense<0.000000e+00> : vector<4x8xf32>
      %131 = tpu.matmul %129, %130, %cst_67 {dimension_numbers = #tpu.dot_dimension_numbers<[1], [0], [0], [1], [0, 0, 1, 1], [], []>} : vector<4x8xbf16>, vector<8x8xbf16>, vector<4x8xf32> -> vector<4x8xf32>
      %132 = arith.addf %128, %131 : vector<4x8xf32>
      %c0_68 = arith.constant 0 : index
      %c16_69 = arith.constant 16 : index
      %133 = vector.load %arg14[%c0_68, %c16_69] : memref<4x32xf32, #tpu.memory_space<vmem>>, vector<4x8xf32>
      tpu.vector_store %arg14[%c0_68, %c16_69], %132 {strides = array<i32>} : memref<4x32xf32, #tpu.memory_space<vmem>>, vector<4x8xf32>,
      %c2_70 = arith.constant 2 : index
      %c0_71 = arith.constant 0 : index
      %c0_72 = arith.constant 0 : index
      %134 = vector.load %arg12[%c2_70, %c0_71, %c0_72] : memref<4x4x1xf32, #tpu.memory_space<vmem>>, vector<1x4x1xf32>
      %135 = vector.shape_cast %134 : vector<1x4x1xf32> to vector<4x1xf32>
      %136 = vector.shape_cast %111 : vector<4x1xf32> to vector<1x4x1xf32>
      tpu.vector_store %arg12[%c2_70, %c0_71, %c0_72], %136 {strides = array<i32>} : memref<4x4x1xf32, #tpu.memory_space<vmem>>, vector<1x4x1xf32>,
      %137 = vector.extract_strided_slice %31 {offsets = [0, 24], sizes = [4, 8], strides = [1, 1]} : vector<4x32xbf16> to vector<4x8xbf16>
      %138 = vector.extract_strided_slice %28 {offsets = [0, 24], sizes = [8, 8], strides = [1, 1]} : vector<8x32xbf16> to vector<8x8xbf16>
      %cst_73 = arith.constant dense<0.000000e+00> : vector<4x8xf32>
      %139 = tpu.matmul %137, %138, %cst_73 {dimension_numbers = #tpu.dot_dimension_numbers<[1], [1], [0], [0], [0, 0, 1, 0], [], []>} : vector<4x8xbf16>, vector<8x8xbf16>, vector<4x8xf32> -> vector<4x8xf32>
      %cst_74 = arith.constant 0.353553385 : f32
      %140 = vector.broadcast %cst_74 : f32 to vector<4x8xf32>
      %141 = arith.mulf %139, %140 : vector<4x8xf32>
      %c3 = arith.constant 3 : index
      %c0_75 = arith.constant 0 : index
      %c0_76 = arith.constant 0 : index
      %142 = vector.load %arg12[%c3, %c0_75, %c0_76] : memref<4x4x1xf32, #tpu.memory_space<vmem>>, vector<1x4x1xf32>
      %143 = vector.shape_cast %142 : vector<1x4x1xf32> to vector<4x1xf32>
      %cst_77 = arith.constant dense<0xFF800000> : vector<4xf32>
      %144 = vector.multi_reduction <maximumf>, %141, %cst_77 [1] : vector<4x8xf32> to vector<4xf32>
      %145 = vector.shape_cast %144 : vector<4xf32> to vector<4x1xf32>
      %146 = arith.maximumf %143, %145 : vector<4x1xf32>
      %147 = arith.subf %143, %146 : vector<4x1xf32>
      %148 = math.exp %147 : vector<4x1xf32>
      %149 = vector.broadcast %146 : vector<4x1xf32> to vector<4x8xf32>
      %150 = arith.subf %141, %149 : vector<4x8xf32>
      %151 = math.exp %150 : vector<4x8xf32>
      %c3_78 = arith.constant 3 : index
      %c0_79 = arith.constant 0 : index
      %c0_80 = arith.constant 0 : index
      %152 = vector.load %arg13[%c3_78, %c0_79, %c0_80] : memref<4x4x1xf32, #tpu.memory_space<vmem>>, vector<1x4x1xf32>
      %153 = vector.shape_cast %152 : vector<1x4x1xf32> to vector<4x1xf32>
      %154 = arith.mulf %148, %153 : vector<4x1xf32>
      %cst_81 = arith.constant dense<0.000000e+00> : vector<4xf32>
      %155 = vector.multi_reduction <add>, %151, %cst_81 [1] : vector<4x8xf32> to vector<4xf32>
      %156 = vector.shape_cast %155 : vector<4xf32> to vector<4x1xf32>
      %157 = arith.addf %154, %156 : vector<4x1xf32>
      %c3_82 = arith.constant 3 : index
      %c0_83 = arith.constant 0 : index
      %c0_84 = arith.constant 0 : index
      %158 = vector.load %arg13[%c3_82, %c0_83, %c0_84] : memref<4x4x1xf32, #tpu.memory_space<vmem>>, vector<1x4x1xf32>
      %159 = vector.shape_cast %158 : vector<1x4x1xf32> to vector<4x1xf32>
      %160 = vector.shape_cast %157 : vector<4x1xf32> to vector<1x4x1xf32>
      tpu.vector_store %arg13[%c3_82, %c0_83, %c0_84], %160 {strides = array<i32>} : memref<4x4x1xf32, #tpu.memory_space<vmem>>, vector<1x4x1xf32>,
      %c0_85 = arith.constant 0 : index
      %c24 = arith.constant 24 : index
      %161 = vector.load %arg14[%c0_85, %c24] : memref<4x32xf32, #tpu.memory_space<vmem>>, vector<4x8xf32>
      %162 = vector.broadcast %148 : vector<4x1xf32> to vector<4x8xf32>
      %163 = arith.mulf %162, %161 : vector<4x8xf32>
      %164 = arith.truncf %151 : vector<4x8xf32> to vector<4x8xbf16>
      %165 = vector.extract_strided_slice %30 {offsets = [0, 24], sizes = [8, 8], strides = [1, 1]} : vector<8x32xbf16> to vector<8x8xbf16>
      %cst_86 = arith.constant dense<0.000000e+00> : vector<4x8xf32>
      %166 = tpu.matmul %164, %165, %cst_86 {dimension_numbers = #tpu.dot_dimension_numbers<[1], [0], [0], [1], [0, 0, 1, 1], [], []>} : vector<4x8xbf16>, vector<8x8xbf16>, vector<4x8xf32> -> vector<4x8xf32>
      %167 = arith.addf %163, %166 : vector<4x8xf32>
      %c0_87 = arith.constant 0 : index
      %c24_88 = arith.constant 24 : index
      %168 = vector.load %arg14[%c0_87, %c24_88] : memref<4x32xf32, #tpu.memory_space<vmem>>, vector<4x8xf32>
      tpu.vector_store %arg14[%c0_87, %c24_88], %167 {strides = array<i32>} : memref<4x32xf32, #tpu.memory_space<vmem>>, vector<4x8xf32>,
      %c3_89 = arith.constant 3 : index
      %c0_90 = arith.constant 0 : index
      %c0_91 = arith.constant 0 : index
      %169 = vector.load %arg12[%c3_89, %c0_90, %c0_91] : memref<4x4x1xf32, #tpu.memory_space<vmem>>, vector<1x4x1xf32>
      %170 = vector.shape_cast %169 : vector<1x4x1xf32> to vector<4x1xf32>
      %171 = vector.shape_cast %146 : vector<4x1xf32> to vector<1x4x1xf32>
      tpu.vector_store %arg12[%c3_89, %c0_90, %c0_91], %171 {strides = array<i32>} : memref<4x4x1xf32, #tpu.memory_space<vmem>>, vector<1x4x1xf32>,
    } else {
    }
    %c0_i32_3 = arith.constant 0 : i32
    %14 = arith.cmpi eq, %arg1, %c0_i32_3 : i32
    %15 = arith.extui %14 : i1 to i32
    %c0_i32_4 = arith.constant 0 : i32
    %16 = arith.cmpi ne, %15, %c0_i32_4 : i32
    scf.if %16 {
      %c0_7 = arith.constant 0 : index
      %c0_8 = arith.constant 0 : index
      %c0_9 = arith.constant 0 : index
      %20 = vector.load %arg13[%c0_7, %c0_8, %c0_9] : memref<4x4x1xf32, #tpu.memory_space<vmem>>, vector<1x4x1xf32>
      %21 = vector.shape_cast %20 : vector<1x4x1xf32> to vector<4x1xf32>
      %22 = tpu.reciprocal %21 {approx = true} : vector<4x1xf32> -> vector<4x1xf32>
      %23 = arith.mulf %21, %22 : vector<4x1xf32>
      %cst = arith.constant 2.000000e+00 : f32
      %24 = vector.broadcast %cst : f32 to vector<4x1xf32>
      %25 = arith.subf %24, %23 : vector<4x1xf32>
      %26 = arith.mulf %22, %25 : vector<4x1xf32>
      %c0_10 = arith.constant 0 : index
      %c0_11 = arith.constant 0 : index
      %27 = vector.load %arg14[%c0_10, %c0_11] : memref<4x32xf32, #tpu.memory_space<vmem>>, vector<4x8xf32>
      %28 = vector.broadcast %26 : vector<4x1xf32> to vector<4x8xf32>
      %29 = arith.mulf %27, %28 : vector<4x8xf32>
      %c0_12 = arith.constant 0 : index
      %c0_13 = arith.constant 0 : index
      %30 = vector.load %arg14[%c0_12, %c0_13] : memref<4x32xf32, #tpu.memory_space<vmem>>, vector<4x8xf32>
      tpu.vector_store %arg14[%c0_12, %c0_13], %29 {strides = array<i32>} : memref<4x32xf32, #tpu.memory_space<vmem>>, vector<4x8xf32>,
      %c1 = arith.constant 1 : index
      %c0_14 = arith.constant 0 : index
      %c0_15 = arith.constant 0 : index
      %31 = vector.load %arg13[%c1, %c0_14, %c0_15] : memref<4x4x1xf32, #tpu.memory_space<vmem>>, vector<1x4x1xf32>
      %32 = vector.shape_cast %31 : vector<1x4x1xf32> to vector<4x1xf32>
      %33 = tpu.reciprocal %32 {approx = true} : vector<4x1xf32> -> vector<4x1xf32>
      %34 = arith.mulf %32, %33 : vector<4x1xf32>
      %cst_16 = arith.constant 2.000000e+00 : f32
      %35 = vector.broadcast %cst_16 : f32 to vector<4x1xf32>
      %36 = arith.subf %35, %34 : vector<4x1xf32>
      %37 = arith.mulf %33, %36 : vector<4x1xf32>
      %c0_17 = arith.constant 0 : index
      %c8 = arith.constant 8 : index
      %38 = vector.load %arg14[%c0_17, %c8] : memref<4x32xf32, #tpu.memory_space<vmem>>, vector<4x8xf32>
      %39 = vector.broadcast %37 : vector<4x1xf32> to vector<4x8xf32>
      %40 = arith.mulf %38, %39 : vector<4x8xf32>
      %c0_18 = arith.constant 0 : index
      %c8_19 = arith.constant 8 : index
      %41 = vector.load %arg14[%c0_18, %c8_19] : memref<4x32xf32, #tpu.memory_space<vmem>>, vector<4x8xf32>
      tpu.vector_store %arg14[%c0_18, %c8_19], %40 {strides = array<i32>} : memref<4x32xf32, #tpu.memory_space<vmem>>, vector<4x8xf32>,
      %c2 = arith.constant 2 : index
      %c0_20 = arith.constant 0 : index
      %c0_21 = arith.constant 0 : index
      %42 = vector.load %arg13[%c2, %c0_20, %c0_21] : memref<4x4x1xf32, #tpu.memory_space<vmem>>, vector<1x4x1xf32>
      %43 = vector.shape_cast %42 : vector<1x4x1xf32> to vector<4x1xf32>
      %44 = tpu.reciprocal %43 {approx = true} : vector<4x1xf32> -> vector<4x1xf32>
      %45 = arith.mulf %43, %44 : vector<4x1xf32>
      %cst_22 = arith.constant 2.000000e+00 : f32
      %46 = vector.broadcast %cst_22 : f32 to vector<4x1xf32>
      %47 = arith.subf %46, %45 : vector<4x1xf32>
      %48 = arith.mulf %44, %47 : vector<4x1xf32>
      %c0_23 = arith.constant 0 : index
      %c16 = arith.constant 16 : index
      %49 = vector.load %arg14[%c0_23, %c16] : memref<4x32xf32, #tpu.memory_space<vmem>>, vector<4x8xf32>
      %50 = vector.broadcast %48 : vector<4x1xf32> to vector<4x8xf32>
      %51 = arith.mulf %49, %50 : vector<4x8xf32>
      %c0_24 = arith.constant 0 : index
      %c16_25 = arith.constant 16 : index
      %52 = vector.load %arg14[%c0_24, %c16_25] : memref<4x32xf32, #tpu.memory_space<vmem>>, vector<4x8xf32>
      tpu.vector_store %arg14[%c0_24, %c16_25], %51 {strides = array<i32>} : memref<4x32xf32, #tpu.memory_space<vmem>>, vector<4x8xf32>,
      %c3 = arith.constant 3 : index
      %c0_26 = arith.constant 0 : index
      %c0_27 = arith.constant 0 : index
      %53 = vector.load %arg13[%c3, %c0_26, %c0_27] : memref<4x4x1xf32, #tpu.memory_space<vmem>>, vector<1x4x1xf32>
      %54 = vector.shape_cast %53 : vector<1x4x1xf32> to vector<4x1xf32>
      %55 = tpu.reciprocal %54 {approx = true} : vector<4x1xf32> -> vector<4x1xf32>
      %56 = arith.mulf %54, %55 : vector<4x1xf32>
      %cst_28 = arith.constant 2.000000e+00 : f32
      %57 = vector.broadcast %cst_28 : f32 to vector<4x1xf32>
      %58 = arith.subf %57, %56 : vector<4x1xf32>
      %59 = arith.mulf %55, %58 : vector<4x1xf32>
      %c0_29 = arith.constant 0 : index
      %c24 = arith.constant 24 : index
      %60 = vector.load %arg14[%c0_29, %c24] : memref<4x32xf32, #tpu.memory_space<vmem>>, vector<4x8xf32>
      %61 = vector.broadcast %59 : vector<4x1xf32> to vector<4x8xf32>
      %62 = arith.mulf %60, %61 : vector<4x8xf32>
      %c0_30 = arith.constant 0 : index
      %c24_31 = arith.constant 24 : index
      %63 = vector.load %arg14[%c0_30, %c24_31] : memref<4x32xf32, #tpu.memory_space<vmem>>, vector<4x8xf32>
      tpu.vector_store %arg14[%c0_30, %c24_31], %62 {strides = array<i32>} : memref<4x32xf32, #tpu.memory_space<vmem>>, vector<4x8xf32>,
      %c0_32 = arith.constant 0 : index
      %c0_33 = arith.constant 0 : index
      %64 = vector.load %arg14[%c0_32, %c0_33] : memref<4x32xf32, #tpu.memory_space<vmem>>, vector<4x32xf32>
      %65 = arith.truncf %64 : vector<4x32xf32> to vector<4x32xbf16>
      %c0_34 = arith.constant 0 : index
      %c0_35 = arith.constant 0 : index
      %66 = vector.load %arg7[%c0_34, %c0_35] : memref<32x32xbf16, #tpu.memory_space<vmem>>, vector<32x32xbf16>
      %cst_36 = arith.constant dense<0.000000e+00> : vector<4x32xf32>
      %67 = tpu.matmul %65, %66, %cst_36 {dimension_numbers = #tpu.dot_dimension_numbers<[1], [0], [0], [1], [0, 0, 1, 1], [], []>} : vector<4x32xbf16>, vector<32x32xbf16>, vector<4x32xf32> -> vector<4x32xf32>
      %68 = vector.broadcast %3 : vector<1x32xf32> to vector<4x32xf32>
      %69 = arith.addf %67, %68 : vector<4x32xf32>
      %c0_37 = arith.constant 0 : index
      %c0_38 = arith.constant 0 : index
      %70 = vector.load %arg3[%c0_37, %c0_38] : memref<4x32xf32, #tpu.memory_space<vmem>>, vector<4x32xf32>
      %71 = arith.addf %70, %69 : vector<4x32xf32>
      %cst_39 = arith.constant dense<0.000000e+00> : vector<4xf32>
      %72 = vector.multi_reduction <add>, %71, %cst_39 [1] : vector<4x32xf32> to vector<4xf32>
      %73 = vector.shape_cast %72 : vector<4xf32> to vector<4x1xf32>
      %cst_40 = arith.constant 3.200000e+01 : f32
      %74 = vector.broadcast %cst_40 : f32 to vector<4x1xf32>
      %75 = arith.divf %73, %74 : vector<4x1xf32>
      %76 = vector.broadcast %75 : vector<4x1xf32> to vector<4x32xf32>
      %77 = arith.subf %71, %76 : vector<4x32xf32>
      %78 = arith.mulf %77, %77 : vector<4x32xf32>
      %cst_41 = arith.constant dense<0.000000e+00> : vector<4xf32>
      %79 = vector.multi_reduction <add>, %78, %cst_41 [1] : vector<4x32xf32> to vector<4xf32>
      %80 = vector.shape_cast %79 : vector<4xf32> to vector<4x1xf32>
      %cst_42 = arith.constant 3.200000e+01 : f32
      %81 = vector.broadcast %cst_42 : f32 to vector<4x1xf32>
      %82 = arith.divf %80, %81 : vector<4x1xf32>
      %83 = vector.broadcast %75 : vector<4x1xf32> to vector<4x32xf32>
      %84 = arith.subf %71, %83 : vector<4x32xf32>
      %cst_43 = arith.constant 9.99999974E-6 : f32
      %85 = vector.broadcast %cst_43 : f32 to vector<4x1xf32>
      %86 = arith.addf %82, %85 : vector<4x1xf32>
      %87 = math.rsqrt %86 : vector<4x1xf32>
      %88 = vector.broadcast %87 : vector<4x1xf32> to vector<4x32xf32>
      %89 = arith.mulf %84, %88 : vector<4x32xf32>
      %90 = vector.broadcast %4 : vector<1x32xf32> to vector<4x32xf32>
      %91 = arith.mulf %89, %90 : vector<4x32xf32>
      %92 = vector.broadcast %5 : vector<1x32xf32> to vector<4x32xf32>
      %93 = arith.addf %91, %92 : vector<4x32xf32>
      %94 = arith.truncf %93 : vector<4x32xf32> to vector<4x32xbf16>
      %c0_44 = arith.constant 0 : index
      %c0_45 = arith.constant 0 : index
      %95 = vector.load %arg8[%c0_44, %c0_45] : memref<32x64xbf16, #tpu.memory_space<vmem>>, vector<32x64xbf16>
      %cst_46 = arith.constant dense<0.000000e+00> : vector<4x64xf32>
      %96 = tpu.matmul %94, %95, %cst_46 {dimension_numbers = #tpu.dot_dimension_numbers<[1], [0], [0], [1], [0, 0, 1, 1], [], []>} : vector<4x32xbf16>, vector<32x64xbf16>, vector<4x64xf32> -> vector<4x64xf32>
      %97 = vector.broadcast %2 : vector<1x64xf32> to vector<4x64xf32>
      %98 = arith.addf %96, %97 : vector<4x64xf32>
      %99 = arith.truncf %98 : vector<4x64xf32> to vector<4x64xbf16>
      %c0_47 = arith.constant 0 : index
      %c0_48 = arith.constant 0 : index
      %100 = vector.load %arg15[%c0_47, %c0_48] : memref<4x64xbf16, #tpu.memory_space<vmem>>, vector<4x64xbf16>
      tpu.vector_store %arg15[%c0_47, %c0_48], %99 {strides = array<i32>} : memref<4x64xbf16, #tpu.memory_space<vmem>>, vector<4x64xbf16>,
    } else {
    }
    %c1_i32_5 = arith.constant 1 : i32
    %17 = arith.cmpi sge, %arg1, %c1_i32_5 : i32
    %18 = arith.extui %17 : i1 to i32
    %c0_i32_6 = arith.constant 0 : i32
    %19 = arith.cmpi ne, %18, %c0_i32_6 : i32
    scf.if %19 {
      %c0_7 = arith.constant 0 : index
      %c0_8 = arith.constant 0 : index
      %c0_9 = arith.constant 0 : index
      %20 = vector.load %arg2[%c0_7, %c0_8, %c0_9] : memref<1x8x32xf32, #tpu.memory_space<vmem>>, vector<1x8x32xf32>
      %21 = vector.shape_cast %20 : vector<1x8x32xf32> to vector<8x32xf32>
      %22 = arith.truncf %21 : vector<8x32xf32> to vector<8x32xbf16>
      %c0_10 = arith.constant 0 : index
      %c0_11 = arith.constant 0 : index
      %23 = vector.load %arg6[%c0_10, %c0_11] : memref<32x32xbf16, #tpu.memory_space<vmem>>, vector<32x32xbf16>
      %cst = arith.constant dense<0.000000e+00> : vector<8x32xf32>
      %24 = tpu.matmul %22, %23, %cst {dimension_numbers = #tpu.dot_dimension_numbers<[1], [0], [0], [1], [0, 0, 1, 1], [], []>} : vector<8x32xbf16>, vector<32x32xbf16>, vector<8x32xf32> -> vector<8x32xf32>
      %25 = vector.broadcast %6 : vector<1x32xf32> to vector<8x32xf32>
      %26 = arith.addf %24, %25 : vector<8x32xf32>
      %27 = arith.truncf %26 : vector<8x32xf32> to vector<8x32xbf16>
      %c0_12 = arith.constant 0 : index
      %c0_13 = arith.constant 0 : index
      %28 = vector.load %arg15[%c0_12, %c0_13] : memref<4x64xbf16, #tpu.memory_space<vmem>>, vector<4x32xbf16>
      %c0_14 = arith.constant 0 : index
      %c32 = arith.constant 32 : index
      %29 = vector.load %arg15[%c0_14, %c32] : memref<4x64xbf16, #tpu.memory_space<vmem>>, vector<4x32xbf16>
      %30 = vector.extract_strided_slice %27 {offsets = [0, 0], sizes = [8, 8], strides = [1, 1]} : vector<8x32xbf16> to vector<8x8xbf16>
      %31 = vector.extract_strided_slice %28 {offsets = [0, 0], sizes = [4, 8], strides = [1, 1]} : vector<4x32xbf16> to vector<4x8xbf16>
      %cst_15 = arith.constant dense<0.000000e+00> : vector<8x4xf32>
      %32 = tpu.matmul %30, %31, %cst_15 {dimension_numbers = #tpu.dot_dimension_numbers<[1], [1], [0], [0], [0, 0, 1, 0], [], []>} : vector<8x8xbf16>, vector<4x8xbf16>, vector<8x4xf32> -> vector<8x4xf32>
      %cst_16 = arith.constant 0.353553385 : f32
      %33 = vector.broadcast %cst_16 : f32 to vector<8x4xf32>
      %34 = arith.mulf %32, %33 : vector<8x4xf32>
      %cst_17 = arith.constant dense<0xFF800000> : vector<8xf32>
      %35 = vector.multi_reduction <maximumf>, %34, %cst_17 [1] : vector<8x4xf32> to vector<8xf32>
      %36 = vector.shape_cast %35 : vector<8xf32> to vector<8x1xf32>
      %37 = vector.broadcast %36 : vector<8x1xf32> to vector<8x4xf32>
      %38 = arith.subf %34, %37 : vector<8x4xf32>
      %39 = math.exp %38 : vector<8x4xf32>
      %cst_18 = arith.constant dense<0.000000e+00> : vector<8xf32>
      %40 = vector.multi_reduction <add>, %39, %cst_18 [1] : vector<8x4xf32> to vector<8xf32>
      %41 = vector.shape_cast %40 : vector<8xf32> to vector<8x1xf32>
      %42 = tpu.reciprocal %41 {approx = true} : vector<8x1xf32> -> vector<8x1xf32>
      %43 = arith.mulf %41, %42 : vector<8x1xf32>
      %cst_19 = arith.constant 2.000000e+00 : f32
      %44 = vector.broadcast %cst_19 : f32 to vector<8x1xf32>
      %45 = arith.subf %44, %43 : vector<8x1xf32>
      %46 = arith.mulf %42, %45 : vector<8x1xf32>
      %47 = vector.broadcast %46 : vector<8x1xf32> to vector<8x4xf32>
      %48 = arith.mulf %39, %47 : vector<8x4xf32>
      %49 = arith.truncf %48 : vector<8x4xf32> to vector<8x4xbf16>
      %50 = vector.extract_strided_slice %29 {offsets = [0, 0], sizes = [4, 8], strides = [1, 1]} : vector<4x32xbf16> to vector<4x8xbf16>
      %cst_20 = arith.constant dense<0.000000e+00> : vector<8x8xf32>
      %51 = tpu.matmul %49, %50, %cst_20 {dimension_numbers = #tpu.dot_dimension_numbers<[1], [0], [0], [1], [0, 0, 1, 1], [], []>} : vector<8x4xbf16>, vector<4x8xbf16>, vector<8x8xf32> -> vector<8x8xf32>
      %c0_21 = arith.constant 0 : index
      %c0_22 = arith.constant 0 : index
      %52 = vector.load %arg16[%c0_21, %c0_22] : memref<8x32xf32, #tpu.memory_space<vmem>>, vector<8x8xf32>
      tpu.vector_store %arg16[%c0_21, %c0_22], %51 {strides = array<i32>} : memref<8x32xf32, #tpu.memory_space<vmem>>, vector<8x8xf32>,
      %53 = vector.extract_strided_slice %27 {offsets = [0, 8], sizes = [8, 8], strides = [1, 1]} : vector<8x32xbf16> to vector<8x8xbf16>
      %54 = vector.extract_strided_slice %28 {offsets = [0, 8], sizes = [4, 8], strides = [1, 1]} : vector<4x32xbf16> to vector<4x8xbf16>
      %cst_23 = arith.constant dense<0.000000e+00> : vector<8x4xf32>
      %55 = tpu.matmul %53, %54, %cst_23 {dimension_numbers = #tpu.dot_dimension_numbers<[1], [1], [0], [0], [0, 0, 1, 0], [], []>} : vector<8x8xbf16>, vector<4x8xbf16>, vector<8x4xf32> -> vector<8x4xf32>
      %cst_24 = arith.constant 0.353553385 : f32
      %56 = vector.broadcast %cst_24 : f32 to vector<8x4xf32>
      %57 = arith.mulf %55, %56 : vector<8x4xf32>
      %cst_25 = arith.constant dense<0xFF800000> : vector<8xf32>
      %58 = vector.multi_reduction <maximumf>, %57, %cst_25 [1] : vector<8x4xf32> to vector<8xf32>
      %59 = vector.shape_cast %58 : vector<8xf32> to vector<8x1xf32>
      %60 = vector.broadcast %59 : vector<8x1xf32> to vector<8x4xf32>
      %61 = arith.subf %57, %60 : vector<8x4xf32>
      %62 = math.exp %61 : vector<8x4xf32>
      %cst_26 = arith.constant dense<0.000000e+00> : vector<8xf32>
      %63 = vector.multi_reduction <add>, %62, %cst_26 [1] : vector<8x4xf32> to vector<8xf32>
      %64 = vector.shape_cast %63 : vector<8xf32> to vector<8x1xf32>
      %65 = tpu.reciprocal %64 {approx = true} : vector<8x1xf32> -> vector<8x1xf32>
      %66 = arith.mulf %64, %65 : vector<8x1xf32>
      %cst_27 = arith.constant 2.000000e+00 : f32
      %67 = vector.broadcast %cst_27 : f32 to vector<8x1xf32>
      %68 = arith.subf %67, %66 : vector<8x1xf32>
      %69 = arith.mulf %65, %68 : vector<8x1xf32>
      %70 = vector.broadcast %69 : vector<8x1xf32> to vector<8x4xf32>
      %71 = arith.mulf %62, %70 : vector<8x4xf32>
      %72 = arith.truncf %71 : vector<8x4xf32> to vector<8x4xbf16>
      %73 = vector.extract_strided_slice %29 {offsets = [0, 8], sizes = [4, 8], strides = [1, 1]} : vector<4x32xbf16> to vector<4x8xbf16>
      %cst_28 = arith.constant dense<0.000000e+00> : vector<8x8xf32>
      %74 = tpu.matmul %72, %73, %cst_28 {dimension_numbers = #tpu.dot_dimension_numbers<[1], [0], [0], [1], [0, 0, 1, 1], [], []>} : vector<8x4xbf16>, vector<4x8xbf16>, vector<8x8xf32> -> vector<8x8xf32>
      %c0_29 = arith.constant 0 : index
      %c8 = arith.constant 8 : index
      %75 = vector.load %arg16[%c0_29, %c8] : memref<8x32xf32, #tpu.memory_space<vmem>>, vector<8x8xf32>
      tpu.vector_store %arg16[%c0_29, %c8], %74 {strides = array<i32>} : memref<8x32xf32, #tpu.memory_space<vmem>>, vector<8x8xf32>,
      %76 = vector.extract_strided_slice %27 {offsets = [0, 16], sizes = [8, 8], strides = [1, 1]} : vector<8x32xbf16> to vector<8x8xbf16>
      %77 = vector.extract_strided_slice %28 {offsets = [0, 16], sizes = [4, 8], strides = [1, 1]} : vector<4x32xbf16> to vector<4x8xbf16>
      %cst_30 = arith.constant dense<0.000000e+00> : vector<8x4xf32>
      %78 = tpu.matmul %76, %77, %cst_30 {dimension_numbers = #tpu.dot_dimension_numbers<[1], [1], [0], [0], [0, 0, 1, 0], [], []>} : vector<8x8xbf16>, vector<4x8xbf16>, vector<8x4xf32> -> vector<8x4xf32>
      %cst_31 = arith.constant 0.353553385 : f32
      %79 = vector.broadcast %cst_31 : f32 to vector<8x4xf32>
      %80 = arith.mulf %78, %79 : vector<8x4xf32>
      %cst_32 = arith.constant dense<0xFF800000> : vector<8xf32>
      %81 = vector.multi_reduction <maximumf>, %80, %cst_32 [1] : vector<8x4xf32> to vector<8xf32>
      %82 = vector.shape_cast %81 : vector<8xf32> to vector<8x1xf32>
      %83 = vector.broadcast %82 : vector<8x1xf32> to vector<8x4xf32>
      %84 = arith.subf %80, %83 : vector<8x4xf32>
      %85 = math.exp %84 : vector<8x4xf32>
      %cst_33 = arith.constant dense<0.000000e+00> : vector<8xf32>
      %86 = vector.multi_reduction <add>, %85, %cst_33 [1] : vector<8x4xf32> to vector<8xf32>
      %87 = vector.shape_cast %86 : vector<8xf32> to vector<8x1xf32>
      %88 = tpu.reciprocal %87 {approx = true} : vector<8x1xf32> -> vector<8x1xf32>
      %89 = arith.mulf %87, %88 : vector<8x1xf32>
      %cst_34 = arith.constant 2.000000e+00 : f32
      %90 = vector.broadcast %cst_34 : f32 to vector<8x1xf32>
      %91 = arith.subf %90, %89 : vector<8x1xf32>
      %92 = arith.mulf %88, %91 : vector<8x1xf32>
      %93 = vector.broadcast %92 : vector<8x1xf32> to vector<8x4xf32>
      %94 = arith.mulf %85, %93 : vector<8x4xf32>
      %95 = arith.truncf %94 : vector<8x4xf32> to vector<8x4xbf16>
      %96 = vector.extract_strided_slice %29 {offsets = [0, 16], sizes = [4, 8], strides = [1, 1]} : vector<4x32xbf16> to vector<4x8xbf16>
      %cst_35 = arith.constant dense<0.000000e+00> : vector<8x8xf32>
      %97 = tpu.matmul %95, %96, %cst_35 {dimension_numbers = #tpu.dot_dimension_numbers<[1], [0], [0], [1], [0, 0, 1, 1], [], []>} : vector<8x4xbf16>, vector<4x8xbf16>, vector<8x8xf32> -> vector<8x8xf32>
      %c0_36 = arith.constant 0 : index
      %c16 = arith.constant 16 : index
      %98 = vector.load %arg16[%c0_36, %c16] : memref<8x32xf32, #tpu.memory_space<vmem>>, vector<8x8xf32>
      tpu.vector_store %arg16[%c0_36, %c16], %97 {strides = array<i32>} : memref<8x32xf32, #tpu.memory_space<vmem>>, vector<8x8xf32>,
      %99 = vector.extract_strided_slice %27 {offsets = [0, 24], sizes = [8, 8], strides = [1, 1]} : vector<8x32xbf16> to vector<8x8xbf16>
      %100 = vector.extract_strided_slice %28 {offsets = [0, 24], sizes = [4, 8], strides = [1, 1]} : vector<4x32xbf16> to vector<4x8xbf16>
      %cst_37 = arith.constant dense<0.000000e+00> : vector<8x4xf32>
      %101 = tpu.matmul %99, %100, %cst_37 {dimension_numbers = #tpu.dot_dimension_numbers<[1], [1], [0], [0], [0, 0, 1, 0], [], []>} : vector<8x8xbf16>, vector<4x8xbf16>, vector<8x4xf32> -> vector<8x4xf32>
      %cst_38 = arith.constant 0.353553385 : f32
      %102 = vector.broadcast %cst_38 : f32 to vector<8x4xf32>
      %103 = arith.mulf %101, %102 : vector<8x4xf32>
      %cst_39 = arith.constant dense<0xFF800000> : vector<8xf32>
      %104 = vector.multi_reduction <maximumf>, %103, %cst_39 [1] : vector<8x4xf32> to vector<8xf32>
      %105 = vector.shape_cast %104 : vector<8xf32> to vector<8x1xf32>
      %106 = vector.broadcast %105 : vector<8x1xf32> to vector<8x4xf32>
      %107 = arith.subf %103, %106 : vector<8x4xf32>
      %108 = math.exp %107 : vector<8x4xf32>
      %cst_40 = arith.constant dense<0.000000e+00> : vector<8xf32>
      %109 = vector.multi_reduction <add>, %108, %cst_40 [1] : vector<8x4xf32> to vector<8xf32>
      %110 = vector.shape_cast %109 : vector<8xf32> to vector<8x1xf32>
      %111 = tpu.reciprocal %110 {approx = true} : vector<8x1xf32> -> vector<8x1xf32>
      %112 = arith.mulf %110, %111 : vector<8x1xf32>
      %cst_41 = arith.constant 2.000000e+00 : f32
      %113 = vector.broadcast %cst_41 : f32 to vector<8x1xf32>
      %114 = arith.subf %113, %112 : vector<8x1xf32>
      %115 = arith.mulf %111, %114 : vector<8x1xf32>
      %116 = vector.broadcast %115 : vector<8x1xf32> to vector<8x4xf32>
      %117 = arith.mulf %108, %116 : vector<8x4xf32>
      %118 = arith.truncf %117 : vector<8x4xf32> to vector<8x4xbf16>
      %119 = vector.extract_strided_slice %29 {offsets = [0, 24], sizes = [4, 8], strides = [1, 1]} : vector<4x32xbf16> to vector<4x8xbf16>
      %cst_42 = arith.constant dense<0.000000e+00> : vector<8x8xf32>
      %120 = tpu.matmul %118, %119, %cst_42 {dimension_numbers = #tpu.dot_dimension_numbers<[1], [0], [0], [1], [0, 0, 1, 1], [], []>} : vector<8x4xbf16>, vector<4x8xbf16>, vector<8x8xf32> -> vector<8x8xf32>
      %c0_43 = arith.constant 0 : index
      %c24 = arith.constant 24 : index
      %121 = vector.load %arg16[%c0_43, %c24] : memref<8x32xf32, #tpu.memory_space<vmem>>, vector<8x8xf32>
      tpu.vector_store %arg16[%c0_43, %c24], %120 {strides = array<i32>} : memref<8x32xf32, #tpu.memory_space<vmem>>, vector<8x8xf32>,
      %c0_44 = arith.constant 0 : index
      %c0_45 = arith.constant 0 : index
      %122 = vector.load %arg16[%c0_44, %c0_45] : memref<8x32xf32, #tpu.memory_space<vmem>>, vector<8x32xf32>
      %123 = arith.truncf %122 : vector<8x32xf32> to vector<8x32xbf16>
      %c0_46 = arith.constant 0 : index
      %c0_47 = arith.constant 0 : index
      %124 = vector.load %arg9[%c0_46, %c0_47] : memref<32x32xbf16, #tpu.memory_space<vmem>>, vector<32x32xbf16>
      %cst_48 = arith.constant dense<0.000000e+00> : vector<8x32xf32>
      %125 = tpu.matmul %123, %124, %cst_48 {dimension_numbers = #tpu.dot_dimension_numbers<[1], [0], [0], [1], [0, 0, 1, 1], [], []>} : vector<8x32xbf16>, vector<32x32xbf16>, vector<8x32xf32> -> vector<8x32xf32>
      %126 = vector.broadcast %7 : vector<1x32xf32> to vector<8x32xf32>
      %127 = arith.addf %125, %126 : vector<8x32xf32>
      %c0_49 = arith.constant 0 : index
      %c0_50 = arith.constant 0 : index
      %c0_51 = arith.constant 0 : index
      %128 = vector.load %arg11[%c0_49, %c0_50, %c0_51] : memref<1x8x32xf32, #tpu.memory_space<vmem>>, vector<1x8x32xf32>
      %129 = vector.shape_cast %128 : vector<1x8x32xf32> to vector<8x32xf32>
      %130 = vector.shape_cast %127 : vector<8x32xf32> to vector<1x8x32xf32>
      tpu.vector_store %arg11[%c0_49, %c0_50, %c0_51], %130 {strides = array<i32>} : memref<1x8x32xf32, #tpu.memory_space<vmem>>, vector<1x8x32xf32>,
    } else {
    }
    return
  }
  func.func @transform_0(%arg0: i32, %arg1: i32) -> (i32, i32, i32) {
    %c1_i32 = arith.constant 1 : i32
    %c0_i32 = arith.constant 0 : i32
    %0 = arith.cmpi eq, %c1_i32, %c0_i32 : i32
    %c1_i32_0 = arith.constant 1 : i32
    %1 = arith.select %0, %c1_i32_0, %c1_i32 : i32
    %2 = arith.remsi %arg1, %1 : i32
    %c0_i32_1 = arith.constant 0 : i32
    %3 = arith.cmpi ne, %2, %c0_i32_1 : i32
    %c0_i32_2 = arith.constant 0 : i32
    %4 = arith.cmpi slt, %2, %c0_i32_2 : i32
    %c0_i32_3 = arith.constant 0 : i32
    %5 = arith.cmpi slt, %1, %c0_i32_3 : i32
    %6 = arith.xori %4, %5 : i1
    %7 = arith.andi %6, %3 : i1
    %8 = arith.addi %2, %1 : i32
    %9 = arith.select %7, %8, %2 : i32
    %c0_i32_4 = arith.constant 0 : i32
    %c0_i32_5 = arith.constant 0 : i32
    return %arg0, %9, %c0_i32_4 : i32, i32, i32
  }
  func.func @transform_1(%arg0: i32, %arg1: i32) -> (i32, i32) {
    %c0_i32 = arith.constant 0 : i32
    %c0_i32_0 = arith.constant 0 : i32
    %c0_i32_1 = arith.constant 0 : i32
    return %c0_i32, %c0_i32_0 : i32, i32
  }
  func.func @transform_2(%arg0: i32, %arg1: i32) -> (i32, i32) {
    %c0_i32 = arith.constant 0 : i32
    %c0_i32_0 = arith.constant 0 : i32
    %c0_i32_1 = arith.constant 0 : i32
    return %c0_i32, %c0_i32_0 : i32, i32
  }
  func.func @transform_3(%arg0: i32, %arg1: i32) -> (i32, i32) {
    %c0_i32 = arith.constant 0 : i32
    %c0_i32_0 = arith.constant 0 : i32
    %c0_i32_1 = arith.constant 0 : i32
    return %c0_i32, %c0_i32_0 : i32, i32
  }
  func.func @transform_4(%arg0: i32, %arg1: i32) -> (i32, i32) {
    %c0_i32 = arith.constant 0 : i32
    %c0_i32_0 = arith.constant 0 : i32
    %c0_i32_1 = arith.constant 0 : i32
    return %c0_i32, %c0_i32_0 : i32, i32
  }
  func.func @transform_5(%arg0: i32, %arg1: i32) -> (i32, i32) {
    %c0_i32 = arith.constant 0 : i32
    %c0_i32_0 = arith.constant 0 : i32
    %c0_i32_1 = arith.constant 0 : i32
    return %c0_i32, %c0_i32_0 : i32, i32
  }
  func.func @transform_6(%arg0: i32, %arg1: i32) -> (i32, i32) {
    %c0_i32 = arith.constant 0 : i32
    %c0_i32_0 = arith.constant 0 : i32
    %c0_i32_1 = arith.constant 0 : i32
    return %c0_i32, %c0_i32_0 : i32, i32
  }
  func.func @transform_7(%arg0: i32, %arg1: i32) -> (i32, i32) {
    %c0_i32 = arith.constant 0 : i32
    %c0_i32_0 = arith.constant 0 : i32
    %c0_i32_1 = arith.constant 0 : i32
    return %c0_i32, %c0_i32_0 : i32, i32
  }
  func.func @transform_8(%arg0: i32, %arg1: i32) -> (i32, i32) {
    %c0_i32 = arith.constant 0 : i32
    %c0_i32_0 = arith.constant 0 : i32
    %c0_i32_1 = arith.constant 0 : i32
    return %c0_i32, %c0_i32_0 : i32, i32
  }
  func.func @transform_9(%arg0: i32, %arg1: i32) -> (i32, i32, i32) {
    %c1_i32 = arith.constant 1 : i32
    %0 = arith.cmpi slt, %arg1, %c1_i32 : i32
    %c1_i32_0 = arith.constant 1 : i32
    %1 = arith.subi %arg1, %c1_i32_0 : i32
    %c0_i32 = arith.constant 0 : i32
    %2 = arith.select %0, %c0_i32, %1 : i32
    %c0_i32_1 = arith.constant 0 : i32
    %c0_i32_2 = arith.constant 0 : i32
    return %arg0, %2, %c0_i32_1 : i32, i32, i32
  }
}

</mosaic_0001>

<llo_original>
// kernel: global_latent_attention_forward.1
$region0: #{global_latent_attention_forward.1}
  #allocation0 [shape = 'u32[]', space=smem, size = 0x4, offset = 0x4, fixed_abs, tag = 'smem constant byte address 0x4 - core index']
  #allocation1 [shape = 'u32[72,128]{1,0:T(1,128)}', space=vmem, size = 0x9000, scoped, tag = 'internal scratch']
  #allocation2 [shape = 'f32[4,4,1]{2,1,0:T(4,128)}', space=vmem, size = 0x2000, scoped, tag = 'scratch operand']
  #allocation3 [shape = 'f32[4,4,1]{2,1,0:T(4,128)}', space=vmem, size = 0x2000, scoped, tag = 'scratch operand']
  #allocation4 [shape = 'f32[4,32]{1,0:T(4,128)}', space=vmem, size = 0x800, scoped, tag = 'scratch operand']
  #allocation5 [shape = 'bf16[4,64]{1,0:T(4,128)(2,1)}', space=vmem, size = 0x400, scoped, tag = 'scratch operand']
  #allocation6 [shape = 'f32[8,32]{1,0:T(8,128)}', space=vmem, size = 0x1000, scoped, tag = 'scratch operand']
  %s0 = inlined_call_operand.vmem [shape: f32[2,8,32], index: 0, kind: input, shape index: {}]
  %s1 = inlined_call_operand.vmem [shape: f32[4,32], index: 1, kind: input, shape index: {}]
  %s2 = inlined_call_operand.vmem [shape: bf16[4,32], index: 2, kind: input, shape index: {}]
  %s3 = inlined_call_operand.vmem [shape: bf16[32,64], index: 3, kind: input, shape index: {}]
  %s4 = inlined_call_operand.vmem [shape: bf16[32,32], index: 4, kind: input, shape index: {}]
  %s5 = inlined_call_operand.vmem [shape: bf16[32,32], index: 5, kind: input, shape index: {}]
  %s6 = inlined_call_operand.vmem [shape: bf16[32,64], index: 6, kind: input, shape index: {}]
  %s7 = inlined_call_operand.vmem [shape: bf16[32,32], index: 7, kind: input, shape index: {}]
  %s8 = inlined_call_operand.vmem [shape: f32[8,64], index: 8, kind: input, shape index: {}]
  %s9 = inlined_call_operand.hbm [shape: f32[2,8,32], index: 9, kind: output, shape index: {}]
  %s10 = sld [smem:[#allocation0]]
  $region85: #{global_latent_attention_forward.1} parent=0
    _
  %s12 = ssub.s32 1, %s10
  %s13 = scalar_select 0, %s12, %s10
  $region1: #{global_latent_attention_forward.1} parent=0
    #allocation7 [shape = 'u8[8192]{0}', space=vmem, size = 0x2000, scoped, tag = 'output window, operand 0']
    #allocation8 [shape = 's32[2]{0}', space=sflag, size = 0x8, scoped, tag = 'scoped memory for global_latent_attention_forward.1']
    %14 = vsyncpa [#allocation8], 0
    %s15 = scalar_lea.sflag [#allocation8], 1
    %16 = vsyncpa %s15, 0
    loop: start=0, step=1, limit=6
    $region2: #{global_latent_attention_forward.1} parent=1 // loop_pre_header
      _
    $region3: #{global_latent_attention_forward.1} parent=1 // loop_header
      %s18 = sphi 0, %s22
      %p19 = scmp.ge.s32.totalorder %s18, 6
      %s25 = sphi 0, %s37
      %s26 = sphi 0, %s33
      %s27 = sphi 0, %s25
      %s28 = sphi 0, %s26
      %s29 = sphi 0, %s27
      %s30 = sphi 0, %s28
      %s40 = sphi 0, %s42
      %s43 = sphi 0, %s40
      %s44 = sphi 0, %s43
      %s60 = sphi 0, %s44
      %s64 = sphi 0, %s64
      %s66 = sphi 0, %s64
      %s67 = sphi 0, %s66
      %s81 = sphi 0, %s67
      %s85 = sphi 0, %s85
      %s87 = sphi 0, %s85
      %s88 = sphi 0, %s87
      %s102 = sphi 0, %s88
      %s106 = sphi 0, %s106
      %s108 = sphi 0, %s106
      %s109 = sphi 0, %s108
      %s123 = sphi 0, %s109
      %s127 = sphi 0, %s127
      %s129 = sphi 0, %s127
      %s130 = sphi 0, %s129
      %s144 = sphi 0, %s130
      %s148 = sphi 0, %s148
      %s150 = sphi 0, %s148
      %s151 = sphi 0, %s150
      %s165 = sphi 0, %s151
      %s169 = sphi 0, %s169
      %s171 = sphi 0, %s169
      %s172 = sphi 0, %s171
      %s186 = sphi 0, %s172
      %s190 = sphi 0, %s190
      %s192 = sphi 0, %s190
      %s193 = sphi 0, %s192
      %s207 = sphi 0, %s193
      %s211 = sphi 0, %s211
      %s213 = sphi 0, %s211
      %s214 = sphi 0, %s213
      %s228 = sphi 0, %s214
      %s242 = sphi 0, %s244
      %s245 = sphi 0, %s242
      %s246 = sphi 0, %s245
      %s262 = sphi 0, %s246
    $region4: #{global_latent_attention_forward.1} parent=1 // loop_header_branch
      %21 = sbr.rel (%p19) target = $region8
    $region5: #{global_latent_attention_forward.1} parent=1 // loop_body
      %s23 = ssub.s32 %s18, 1
      %s24 = ssub.s32 %s18, 2
      %s31 = sadd.s32 1, %s26
      %p32 = scmp.ge.s32.totalorder %s31, 2
      %s33 = scalar_select %p32, 0, %s31
      %s34 = sadd.s32 1, %s25
      %s35 = scalar_select %p32, %s34, %s25
      %p36 = scmp.ge.s32.totalorder %s35, 2
      %s37 = scalar_select %p36, 0, %s35
      %s38 = ssub.s32 %s25, %s37
      %p39 = scmp.eq.s32.totalorder %s38, 0
      %s41 = sadd.s32 %s40, 1
      %s42 = scalar_select %p39, %s40, %s41
      %p45 = pneg %p39
      %p46 = scmp.eq.s32.totalorder %s18, 3
      %p47 = por %p45, %p46
      %p48 = scmp.ne.s32.totalorder %s40, %s43
      %p49 = scmp.eq.s32.totalorder %s18, 0
      %p50 = por %p48, %p49
      %p51 = scmp.ne.s32.totalorder %s40, %s43
      %p52 = scmp.eq.s32.totalorder %s23, 3
      %p53 = por %p51, %p52
      %p54 = scmp.ne.s32.totalorder %s43, %s44
      %p55 = scmp.eq.s32.totalorder %s23, 0
      %p56 = por %p54, %p55
      %p57 = scmp.ne.s32.totalorder %s43, %s44
      %p58 = scmp.eq.s32.totalorder %s24, 3
      %p59 = por %p57, %p58
      %p61 = scmp.ne.s32.totalorder %s44, %s60
      %p62 = scmp.eq.s32.totalorder %s24, 0
      %p63 = por %p61, %p62
      %s65 = sadd.s32 %s64, 1
      %p68 = scmp.eq.s32.totalorder %s18, 3
      %p69 = scmp.ne.s32.totalorder %s64, %s66
      %p70 = scmp.eq.s32.totalorder %s18, 0
      %p71 = por %p69, %p70
      %p72 = scmp.ne.s32.totalorder %s64, %s66
      %p73 = scmp.eq.s32.totalorder %s23, 3
      %p74 = por %p72, %p73
      %p75 = scmp.ne.s32.totalorder %s66, %s67
      %p76 = scmp.eq.s32.totalorder %s23, 0
      %p77 = por %p75, %p76
      %p78 = scmp.ne.s32.totalorder %s66, %s67
      %p79 = scmp.eq.s32.totalorder %s24, 3
      %p80 = por %p78, %p79
      %p82 = scmp.ne.s32.totalorder %s67, %s81
      %p83 = scmp.eq.s32.totalorder %s24, 0
      %p84 = por %p82, %p83
      %s86 = sadd.s32 %s85, 1
      %p89 = scmp.eq.s32.totalorder %s18, 3
      %p90 = scmp.ne.s32.totalorder %s85, %s87
      %p91 = scmp.eq.s32.totalorder %s18, 0
      %p92 = por %p90, %p91
      %p93 = scmp.ne.s32.totalorder %s85, %s87
      %p94 = scmp.eq.s32.totalorder %s23, 3
      %p95 = por %p93, %p94
      %p96 = scmp.ne.s32.totalorder %s87, %s88
      %p97 = scmp.eq.s32.totalorder %s23, 0
      %p98 = por %p96, %p97
      %p99 = scmp.ne.s32.totalorder %s87, %s88
      %p100 = scmp.eq.s32.totalorder %s24, 3
      %p101 = por %p99, %p100
      %p103 = scmp.ne.s32.totalorder %s88, %s102
      %p104 = scmp.eq.s32.totalorder %s24, 0
      %p105 = por %p103, %p104
      %s107 = sadd.s32 %s106, 1
      %p110 = scmp.eq.s32.totalorder %s18, 3
      %p111 = scmp.ne.s32.totalorder %s106, %s108
      %p112 = scmp.eq.s32.totalorder %s18, 0
      %p113 = por %p111, %p112
      %p114 = scmp.ne.s32.totalorder %s106, %s108
      %p115 = scmp.eq.s32.totalorder %s23, 3
      %p116 = por %p114, %p115
      %p117 = scmp.ne.s32.totalorder %s108, %s109
      %p118 = scmp.eq.s32.totalorder %s23, 0
      %p119 = por %p117, %p118
      %p120 = scmp.ne.s32.totalorder %s108, %s109
      %p121 = scmp.eq.s32.totalorder %s24, 3
      %p122 = por %p120, %p121
      %p124 = scmp.ne.s32.totalorder %s109, %s123
      %p125 = scmp.eq.s32.totalorder %s24, 0
      %p126 = por %p124, %p125
      %s128 = sadd.s32 %s127, 1
      %p131 = scmp.eq.s32.totalorder %s18, 3
      %p132 = scmp.ne.s32.totalorder %s127, %s129
      %p133 = scmp.eq.s32.totalorder %s18, 0
      %p134 = por %p132, %p133
      %p135 = scmp.ne.s32.totalorder %s127, %s129
      %p136 = scmp.eq.s32.totalorder %s23, 3
      %p137 = por %p135, %p136
      %p138 = scmp.ne.s32.totalorder %s129, %s130
      %p139 = scmp.eq.s32.totalorder %s23, 0
      %p140 = por %p138, %p139
      %p141 = scmp.ne.s32.totalorder %s129, %s130
      %p142 = scmp.eq.s32.totalorder %s24, 3
      %p143 = por %p141, %p142
      %p145 = scmp.ne.s32.totalorder %s130, %s144
      %p146 = scmp.eq.s32.totalorder %s24, 0
      %p147 = por %p145, %p146
      %s149 = sadd.s32 %s148, 1
      %p152 = scmp.eq.s32.totalorder %s18, 3
      %p153 = scmp.ne.s32.totalorder %s148, %s150
      %p154 = scmp.eq.s32.totalorder %s18, 0
      %p155 = por %p153, %p154
      %p156 = scmp.ne.s32.totalorder %s148, %s150
      %p157 = scmp.eq.s32.totalorder %s23, 3
      %p158 = por %p156, %p157
      %p159 = scmp.ne.s32.totalorder %s150, %s151
      %p160 = scmp.eq.s32.totalorder %s23, 0
      %p161 = por %p159, %p160
      %p162 = scmp.ne.s32.totalorder %s150, %s151
      %p163 = scmp.eq.s32.totalorder %s24, 3
      %p164 = por %p162, %p163
      %p166 = scmp.ne.s32.totalorder %s151, %s165
      %p167 = scmp.eq.s32.totalorder %s24, 0
      %p168 = por %p166, %p167
      %s170 = sadd.s32 %s169, 1
      %p173 = scmp.eq.s32.totalorder %s18, 3
      %p174 = scmp.ne.s32.totalorder %s169, %s171
      %p175 = scmp.eq.s32.totalorder %s18, 0
      %p176 = por %p174, %p175
      %p177 = scmp.ne.s32.totalorder %s169, %s171
      %p178 = scmp.eq.s32.totalorder %s23, 3
      %p179 = por %p177, %p178
      %p180 = scmp.ne.s32.totalorder %s171, %s172
      %p181 = scmp.eq.s32.totalorder %s23, 0
      %p182 = por %p180, %p181
      %p183 = scmp.ne.s32.totalorder %s171, %s172
      %p184 = scmp.eq.s32.totalorder %s24, 3
      %p185 = por %p183, %p184
      %p187 = scmp.ne.s32.totalorder %s172, %s186
      %p188 = scmp.eq.s32.totalorder %s24, 0
      %p189 = por %p187, %p188
      %s191 = sadd.s32 %s190, 1
      %p194 = scmp.eq.s32.totalorder %s18, 3
      %p195 = scmp.ne.s32.totalorder %s190, %s192
      %p196 = scmp.eq.s32.totalorder %s18, 0
      %p197 = por %p195, %p196
      %p198 = scmp.ne.s32.totalorder %s190, %s192
      %p199 = scmp.eq.s32.totalorder %s23, 3
      %p200 = por %p198, %p199
      %p201 = scmp.ne.s32.totalorder %s192, %s193
      %p202 = scmp.eq.s32.totalorder %s23, 0
      %p203 = por %p201, %p202
      %p204 = scmp.ne.s32.totalorder %s192, %s193
      %p205 = scmp.eq.s32.totalorder %s24, 3
      %p206 = por %p204, %p205
      %p208 = scmp.ne.s32.totalorder %s193, %s207
      %p209 = scmp.eq.s32.totalorder %s24, 0
      %p210 = por %p208, %p209
      %s212 = sadd.s32 %s211, 1
      %p215 = scmp.eq.s32.totalorder %s18, 3
      %p216 = scmp.ne.s32.totalorder %s211, %s213
      %p217 = scmp.eq.s32.totalorder %s18, 0
      %p218 = por %p216, %p217
      %p219 = scmp.ne.s32.totalorder %s211, %s213
      %p220 = scmp.eq.s32.totalorder %s23, 3
      %p221 = por %p219, %p220
      %p222 = scmp.ne.s32.totalorder %s213, %s214
      %p223 = scmp.eq.s32.totalorder %s23, 0
      %p224 = por %p222, %p223
      %p225 = scmp.ne.s32.totalorder %s213, %s214
      %p226 = scmp.eq.s32.totalorder %s24, 3
      %p227 = por %p225, %p226
      %p229 = scmp.ne.s32.totalorder %s214, %s228
      %p230 = scmp.eq.s32.totalorder %s24, 0
      %p231 = por %p229, %p230
      %p232 = scmp.lt.s32.totalorder %s26, 1
      %s233 = ssub.s32 %s26, 1
      %s234 = scalar_select %p232, 0, %s233
      %p235 = scmp.lt.s32.totalorder %s33, 1
      %s236 = ssub.s32 %s33, 1
      %s237 = scalar_select %p235, 0, %s236
      %s238 = ssub.s32 %s25, %s37
      %s239 = ssub.s32 %s234, %s237
      %s240 = sor.u32 %s238, %s239
      %p241 = scmp.eq.s32.totalorder %s240, 0
      %s243 = sadd.s32 %s242, 1
      %s244 = scalar_select %p241, %s242, %s243
      %p247 = pneg %p241
      %p248 = scmp.eq.s32.totalorder %s18, 3
      %p249 = por %p247, %p248
      %p250 = scmp.ne.s32.totalorder %s242, %s245
      %p251 = scmp.eq.s32.totalorder %s18, 0
      %p252 = por %p250, %p251
      %p253 = scmp.ne.s32.totalorder %s242, %s245
      %p254 = scmp.eq.s32.totalorder %s23, 3
      %p255 = por %p253, %p254
      %p256 = scmp.ne.s32.totalorder %s245, %s246
      %p257 = scmp.eq.s32.totalorder %s23, 0
      %p258 = por %p256, %p257
      %p259 = scmp.ne.s32.totalorder %s245, %s246
      %p260 = scmp.eq.s32.totalorder %s24, 3
      %p261 = por %p259, %p260
      %p263 = scmp.ne.s32.totalorder %s246, %s262
      %p264 = scmp.eq.s32.totalorder %s24, 0
      %p265 = por %p263, %p264
      %p266 = scmp.le.s32.totalorder 1, %s18
      %p267 = scmp.lt.s32.totalorder %s18, 5
      %p268 = pnand %p266, %p267
      %p269 = pneg %p268
      // Predicated region
      $region9: #{global_latent_attention_forward.1} parent=5 // pred_check
        _
      $region10: #{global_latent_attention_forward.1} parent=5 // pred_check_branch
        %271 = sbr.rel (%p268) target = $region12
      $region11: #{global_latent_attention_forward.1} parent=5 // pred_region
        %s272 = ssub.s32 %s18, 1
        // Predicated region
        $region13: #{global_latent_attention_forward.1} parent=11 // pred_check
          %p273 = pneg %p77
        $region14: #{global_latent_attention_forward.1} parent=11 // pred_check_branch
          %275 = sbr.rel (%p273) target = $region16
        $region15: #{global_latent_attention_forward.1} parent=11 // pred_region
          _
        $region16: #{global_latent_attention_forward.1} parent=11 // pred_fallthru
          _
        // Predicated region
        $region17: #{global_latent_attention_forward.1} parent=11 // pred_check
          %p276 = pneg %p98
        $region18: #{global_latent_attention_forward.1} parent=11 // pred_check_branch
          %278 = sbr.rel (%p276) target = $region20
        $region19: #{global_latent_attention_forward.1} parent=11 // pred_region
          _
        $region20: #{global_latent_attention_forward.1} parent=11 // pred_fallthru
          _
        // Predicated region
        $region21: #{global_latent_attention_forward.1} parent=11 // pred_check
          %p279 = pneg %p119
        $region22: #{global_latent_attention_forward.1} parent=11 // pred_check_branch
          %281 = sbr.rel (%p279) target = $region24
        $region23: #{global_latent_attention_forward.1} parent=11 // pred_region
          _
        $region24: #{global_latent_attention_forward.1} parent=11 // pred_fallthru
          _
        // Predicated region
        $region25: #{global_latent_attention_forward.1} parent=11 // pred_check
          %p282 = pneg %p140
        $region26: #{global_latent_attention_forward.1} parent=11 // pred_check_branch
          %284 = sbr.rel (%p282) target = $region28
        $region27: #{global_latent_attention_forward.1} parent=11 // pred_region
          _
        $region28: #{global_latent_attention_forward.1} parent=11 // pred_fallthru
          _
        // Predicated region
        $region29: #{global_latent_attention_forward.1} parent=11 // pred_check
          %p285 = pneg %p161
        $region30: #{global_latent_attention_forward.1} parent=11 // pred_check_branch
          %287 = sbr.rel (%p285) target = $region32
        $region31: #{global_latent_attention_forward.1} parent=11 // pred_region
          _
        $region32: #{global_latent_attention_forward.1} parent=11 // pred_fallthru
          _
        // Predicated region
        $region33: #{global_latent_attention_forward.1} parent=11 // pred_check
          %p288 = pneg %p182
        $region34: #{global_latent_attention_forward.1} parent=11 // pred_check_branch
          %290 = sbr.rel (%p288) target = $region36
        $region35: #{global_latent_attention_forward.1} parent=11 // pred_region
          _
        $region36: #{global_latent_attention_forward.1} parent=11 // pred_fallthru
          _
        // Predicated region
        $region37: #{global_latent_attention_forward.1} parent=11 // pred_check
          %p291 = pneg %p203
        $region38: #{global_latent_attention_forward.1} parent=11 // pred_check_branch
          %293 = sbr.rel (%p291) target = $region40
        $region39: #{global_latent_attention_forward.1} parent=11 // pred_region
          _
        $region40: #{global_latent_attention_forward.1} parent=11 // pred_fallthru
          _
        // Predicated region
        $region41: #{global_latent_attention_forward.1} parent=11 // pred_check
          %p294 = pneg %p224
        $region42: #{global_latent_attention_forward.1} parent=11 // pred_check_branch
          %296 = sbr.rel (%p294) target = $region44
        $region43: #{global_latent_attention_forward.1} parent=11 // pred_region
          _
        $region44: #{global_latent_attention_forward.1} parent=11 // pred_fallthru
          _
      $region12: #{global_latent_attention_forward.1} parent=5 // pred_fallthru
        _
      %p297 = scmp.lt.s32.totalorder %s18, 4
      // Predicated region
      $region45: #{global_latent_attention_forward.1} parent=5 // pred_check
        %p298 = pneg %p297
      $region46: #{global_latent_attention_forward.1} parent=5 // pred_check_branch
        %300 = sbr.rel (%p298) target = $region48
      $region47: #{global_latent_attention_forward.1} parent=5 // pred_region
        // Predicated region
        $region49: #{global_latent_attention_forward.1} parent=47 // pred_check
          %p301 = pneg %p50
        $region50: #{global_latent_attention_forward.1} parent=47 // pred_check_branch
          %303 = sbr.rel (%p301) target = $region52
        $region51: #{global_latent_attention_forward.1} parent=47 // pred_region
          %p304 = scmp.lt.s32.totalorder %s25, 1
          %s305 = scalar_select %p304, %s25, 1
          %s306 = smul.addr %s305, 8
          %s307 = scalar_lea.vmem %s0, %s306
        $region52: #{global_latent_attention_forward.1} parent=47 // pred_fallthru
          _
      $region48: #{global_latent_attention_forward.1} parent=5 // pred_fallthru
        _
      %p308 = scmp.le.s32.totalorder 1, %s18
      %p309 = scmp.lt.s32.totalorder %s18, 5
      %p310 = pnand %p308, %p309
      %p311 = pneg %p310
      // Predicated region
      $region53: #{global_latent_attention_forward.1} parent=5 // pred_check
        _
      $region54: #{global_latent_attention_forward.1} parent=5 // pred_check_branch
        %313 = sbr.rel (%p310) target = $region56
      $region55: #{global_latent_attention_forward.1} parent=5 // pred_region
        %s314 = ssub.s32 %s18, 1
        %p315 = scmp.lt.s32.totalorder %s27, 1
        %s316 = scalar_select %p315, %s27, 1
        %s317 = smul.addr %s316, 8
        %s318 = scalar_lea.vmem %s0, %s317
        %p319 = pneg %p56
        %p320 = pneg %p53
        %p321 = pneg %p77
        %p322 = pneg %p74
        %p323 = pneg %p98
        %p324 = pneg %p95
        %p325 = pneg %p119
        %p326 = pneg %p116
        %p327 = pneg %p140
        %p328 = pneg %p137
        %p329 = pneg %p161
        %p330 = pneg %p158
        %p331 = pneg %p182
        %p332 = pneg %p179
        %p333 = pneg %p203
        %p334 = pneg %p200
        %p335 = pneg %p224
        %p336 = pneg %p221
        %p337 = pneg %p258
        %p338 = pneg %p255
        %s339 = sand.u32 %s245, 1
        %s340 = scalar_lea.sflag [#allocation8], %s339
        %s341 = sand.u32 %s245, 1
        %s342 = smul.addr %s341, 8
        %s343 = scalar_lea.vmem [#allocation7], %s342
        %p344 = scmp.lt.s32.totalorder %s27, 1
        %s345 = scalar_select %p344, %s27, 1
        %s346 = smul.addr %s345, 8
        %s347 = scalar_lea.vmem %s0, %s346
        %p348 = scmp.lt.s32.totalorder %s28, 1
        %s349 = ssub.s32 %s28, 1
        %s350 = scalar_select %p348, 0, %s349
        %v352 = vld [vmem:[%s8] sm:$0xff]
        %p353 = scmp.eq.s32.totalorder %s28, 0
        // Predicated region
        $region57: #{global_latent_attention_forward.1} parent=55 // pred_check
          %p354 = pneg %p353
        $region58: #{global_latent_attention_forward.1} parent=55 // pred_check_branch
          %356 = sbr.rel (%p354) target = $region60
        $region59: #{global_latent_attention_forward.1} parent=55 // pred_region
          %vm357 = vcmask 3072
          %358 = vst.msk [vmem:[#allocation2] sm:$0xf] %vm357, -inf
          %359 = vst.msk [vmem:[#allocation2 + $0x4] sm:$0xf] %vm357, -inf
          %360 = vst.msk [vmem:[#allocation2 + $0x8] sm:$0xf] %vm357, -inf
          %361 = vst.msk [vmem:[#allocation2 + $0xc] sm:$0xf] %vm357, -inf
          %362 = vst.msk [vmem:[#allocation3] sm:$0xf] %vm357, 0.0
          %363 = vst.msk [vmem:[#allocation3 + $0x4] sm:$0xf] %vm357, 0.0
          %364 = vst.msk [vmem:[#allocation3 + $0x8] sm:$0xf] %vm357, 0.0
          %365 = vst.msk [vmem:[#allocation3 + $0xc] sm:$0xf] %vm357, 0.0
          %vm366 = vcmask 257024
          %367 = vst.msk [vmem:[#allocation4] sm:$0xf] %vm366, 0.0
        $region60: #{global_latent_attention_forward.1} parent=55 // pred_fallthru
          _
        %p368 = scmp.lt.s32.totalorder %s28, 1
        // Predicated region
        $region61: #{global_latent_attention_forward.1} parent=55 // pred_check
          %p369 = pneg %p368
        $region62: #{global_latent_attention_forward.1} parent=55 // pred_check_branch
          %371 = sbr.rel (%p369) target = $region64
        $region63: #{global_latent_attention_forward.1} parent=55 // pred_region
          %v372 = vld [vmem:[%s347] sm:$0xff]
          %v373 = vpack.c.bf16 %v372, %v372
          %v374 = vld [vmem:[%s3] sm:$0xf]
          %v375 = vld [vmem:[%s3 + $0x4] sm:$0xf]
          %v376 = vld [vmem:[%s3 + $0x8] sm:$0xf]
          %v377 = vld [vmem:[%s3 + $0xc] sm:$0xf]
          %v378 = vperm.slane %v352, 0
          %v383 = vunpack.c.l.b16 %v374
          %v384 = vunpack.c.l.b16 %v375
          %v385 = vunpack.c.l.b16 %v376
          %v386 = vunpack.c.l.b16 %v377
          %v387 = vpack.c.b16 %v384, %v383
          %v388 = vpack.c.b16 %v386, %v385
          %vm391 = vcmask 261120
          %v393 = vsel %vm391, %v373, 0
          %395 = vmatpush.bf16.msra.mxu0 0
          %396 = vmatpush.bf16.msra.mxu0 0
          %397 = vmatpush.bf16.msra.mxu0 0
          %398 = vmatpush.bf16.msra.mxu0 0
          %399 = vmatpush.bf16.msra.mxu0 0
          %400 = vmatpush.bf16.msra.mxu0 0
          %401 = vmatpush.bf16.msra.mxu0 %v388
          %402 = vmatpush.bf16.msra.mxu0 %v387
          %403 = vmatmul.bf16.gmra.mxu0 %v393
          %v404 = vpop.f32.mrf.mxu0
          %v405 = vadd.f32 %v378, %v404
          %v406 = vpop.f32.mrf.mxu0
          %407 = vdwg.mxu0
          %v408 = vpack.c.bf16 %v405, %v405
          %v409 = vld [vmem:[%s2] sm:$0x3]
          %vm410 = vcmask 64512
          %v412 = vsel %vm410, %v409, 0
          %v415 = vsel %vm410, %v408, 0
          %417 = vmatpush.bf16.xpose.msra.mxu0 0
          %418 = vmatpush.bf16.xpose.msra.mxu0 0
          %419 = vmatpush.bf16.xpose.msra.mxu0 0
          %420 = vmatpush.bf16.xpose.msra.mxu0 0
          %421 = vmatpush.bf16.xpose.msra.mxu0 0
          %422 = vmatpush.bf16.xpose.msra.mxu0 0
          %423 = vmatpush.bf16.xpose.msra.mxu0 0
          %424 = vmatpush.bf16.xpose.msra.mxu0 %v415
          %425 = vmatmul.bf16.gmra.mxu0 %v412
          %v426 = vpop.f32.mrf.mxu0
          %v427 = vadd.f32 0.0, %v426
          %v428 = vpop.f32.mrf.mxu0
          %429 = vdwg.mxu0
          %v430 = vmul.f32 %v427, 0.35355338
          %v431 = vld [vmem:[#allocation2] sm:$0xf]
          %vm432 = vcmask 60416
          %v433 = vsel %vm432, %v430, -inf
          %434 = vmax.xlane.f32.xlu0 %v433
          %v435 = vpop.xlane.xlu0 %434
          %v436 = vmax.f32 %v431, %v435
          %v437 = vsub.f32 %v431, %v436
          %v438 = vmul.f32 %v437, 1.442695
          %v439 = vpow.pop %v438
          %441 = vset.pattern.permute.xlu0 0
          %442 = vperm.xlu0 %441, %v436
          %v443 = vpop.permute.xlu0 %442
          %v445 = vsub.f32 %v430, %v443
          %v446 = vmul.f32 %v445, 1.442695
          %v447 = vpow.pop %v446
          %v448 = vld [vmem:[#allocation3] sm:$0xf]
          %v449 = vmul.f32 %v439, %v448
          %v450 = vsel %vm432, %v447, 0.0
          %451 = vadd.xlane.f32.xlu0 %v450
          %v452 = vpop.xlane.xlu0 %451
          %v453 = vadd.f32 %v449, %v452
          %vm454 = vcmask 3072
          %455 = vst.msk [vmem:[#allocation3] sm:$0xf] %vm454, %v453
          %v456 = vld [vmem:[#allocation4] sm:$0xf]
          %458 = vset.pattern.permute.xlu0 0
          %459 = vperm.xlu0 %458, %v439
          %v460 = vpop.permute.xlu0 %459
          %v462 = vmul.f32 %v460, %v456
          %v463 = vpack.c.bf16 %v447, %v447
          %v465 = vunpack.c.l.b16 %v408
          %v466 = vpack.c.b16 %v465, %v465
          %467 = vrot.lane.b32.xlu0 %v466, 96
          %v468 = vpop.permute.xlu0 %467
          %v470 = vsel %vm410, %v463, 0
          %vm472 = vcmask 1043456
          %v474 = vsel %vm472, %v468, 0
          %476 = vmatpush.bf16.msra.mxu0 0
          %477 = vmatpush.bf16.msra.mxu0 0
          %478 = vmatpush.bf16.msra.mxu0 0
          %479 = vmatpush.bf16.msra.mxu0 0
          %480 = vmatpush.bf16.msra.mxu0 0
          %481 = vmatpush.bf16.msra.mxu0 0
          %482 = vmatpush.bf16.msra.mxu0 0
          %483 = vmatpush.bf16.msra.mxu0 %v474
          %484 = vmatmul.bf16.gmra.mxu0 %v470
          %v485 = vpop.f32.mrf.mxu0
          %v486 = vadd.f32 0.0, %v485
          %v487 = vpop.f32.mrf.mxu0
          %488 = vdwg.mxu0
          %v489 = vadd.f32 %v462, %v486
          %490 = vst.msk [vmem:[#allocation4] sm:$0xf] %vm432, %v489
          %491 = vst.msk [vmem:[#allocation2] sm:$0xf] %vm454, %v436
          %492 = vst [vmem:[#allocation1] ss:$4 sm:$0xff] %v409
          %v493 = vld.sshfl [vmem:[#allocation1] sm:$0xff pattern:$0x73625140]
          %495 = vrot.lane.b32.xlu0 %v493, 120
          %v496 = vpop.permute.xlu0 %495
          %497 = vrot.lane.b32.xlu0 %v466, 120
          %v498 = vpop.permute.xlu0 %497
          %v500 = vsel %vm410, %v496, 0
          %v503 = vsel %vm410, %v498, 0
          %505 = vmatpush.bf16.xpose.msra.mxu0 0
          %506 = vmatpush.bf16.xpose.msra.mxu0 0
          %507 = vmatpush.bf16.xpose.msra.mxu0 0
          %508 = vmatpush.bf16.xpose.msra.mxu0 0
          %509 = vmatpush.bf16.xpose.msra.mxu0 0
          %510 = vmatpush.bf16.xpose.msra.mxu0 0
          %511 = vmatpush.bf16.xpose.msra.mxu0 0
          %512 = vmatpush.bf16.xpose.msra.mxu0 %v503
          %513 = vmatmul.bf16.gmra.mxu0 %v500
          %v514 = vpop.f32.mrf.mxu0
          %v515 = vadd.f32 0.0, %v514
          %v516 = vpop.f32.mrf.mxu0
          %517 = vdwg.mxu0
          %v518 = vmul.f32 %v515, 0.35355338
          %s519 = scalar_lea.vmem [#allocation2], 4
          %v520 = vld [vmem:[%s519] sm:$0xf]
          %v521 = vsel %vm432, %v518, -inf
          %522 = vmax.xlane.f32.xlu0 %v521
          %v523 = vpop.xlane.xlu0 %522
          %v524 = vmax.f32 %v520, %v523
          %v525 = vsub.f32 %v520, %v524
          %v526 = vmul.f32 %v525, 1.442695
          %v527 = vpow.pop %v526
          %529 = vset.pattern.permute.xlu0 0
          %530 = vperm.xlu0 %529, %v524
          %v531 = vpop.permute.xlu0 %530
          %v533 = vsub.f32 %v518, %v531
          %v534 = vmul.f32 %v533, 1.442695
          %v535 = vpow.pop %v534
          %s536 = scalar_lea.vmem [#allocation3], 4
          %v537 = vld [vmem:[%s536] sm:$0xf]
          %v538 = vmul.f32 %v527, %v537
          %v539 = vsel %vm432, %v535, 0.0
          %540 = vadd.xlane.f32.xlu0 %v539
          %v541 = vpop.xlane.xlu0 %540
          %v542 = vadd.f32 %v538, %v541
          %543 = vst.msk [vmem:[%s536] sm:$0xf] %vm454, %v542
          %v544 = vld [vmem:[#allocation4] sm:$0xf]
          %546 = vset.pattern.permute.xlu0 0
          %547 = vperm.xlu0 %546, %v527
          %v548 = vpop.permute.xlu0 %547
          %v550 = vmul.f32 %v548, %v544
          %v551 = vpack.c.bf16 %v535, %v535
          %552 = vrot.lane.b32.xlu0 %v466, 88
          %v553 = vpop.permute.xlu0 %552
          %v555 = vsel %vm410, %v551, 0
          %v558 = vsel %vm472, %v553, 0
          %560 = vmatpush.bf16.msra.mxu0 0
          %561 = vmatpush.bf16.msra.mxu0 0
          %562 = vmatpush.bf16.msra.mxu0 0
          %563 = vmatpush.bf16.msra.mxu0 0
          %564 = vmatpush.bf16.msra.mxu0 0
          %565 = vmatpush.bf16.msra.mxu0 0
          %566 = vmatpush.bf16.msra.mxu0 0
          %567 = vmatpush.bf16.msra.mxu0 %v558
          %568 = vmatmul.bf16.gmra.mxu0 %v555
          %v569 = vpop.f32.mrf.mxu0
          %v570 = vadd.f32 0.0, %v569
          %v571 = vpop.f32.mrf.mxu0
          %572 = vdwg.mxu0
          %574 = vrot.lane.b32.xlu0 %v570, 8
          %v575 = vpop.permute.xlu0 %574
          %v577 = vadd.f32 %v550, %v575
          %vm578 = vcmask 126016
          %579 = vst.msk [vmem:[#allocation4] sm:$0xf] %vm578, %v577
          %580 = vst.msk [vmem:[%s519] sm:$0xf] %vm454, %v524
          %581 = vst [vmem:[#allocation1] ss:$4 sm:$0xff] %v409
          %v582 = vld.sshfl [vmem:[#allocation1] sm:$0xff pattern:$0x73625140]
          %584 = vrot.lane.b32.xlu0 %v582, 112
          %v585 = vpop.permute.xlu0 %584
          %586 = vrot.lane.b32.xlu0 %v466, 112
          %v587 = vpop.permute.xlu0 %586
          %v589 = vsel %vm410, %v585, 0
          %v592 = vsel %vm410, %v587, 0
          %594 = vmatpush.bf16.xpose.msra.mxu0 0
          %595 = vmatpush.bf16.xpose.msra.mxu0 0
          %596 = vmatpush.bf16.xpose.msra.mxu0 0
          %597 = vmatpush.bf16.xpose.msra.mxu0 0
          %598 = vmatpush.bf16.xpose.msra.mxu0 0
          %599 = vmatpush.bf16.xpose.msra.mxu0 0
          %600 = vmatpush.bf16.xpose.msra.mxu0 0
          %601 = vmatpush.bf16.xpose.msra.mxu0 %v592
          %602 = vmatmul.bf16.gmra.mxu0 %v589
          %v603 = vpop.f32.mrf.mxu0
          %v604 = vadd.f32 0.0, %v603
          %v605 = vpop.f32.mrf.mxu0
          %606 = vdwg.mxu0
          %v607 = vmul.f32 %v604, 0.35355338
          %s608 = scalar_lea.vmem [#allocation2], 8
          %v609 = vld [vmem:[%s608] sm:$0xf]
          %v610 = vsel %vm432, %v607, -inf
          %611 = vmax.xlane.f32.xlu0 %v610
          %v612 = vpop.xlane.xlu0 %611
          %v613 = vmax.f32 %v609, %v612
          %v614 = vsub.f32 %v609, %v613
          %v615 = vmul.f32 %v614, 1.442695
          %v616 = vpow.pop %v615
          %618 = vset.pattern.permute.xlu0 0
          %619 = vperm.xlu0 %618, %v613
          %v620 = vpop.permute.xlu0 %619
          %v622 = vsub.f32 %v607, %v620
          %v623 = vmul.f32 %v622, 1.442695
          %v624 = vpow.pop %v623
          %s625 = scalar_lea.vmem [#allocation3], 8
          %v626 = vld [vmem:[%s625] sm:$0xf]
          %v627 = vmul.f32 %v616, %v626
          %v628 = vsel %vm432, %v624, 0.0
          %629 = vadd.xlane.f32.xlu0 %v628
          %v630 = vpop.xlane.xlu0 %629
          %v631 = vadd.f32 %v627, %v630
          %632 = vst.msk [vmem:[%s625] sm:$0xf] %vm454, %v631
          %v633 = vld [vmem:[#allocation4] sm:$0xf]
          %635 = vset.pattern.permute.xlu0 0
          %636 = vperm.xlu0 %635, %v616
          %v637 = vpop.permute.xlu0 %636
          %v639 = vmul.f32 %v637, %v633
          %v640 = vpack.c.bf16 %v624, %v624
          %641 = vrot.lane.b32.xlu0 %v466, 80
          %v642 = vpop.permute.xlu0 %641
          %v644 = vsel %vm410, %v640, 0
          %v647 = vsel %vm472, %v642, 0
          %649 = vmatpush.bf16.msra.mxu0 0
          %650 = vmatpush.bf16.msra.mxu0 0
          %651 = vmatpush.bf16.msra.mxu0 0
          %652 = vmatpush.bf16.msra.mxu0 0
          %653 = vmatpush.bf16.msra.mxu0 0
          %654 = vmatpush.bf16.msra.mxu0 0
          %655 = vmatpush.bf16.msra.mxu0 0
          %656 = vmatpush.bf16.msra.mxu0 %v647
          %657 = vmatmul.bf16.gmra.mxu0 %v644
          %v658 = vpop.f32.mrf.mxu0
          %v659 = vadd.f32 0.0, %v658
          %v660 = vpop.f32.mrf.mxu0
          %661 = vdwg.mxu0
          %663 = vrot.lane.b32.xlu0 %v659, 16
          %v664 = vpop.permute.xlu0 %663
          %v666 = vadd.f32 %v639, %v664
          %vm667 = vcmask 191616
          %668 = vst.msk [vmem:[#allocation4] sm:$0xf] %vm667, %v666
          %669 = vst.msk [vmem:[%s608] sm:$0xf] %vm454, %v613
          %670 = vst [vmem:[#allocation1] ss:$4 sm:$0xff] %v409
          %v671 = vld.sshfl [vmem:[#allocation1] sm:$0xff pattern:$0x73625140]
          %673 = vrot.lane.b32.xlu0 %v671, 104
          %v674 = vpop.permute.xlu0 %673
          %675 = vrot.lane.b32.xlu0 %v466, 104
          %v676 = vpop.permute.xlu0 %675
          %v678 = vsel %vm410, %v674, 0
          %v681 = vsel %vm410, %v676, 0
          %683 = vmatpush.bf16.xpose.msra.mxu0 0
          %684 = vmatpush.bf16.xpose.msra.mxu0 0
          %685 = vmatpush.bf16.xpose.msra.mxu0 0
          %686 = vmatpush.bf16.xpose.msra.mxu0 0
          %687 = vmatpush.bf16.xpose.msra.mxu0 0
          %688 = vmatpush.bf16.xpose.msra.mxu0 0
          %689 = vmatpush.bf16.xpose.msra.mxu0 0
          %690 = vmatpush.bf16.xpose.msra.mxu0 %v681
          %691 = vmatmul.bf16.gmra.mxu0 %v678
          %v692 = vpop.f32.mrf.mxu0
          %v693 = vadd.f32 0.0, %v692
          %v694 = vpop.f32.mrf.mxu0
          %695 = vdwg.mxu0
          %v696 = vmul.f32 %v693, 0.35355338
          %s697 = scalar_lea.vmem [#allocation2], 12
          %v698 = vld [vmem:[%s697] sm:$0xf]
          %v699 = vsel %vm432, %v696, -inf
          %700 = vmax.xlane.f32.xlu0 %v699
          %v701 = vpop.xlane.xlu0 %700
          %v702 = vmax.f32 %v698, %v701
          %v703 = vsub.f32 %v698, %v702
          %v704 = vmul.f32 %v703, 1.442695
          %v705 = vpow.pop %v704
          %707 = vset.pattern.permute.xlu0 0
          %708 = vperm.xlu0 %707, %v702
          %v709 = vpop.permute.xlu0 %708
          %v711 = vsub.f32 %v696, %v709
          %v712 = vmul.f32 %v711, 1.442695
          %v713 = vpow.pop %v712
          %s714 = scalar_lea.vmem [#allocation3], 12
          %v715 = vld [vmem:[%s714] sm:$0xf]
          %v716 = vmul.f32 %v705, %v715
          %v717 = vsel %vm432, %v713, 0.0
          %718 = vadd.xlane.f32.xlu0 %v717
          %v719 = vpop.xlane.xlu0 %718
          %v720 = vadd.f32 %v716, %v719
          %721 = vst.msk [vmem:[%s714] sm:$0xf] %vm454, %v720
          %v722 = vld [vmem:[#allocation4] sm:$0xf]
          %724 = vset.pattern.permute.xlu0 0
          %725 = vperm.xlu0 %724, %v705
          %v726 = vpop.permute.xlu0 %725
          %v728 = vmul.f32 %v726, %v722
          %v729 = vpack.c.bf16 %v713, %v713
          %730 = vrot.lane.b32.xlu0 %v466, 72
          %v731 = vpop.permute.xlu0 %730
          %v733 = vsel %vm410, %v729, 0
          %v736 = vsel %vm472, %v731, 0
          %738 = vmatpush.bf16.msra.mxu0 0
          %739 = vmatpush.bf16.msra.mxu0 0
          %740 = vmatpush.bf16.msra.mxu0 0
          %741 = vmatpush.bf16.msra.mxu0 0
          %742 = vmatpush.bf16.msra.mxu0 0
          %743 = vmatpush.bf16.msra.mxu0 0
          %744 = vmatpush.bf16.msra.mxu0 0
          %745 = vmatpush.bf16.msra.mxu0 %v736
          %746 = vmatmul.bf16.gmra.mxu0 %v733
          %v747 = vpop.f32.mrf.mxu0
          %v748 = vadd.f32 0.0, %v747
          %v749 = vpop.f32.mrf.mxu0
          %750 = vdwg.mxu0
          %752 = vrot.lane.b32.xlu0 %v748, 24
          %v753 = vpop.permute.xlu0 %752
          %v755 = vadd.f32 %v728, %v753
          %vm756 = vcmask 257216
          %757 = vst.msk [vmem:[#allocation4] sm:$0xf] %vm756, %v755
          %758 = vst.msk [vmem:[%s697] sm:$0xf] %vm454, %v702
        $region64: #{global_latent_attention_forward.1} parent=55 // pred_fallthru
          _
        // Predicated region
        $region65: #{global_latent_attention_forward.1} parent=55 // pred_check
          %p759 = pneg %p353
        $region66: #{global_latent_attention_forward.1} parent=55 // pred_check_branch
          %761 = sbr.rel (%p759) target = $region68
        $region67: #{global_latent_attention_forward.1} parent=55 // pred_region
          %v762 = vld [vmem:[#allocation3] sm:$0xf]
          %v763 = vrcp.pop %v762
          %v764 = vmul.f32 %v762, %v763
          %v765 = vsub.f32 2.0, %v764
          %v766 = vmul.f32 %v763, %v765
          %v767 = vld [vmem:[#allocation4] sm:$0xf]
          %769 = vset.pattern.permute.xlu0 0
          %770 = vperm.xlu0 %769, %v766
          %v771 = vpop.permute.xlu0 %770
          %v773 = vmul.f32 %v767, %v771
          %vm774 = vcmask 60416
          %775 = vst.msk [vmem:[#allocation4] sm:$0xf] %vm774, %v773
          %s776 = scalar_lea.vmem [#allocation3], 4
          %v777 = vld [vmem:[%s776] sm:$0xf]
          %v778 = vrcp.pop %v777
          %v779 = vmul.f32 %v777, %v778
          %v780 = vsub.f32 2.0, %v779
          %v781 = vmul.f32 %v778, %v780
          %v782 = vld [vmem:[#allocation4] sm:$0xf]
          %784 = vset.pattern.permute.xlu0 0
          %785 = vperm.xlu0 %784, %v781
          %v786 = vpop.permute.xlu0 %785
          %v788 = vmul.f32 %v782, %v786
          %vm789 = vcmask 126016
          %790 = vst.msk [vmem:[#allocation4] sm:$0xf] %vm789, %v788
          %s791 = scalar_lea.vmem [#allocation3], 8
          %v792 = vld [vmem:[%s791] sm:$0xf]
          %v793 = vrcp.pop %v792
          %v794 = vmul.f32 %v792, %v793
          %v795 = vsub.f32 2.0, %v794
          %v796 = vmul.f32 %v793, %v795
          %v797 = vld [vmem:[#allocation4] sm:$0xf]
          %799 = vset.pattern.permute.xlu0 0
          %800 = vperm.xlu0 %799, %v796
          %v801 = vpop.permute.xlu0 %800
          %v803 = vmul.f32 %v797, %v801
          %vm804 = vcmask 191616
          %805 = vst.msk [vmem:[#allocation4] sm:$0xf] %vm804, %v803
          %s806 = scalar_lea.vmem [#allocation3], 12
          %v807 = vld [vmem:[%s806] sm:$0xf]
          %v808 = vrcp.pop %v807
          %v809 = vmul.f32 %v807, %v808
          %v810 = vsub.f32 2.0, %v809
          %v811 = vmul.f32 %v808, %v810
          %v812 = vld [vmem:[#allocation4] sm:$0xf]
          %814 = vset.pattern.permute.xlu0 0
          %815 = vperm.xlu0 %814, %v811
          %v816 = vpop.permute.xlu0 %815
          %v818 = vmul.f32 %v812, %v816
          %vm819 = vcmask 257216
          %820 = vst.msk [vmem:[#allocation4] sm:$0xf] %vm819, %v818
          %v821 = vld [vmem:[#allocation4] sm:$0xf]
          %v822 = vpack.c.bf16 %v821, %v821
          %v823 = vld [vmem:[%s5] sm:$0xf]
          %v824 = vld [vmem:[%s5 + $0x4] sm:$0xf]
          %v825 = vld [vmem:[%s5 + $0x8] sm:$0xf]
          %v826 = vld [vmem:[%s5 + $0xc] sm:$0xf]
          %v827 = vperm.slane %v352, 2
          %v832 = vunpack.c.l.b16 %v823
          %v833 = vunpack.c.l.b16 %v824
          %v834 = vunpack.c.l.b16 %v825
          %v835 = vunpack.c.l.b16 %v826
          %v836 = vpack.c.b16 %v833, %v832
          %v837 = vpack.c.b16 %v835, %v834
          %vm840 = vcmask 261120
          %v842 = vsel %vm840, %v822, 0
          %844 = vmatpush.bf16.msra.mxu0 0
          %845 = vmatpush.bf16.msra.mxu0 0
          %846 = vmatpush.bf16.msra.mxu0 0
          %847 = vmatpush.bf16.msra.mxu0 0
          %848 = vmatpush.bf16.msra.mxu0 0
          %849 = vmatpush.bf16.msra.mxu0 0
          %850 = vmatpush.bf16.msra.mxu0 %v837
          %851 = vmatpush.bf16.msra.mxu0 %v836
          %852 = vmatmul.bf16.gmra.mxu0 %v842
          %v853 = vpop.f32.mrf.mxu0
          %v854 = vadd.f32 %v827, %v853
          %v855 = vpop.f32.mrf.mxu0
          %856 = vdwg.mxu0
          %v857 = vld [vmem:[%s1] sm:$0xf]
          %v858 = vadd.f32 %v857, %v854
          %vm859 = vcmask 257024
          %v860 = vsel %vm859, %v858, 0.0
          %861 = vadd.xlane.f32.xlu0 %v860
          %v862 = vpop.xlane.xlu0 %861
          %v863 = vrcp.pop 32.0
          %v864 = vmul.f32 32.0, %v863
          %v865 = vsub.f32 1.0, %v864
          %v866 = vmul.f32 %v863, %v865
          %v867 = vadd.f32 %v863, %v866
          %vm868 = vweird.f32 %v863
          %v869 = vsel %vm868, %v863, %v867
          %v870 = vmul.f32 %v862, %v869
          %v871 = vsub.f32 %v858, %v870
          %v872 = vmul.f32 %v871, %v871
          %v873 = vsel %vm859, %v872, 0.0
          %874 = vadd.xlane.f32.xlu0 %v873
          %v875 = vpop.xlane.xlu0 %874
          %v876 = vmul.f32 %v875, %v869
          %v877 = vadd.f32 %v876, 1e-05
          %v878 = vrsqrt.pop %v877
          %v879 = vmul.f32 %v878, %v877
          %v880 = vmul.f32 %v879, %v878
          %v881 = vmul.f32 0.5, %v880
          %v882 = vsub.f32 1.5, %v881
          %v883 = vmul.f32 %v878, %v882
          %vm884 = vweird.f32 %v877
          %vm885 = vweird.f32 %v878
          %vm886 = vmor %vm884, %vm885
          %v887 = vsel %vm886, %v878, %v883
          %v888 = vmul.f32 %v871, %v887
          %v889 = vperm.slane %v352, 3
          %v890 = vmul.f32 %v888, %v889
          %v891 = vperm.slane %v352, 4
          %v892 = vadd.f32 %v890, %v891
          %v893 = vpack.c.bf16 %v892, %v892
          %v894 = vld [vmem:[%s6] sm:$0xf]
          %v895 = vld [vmem:[%s6 + $0x4] sm:$0xf]
          %v896 = vld [vmem:[%s6 + $0x8] sm:$0xf]
          %v897 = vld [vmem:[%s6 + $0xc] sm:$0xf]
          %v898 = vperm.slane %v352, 1
          %v903 = vunpack.c.l.b16 %v894
          %v904 = vunpack.c.l.b16 %v895
          %v905 = vunpack.c.l.b16 %v896
          %v906 = vunpack.c.l.b16 %v897
          %v907 = vpack.c.b16 %v904, %v903
          %v908 = vpack.c.b16 %v906, %v905
          %v912 = vsel %vm840, %v893, 0
          %914 = vmatpush.bf16.msra.mxu0 0
          %915 = vmatpush.bf16.msra.mxu0 0
          %916 = vmatpush.bf16.msra.mxu0 0
          %917 = vmatpush.bf16.msra.mxu0 0
          %918 = vmatpush.bf16.msra.mxu0 0
          %919 = vmatpush.bf16.msra.mxu0 0
          %920 = vmatpush.bf16.msra.mxu0 %v908
          %921 = vmatpush.bf16.msra.mxu0 %v907
          %922 = vmatmul.bf16.gmra.mxu0 %v912
          %v923 = vpop.f32.mrf.mxu0
          %v924 = vadd.f32 %v898, %v923
          %v925 = vpop.f32.mrf.mxu0
          %926 = vdwg.mxu0
          %v927 = vpack.c.bf16 %v924, %v924
          %vm928 = vcmask 517120
          %929 = vst.msk [vmem:[#allocation5] sm:$0x3] %vm928, %v927
        $region68: #{global_latent_attention_forward.1} parent=55 // pred_fallthru
          _
        %p930 = scmp.ge.s32.totalorder %s28, 1
        // Predicated region
        $region69: #{global_latent_attention_forward.1} parent=55 // pred_check
          %p931 = pneg %p930
        $region70: #{global_latent_attention_forward.1} parent=55 // pred_check_branch
          %933 = sbr.rel (%p931) target = $region72
        $region71: #{global_latent_attention_forward.1} parent=55 // pred_region
          %v934 = vld [vmem:[%s347] sm:$0xff]
          %v935 = vpack.c.bf16 %v934, %v934
          %v936 = vld [vmem:[%s4] sm:$0xf]
          %v937 = vld [vmem:[%s4 + $0x4] sm:$0xf]
          %v938 = vld [vmem:[%s4 + $0x8] sm:$0xf]
          %v939 = vld [vmem:[%s4 + $0xc] sm:$0xf]
          %v940 = vperm.slane %v352, 5
          %v945 = vunpack.c.l.b16 %v936
          %v946 = vunpack.c.l.b16 %v937
          %v947 = vunpack.c.l.b16 %v938
          %v948 = vunpack.c.l.b16 %v939
          %v949 = vpack.c.b16 %v946, %v945
          %v950 = vpack.c.b16 %v948, %v947
          %vm953 = vcmask 261120
          %v955 = vsel %vm953, %v935, 0
          %957 = vmatpush.bf16.msra.mxu0 0
          %958 = vmatpush.bf16.msra.mxu0 0
          %959 = vmatpush.bf16.msra.mxu0 0
          %960 = vmatpush.bf16.msra.mxu0 0
          %961 = vmatpush.bf16.msra.mxu0 0
          %962 = vmatpush.bf16.msra.mxu0 0
          %963 = vmatpush.bf16.msra.mxu0 %v950
          %964 = vmatpush.bf16.msra.mxu0 %v949
          %965 = vmatmul.bf16.gmra.mxu0 %v955
          %v966 = vpop.f32.mrf.mxu0
          %v967 = vadd.f32 %v940, %v966
          %v968 = vpop.f32.mrf.mxu0
          %969 = vdwg.mxu0
          %v970 = vpack.c.bf16 %v967, %v967
          %v971 = vld [vmem:[#allocation5] sm:$0x3]
          %vm972 = vcmask 64512
          %v974 = vsel %vm972, %v970, 0
          %v977 = vsel %vm972, %v971, 0
          %979 = vmatpush.bf16.xpose.msra.mxu0 0
          %980 = vmatpush.bf16.xpose.msra.mxu0 0
          %981 = vmatpush.bf16.xpose.msra.mxu0 0
          %982 = vmatpush.bf16.xpose.msra.mxu0 0
          %983 = vmatpush.bf16.xpose.msra.mxu0 0
          %984 = vmatpush.bf16.xpose.msra.mxu0 0
          %985 = vmatpush.bf16.xpose.msra.mxu0 0
          %986 = vmatpush.bf16.xpose.msra.mxu0 %v977
          %987 = vmatmul.bf16.gmra.mxu0 %v974
          %v988 = vpop.f32.mrf.mxu0
          %v989 = vadd.f32 0.0, %v988
          %v990 = vpop.f32.mrf.mxu0
          %991 = vdwg.mxu0
          %v992 = vmul.f32 %v989, 0.35355338
          %vm993 = vcmask 31744
          %v994 = vsel %vm993, %v992, -inf
          %995 = vmax.xlane.f32.xlu0 %v994
          %v996 = vpop.xlane.xlu0 %995
          %v997 = vsub.f32 %v992, %v996
          %v998 = vmul.f32 %v997, 1.442695
          %v999 = vpow.pop %v998
          %v1000 = vsel %vm993, %v999, 0.0
          %1001 = vadd.xlane.f32.xlu0 %v1000
          %v1002 = vpop.xlane.xlu0 %1001
          %v1003 = vrcp.pop %v1002
          %v1004 = vmul.f32 %v1002, %v1003
          %v1005 = vsub.f32 2.0, %v1004
          %v1006 = vmul.f32 %v1003, %v1005
          %v1007 = vmul.f32 %v999, %v1006
          %v1008 = vpack.c.bf16 %v1007, %v1007
          %1009 = vst [vmem:[#allocation1] ss:$4 sm:$0xff] %v971
          %v1010 = vld.sshfl [vmem:[#allocation1] sm:$0xff pattern:$0x73625140]
          %1012 = vrot.lane.b32.xlu0 %v1010, 96
          %v1013 = vpop.permute.xlu0 %1012
          %v1015 = vsel %vm993, %v1008, 0
          %vm1017 = vcmask 1041408
          %v1019 = vsel %vm1017, %v1013, 0
          %1021 = vmatpush.bf16.msra.mxu0 0
          %1022 = vmatpush.bf16.msra.mxu0 0
          %1023 = vmatpush.bf16.msra.mxu0 0
          %1024 = vmatpush.bf16.msra.mxu0 0
          %1025 = vmatpush.bf16.msra.mxu0 0
          %1026 = vmatpush.bf16.msra.mxu0 0
          %1027 = vmatpush.bf16.msra.mxu0 0
          %1028 = vmatpush.bf16.msra.mxu0 %v1019
          %1029 = vmatmul.bf16.gmra.mxu0 %v1015
          %v1030 = vpop.f32.mrf.mxu0
          %v1031 = vadd.f32 0.0, %v1030
          %v1032 = vpop.f32.mrf.mxu0
          %1033 = vdwg.mxu0
          %1034 = vst.msk [vmem:[#allocation6] sm:$0xff] %vm972, %v1031
          %v1036 = vunpack.c.l.b16 %v970
          %v1037 = vpack.c.b16 %v1036, %v1036
          %1038 = vrot.lane.b32.xlu0 %v1037, 120
          %v1039 = vpop.permute.xlu0 %1038
          %1040 = vst [vmem:[#allocation1] ss:$4 sm:$0xff] %v971
          %v1041 = vld.sshfl [vmem:[#allocation1] sm:$0xff pattern:$0x73625140]
          %1043 = vrot.lane.b32.xlu0 %v1041, 120
          %v1044 = vpop.permute.xlu0 %1043
          %v1046 = vsel %vm972, %v1039, 0
          %v1049 = vsel %vm972, %v1044, 0
          %1051 = vmatpush.bf16.xpose.msra.mxu0 0
          %1052 = vmatpush.bf16.xpose.msra.mxu0 0
          %1053 = vmatpush.bf16.xpose.msra.mxu0 0
          %1054 = vmatpush.bf16.xpose.msra.mxu0 0
          %1055 = vmatpush.bf16.xpose.msra.mxu0 0
          %1056 = vmatpush.bf16.xpose.msra.mxu0 0
          %1057 = vmatpush.bf16.xpose.msra.mxu0 0
          %1058 = vmatpush.bf16.xpose.msra.mxu0 %v1049
          %1059 = vmatmul.bf16.gmra.mxu0 %v1046
          %v1060 = vpop.f32.mrf.mxu0
          %v1061 = vadd.f32 0.0, %v1060
          %v1062 = vpop.f32.mrf.mxu0
          %1063 = vdwg.mxu0
          %v1064 = vmul.f32 %v1061, 0.35355338
          %v1065 = vsel %vm993, %v1064, -inf
          %1066 = vmax.xlane.f32.xlu0 %v1065
          %v1067 = vpop.xlane.xlu0 %1066
          %v1068 = vsub.f32 %v1064, %v1067
          %v1069 = vmul.f32 %v1068, 1.442695
          %v1070 = vpow.pop %v1069
          %v1071 = vsel %vm993, %v1070, 0.0
          %1072 = vadd.xlane.f32.xlu0 %v1071
          %v1073 = vpop.xlane.xlu0 %1072
          %v1074 = vrcp.pop %v1073
          %v1075 = vmul.f32 %v1073, %v1074
          %v1076 = vsub.f32 2.0, %v1075
          %v1077 = vmul.f32 %v1074, %v1076
          %v1078 = vmul.f32 %v1070, %v1077
          %v1079 = vpack.c.bf16 %v1078, %v1078
          %1080 = vst [vmem:[#allocation1] ss:$4 sm:$0xff] %v971
          %v1081 = vld.sshfl [vmem:[#allocation1] sm:$0xff pattern:$0x73625140]
          %1083 = vrot.lane.b32.xlu0 %v1081, 88
          %v1084 = vpop.permute.xlu0 %1083
          %v1086 = vsel %vm993, %v1079, 0
          %v1089 = vsel %vm1017, %v1084, 0
          %1091 = vmatpush.bf16.msra.mxu0 0
          %1092 = vmatpush.bf16.msra.mxu0 0
          %1093 = vmatpush.bf16.msra.mxu0 0
          %1094 = vmatpush.bf16.msra.mxu0 0
          %1095 = vmatpush.bf16.msra.mxu0 0
          %1096 = vmatpush.bf16.msra.mxu0 0
          %1097 = vmatpush.bf16.msra.mxu0 0
          %1098 = vmatpush.bf16.msra.mxu0 %v1089
          %1099 = vmatmul.bf16.gmra.mxu0 %v1086
          %v1100 = vpop.f32.mrf.mxu0
          %v1101 = vadd.f32 0.0, %v1100
          %v1102 = vpop.f32.mrf.mxu0
          %1103 = vdwg.mxu0
          %1105 = vrot.lane.b32.xlu0 %v1101, 8
          %v1106 = vpop.permute.xlu0 %1105
          %vm1108 = vcmask 130112
          %1109 = vst.msk [vmem:[#allocation6] sm:$0xff] %vm1108, %v1106
          %1110 = vrot.lane.b32.xlu0 %v1037, 112
          %v1111 = vpop.permute.xlu0 %1110
          %1112 = vst [vmem:[#allocation1] ss:$4 sm:$0xff] %v971
          %v1113 = vld.sshfl [vmem:[#allocation1] sm:$0xff pattern:$0x73625140]
          %1115 = vrot.lane.b32.xlu0 %v1113, 112
          %v1116 = vpop.permute.xlu0 %1115
          %v1118 = vsel %vm972, %v1111, 0
          %v1121 = vsel %vm972, %v1116, 0
          %1123 = vmatpush.bf16.xpose.msra.mxu0 0
          %1124 = vmatpush.bf16.xpose.msra.mxu0 0
          %1125 = vmatpush.bf16.xpose.msra.mxu0 0
          %1126 = vmatpush.bf16.xpose.msra.mxu0 0
          %1127 = vmatpush.bf16.xpose.msra.mxu0 0
          %1128 = vmatpush.bf16.xpose.msra.mxu0 0
          %1129 = vmatpush.bf16.xpose.msra.mxu0 0
          %1130 = vmatpush.bf16.xpose.msra.mxu0 %v1121
          %1131 = vmatmul.bf16.gmra.mxu0 %v1118
          %v1132 = vpop.f32.mrf.mxu0
          %v1133 = vadd.f32 0.0, %v1132
          %v1134 = vpop.f32.mrf.mxu0
          %1135 = vdwg.mxu0
          %v1136 = vmul.f32 %v1133, 0.35355338
          %v1137 = vsel %vm993, %v1136, -inf
          %1138 = vmax.xlane.f32.xlu0 %v1137
          %v1139 = vpop.xlane.xlu0 %1138
          %v1140 = vsub.f32 %v1136, %v1139
          %v1141 = vmul.f32 %v1140, 1.442695
          %v1142 = vpow.pop %v1141
          %v1143 = vsel %vm993, %v1142, 0.0
          %1144 = vadd.xlane.f32.xlu0 %v1143
          %v1145 = vpop.xlane.xlu0 %1144
          %v1146 = vrcp.pop %v1145
          %v1147 = vmul.f32 %v1145, %v1146
          %v1148 = vsub.f32 2.0, %v1147
          %v1149 = vmul.f32 %v1146, %v1148
          %v1150 = vmul.f32 %v1142, %v1149
          %v1151 = vpack.c.bf16 %v1150, %v1150
          %1152 = vst [vmem:[#allocation1] ss:$4 sm:$0xff] %v971
          %v1153 = vld.sshfl [vmem:[#allocation1] sm:$0xff pattern:$0x73625140]
          %1155 = vrot.lane.b32.xlu0 %v1153, 80
          %v1156 = vpop.permute.xlu0 %1155
          %v1158 = vsel %vm993, %v1151, 0
          %v1161 = vsel %vm1017, %v1156, 0
          %1163 = vmatpush.bf16.msra.mxu0 0
          %1164 = vmatpush.bf16.msra.mxu0 0
          %1165 = vmatpush.bf16.msra.mxu0 0
          %1166 = vmatpush.bf16.msra.mxu0 0
          %1167 = vmatpush.bf16.msra.mxu0 0
          %1168 = vmatpush.bf16.msra.mxu0 0
          %1169 = vmatpush.bf16.msra.mxu0 0
          %1170 = vmatpush.bf16.msra.mxu0 %v1161
          %1171 = vmatmul.bf16.gmra.mxu0 %v1158
          %v1172 = vpop.f32.mrf.mxu0
          %v1173 = vadd.f32 0.0, %v1172
          %v1174 = vpop.f32.mrf.mxu0
          %1175 = vdwg.mxu0
          %1177 = vrot.lane.b32.xlu0 %v1173, 16
          %v1178 = vpop.permute.xlu0 %1177
          %vm1180 = vcmask 195712
          %1181 = vst.msk [vmem:[#allocation6] sm:$0xff] %vm1180, %v1178
          %1182 = vrot.lane.b32.xlu0 %v1037, 104
          %v1183 = vpop.permute.xlu0 %1182
          %1184 = vst [vmem:[#allocation1] ss:$4 sm:$0xff] %v971
          %v1185 = vld.sshfl [vmem:[#allocation1] sm:$0xff pattern:$0x73625140]
          %1187 = vrot.lane.b32.xlu0 %v1185, 104
          %v1188 = vpop.permute.xlu0 %1187
          %v1190 = vsel %vm972, %v1183, 0
          %v1193 = vsel %vm972, %v1188, 0
          %1195 = vmatpush.bf16.xpose.msra.mxu0 0
          %1196 = vmatpush.bf16.xpose.msra.mxu0 0
          %1197 = vmatpush.bf16.xpose.msra.mxu0 0
          %1198 = vmatpush.bf16.xpose.msra.mxu0 0
          %1199 = vmatpush.bf16.xpose.msra.mxu0 0
          %1200 = vmatpush.bf16.xpose.msra.mxu0 0
          %1201 = vmatpush.bf16.xpose.msra.mxu0 0
          %1202 = vmatpush.bf16.xpose.msra.mxu0 %v1193
          %1203 = vmatmul.bf16.gmra.mxu0 %v1190
          %v1204 = vpop.f32.mrf.mxu0
          %v1205 = vadd.f32 0.0, %v1204
          %v1206 = vpop.f32.mrf.mxu0
          %1207 = vdwg.mxu0
          %v1208 = vmul.f32 %v1205, 0.35355338
          %v1209 = vsel %vm993, %v1208, -inf
          %1210 = vmax.xlane.f32.xlu0 %v1209
          %v1211 = vpop.xlane.xlu0 %1210
          %v1212 = vsub.f32 %v1208, %v1211
          %v1213 = vmul.f32 %v1212, 1.442695
          %v1214 = vpow.pop %v1213
          %v1215 = vsel %vm993, %v1214, 0.0
          %1216 = vadd.xlane.f32.xlu0 %v1215
          %v1217 = vpop.xlane.xlu0 %1216
          %v1218 = vrcp.pop %v1217
          %v1219 = vmul.f32 %v1217, %v1218
          %v1220 = vsub.f32 2.0, %v1219
          %v1221 = vmul.f32 %v1218, %v1220
          %v1222 = vmul.f32 %v1214, %v1221
          %v1223 = vpack.c.bf16 %v1222, %v1222
          %1224 = vst [vmem:[#allocation1] ss:$4 sm:$0xff] %v971
          %v1225 = vld.sshfl [vmem:[#allocation1] sm:$0xff pattern:$0x73625140]
          %1227 = vrot.lane.b32.xlu0 %v1225, 72
          %v1228 = vpop.permute.xlu0 %1227
          %v1230 = vsel %vm993, %v1223, 0
          %v1233 = vsel %vm1017, %v1228, 0
          %1235 = vmatpush.bf16.msra.mxu0 0
          %1236 = vmatpush.bf16.msra.mxu0 0
          %1237 = vmatpush.bf16.msra.mxu0 0
          %1238 = vmatpush.bf16.msra.mxu0 0
          %1239 = vmatpush.bf16.msra.mxu0 0
          %1240 = vmatpush.bf16.msra.mxu0 0
          %1241 = vmatpush.bf16.msra.mxu0 0
          %1242 = vmatpush.bf16.msra.mxu0 %v1233
          %1243 = vmatmul.bf16.gmra.mxu0 %v1230
          %v1244 = vpop.f32.mrf.mxu0
          %v1245 = vadd.f32 0.0, %v1244
          %v1246 = vpop.f32.mrf.mxu0
          %1247 = vdwg.mxu0
          %1249 = vrot.lane.b32.xlu0 %v1245, 24
          %v1250 = vpop.permute.xlu0 %1249
          %vm1252 = vcmask 261312
          %1253 = vst.msk [vmem:[#allocation6] sm:$0xff] %vm1252, %v1250
          %v1254 = vld [vmem:[#allocation6] sm:$0xff]
          %v1255 = vpack.c.bf16 %v1254, %v1254
          %v1256 = vld [vmem:[%s7] sm:$0xf]
          %v1257 = vld [vmem:[%s7 + $0x4] sm:$0xf]
          %v1258 = vld [vmem:[%s7 + $0x8] sm:$0xf]
          %v1259 = vld [vmem:[%s7 + $0xc] sm:$0xf]
          %v1260 = vperm.slane %v352, 6
          %v1265 = vunpack.c.l.b16 %v1256
          %v1266 = vunpack.c.l.b16 %v1257
          %v1267 = vunpack.c.l.b16 %v1258
          %v1268 = vunpack.c.l.b16 %v1259
          %v1269 = vpack.c.b16 %v1266, %v1265
          %v1270 = vpack.c.b16 %v1268, %v1267
          %v1274 = vsel %vm953, %v1255, 0
          %1276 = vmatpush.bf16.msra.mxu0 0
          %1277 = vmatpush.bf16.msra.mxu0 0
          %1278 = vmatpush.bf16.msra.mxu0 0
          %1279 = vmatpush.bf16.msra.mxu0 0
          %1280 = vmatpush.bf16.msra.mxu0 0
          %1281 = vmatpush.bf16.msra.mxu0 0
          %1282 = vmatpush.bf16.msra.mxu0 %v1270
          %1283 = vmatpush.bf16.msra.mxu0 %v1269
          %1284 = vmatmul.bf16.gmra.mxu0 %v1274
          %v1285 = vpop.f32.mrf.mxu0
          %v1286 = vadd.f32 %v1260, %v1285
          %v1287 = vpop.f32.mrf.mxu0
          %1288 = vdwg.mxu0
          %1289 = vst.msk [vmem:[%s343] sm:$0xff] %vm953, %v1286
        $region72: #{global_latent_attention_forward.1} parent=55 // pred_fallthru
          _
        %s1290 = sand.u32 %s245, 1
        %s1291 = scalar_lea.sflag [#allocation8], %s1290
        %s1292 = sand.u32 %s245, 1
        %s1293 = smul.addr %s1292, 8
        %s1294 = scalar_lea.vmem [#allocation7], %s1293
        // Predicated region
        $region73: #{global_latent_attention_forward.1} parent=55 // pred_check
          %p1295 = pneg %p255
        $region74: #{global_latent_attention_forward.1} parent=55 // pred_check_branch
          %1297 = sbr.rel (%p1295) target = $region76
        $region75: #{global_latent_attention_forward.1} parent=55 // pred_region
          %p1298 = scmp.lt.s32.totalorder %s28, 1
          %s1299 = ssub.s32 %s28, 1
          %s1300 = scalar_select %p1298, 0, %s1299
          %1302 = vsyncadd %s1291, 0
          %s1303 = sadd.s32 %s1300, %s27
          %s1304 = smul.addr %s1303, 8
          %s1305 = scalar_lea.hbm %s9, %s1304
          %s1307 = sshll.u32 %s1294, 4
          %s1308 = int_to_ptr.vmem [resolvable:$true] %s1307
          %s1309 = sshll.u32 %s1305, 4
          %s1310 = int_to_ptr.hbm [resolvable:$true] %s1309
          %1312 = dma.vmem_to_hbm [thread:$0]  %s1308, 128, %s1310, %s1291
        $region76: #{global_latent_attention_forward.1} parent=55 // pred_fallthru
          _
      $region56: #{global_latent_attention_forward.1} parent=5 // pred_fallthru
        _
      %p1313 = scmp.le.s32.totalorder 2, %s18
      // Predicated region
      $region77: #{global_latent_attention_forward.1} parent=5 // pred_check
        %p1314 = pneg %p1313
      $region78: #{global_latent_attention_forward.1} parent=5 // pred_check_branch
        %1316 = sbr.rel (%p1314) target = $region80
      $region79: #{global_latent_attention_forward.1} parent=5 // pred_region
        %s1317 = ssub.s32 %s18, 2
        // Predicated region
        $region81: #{global_latent_attention_forward.1} parent=79 // pred_check
          %p1318 = pneg %p261
        $region82: #{global_latent_attention_forward.1} parent=79 // pred_check_branch
          %1320 = sbr.rel (%p1318) target = $region84
        $region83: #{global_latent_attention_forward.1} parent=79 // pred_region
          %s1321 = sand.u32 %s246, 1
          %s1322 = scalar_lea.sflag [#allocation8], %s1321
          %s1323 = sand.u32 %s246, 1
          %s1324 = smul.addr %s1323, 8
          %s1325 = scalar_lea.vmem [#allocation7], %s1324
          %1327 = dma.done %s1322, 128
        $region84: #{global_latent_attention_forward.1} parent=79 // pred_fallthru
          _
      $region80: #{global_latent_attention_forward.1} parent=5 // pred_fallthru
        _
    $region6: #{global_latent_attention_forward.1} parent=1 // loop_footer
      %s22 = sadd.s32 1, %s18
    $region7: #{global_latent_attention_forward.1} parent=1 // loop_footer_branch
      %17 = sbr.rel target = $region3
    $region8: #{global_latent_attention_forward.1} parent=1 // loop_exit
      _
    %1328 = vsyncpa [#allocation8], 1
    %s1329 = scalar_lea.sflag [#allocation8], 1
    %1330 = vsyncpa %s1329, 1

// kernel: global_latent_attention_forward.1
$region0: #{global_latent_attention_forward.1}
  #allocation0 [shape = 'u32[]', space=smem, size = 0x4, offset = 0x4, fixed_abs, tag = 'smem constant byte address 0x4 - core index']
  #allocation1 [shape = 'u32[72,128]{1,0:T(1,128)}', space=vmem, size = 0x9000, scoped, tag = 'internal scratch']
  #allocation2 [shape = 'f32[4,4,1]{2,1,0:T(4,128)}', space=vmem, size = 0x2000, scoped, tag = 'scratch operand']
  #allocation3 [shape = 'f32[4,4,1]{2,1,0:T(4,128)}', space=vmem, size = 0x2000, scoped, tag = 'scratch operand']
  #allocation4 [shape = 'f32[4,32]{1,0:T(4,128)}', space=vmem, size = 0x800, scoped, tag = 'scratch operand']
  #allocation5 [shape = 'bf16[4,64]{1,0:T(4,128)(2,1)}', space=vmem, size = 0x400, scoped, tag = 'scratch operand']
  #allocation6 [shape = 'f32[8,32]{1,0:T(8,128)}', space=vmem, size = 0x1000, scoped, tag = 'scratch operand']
  %s0 = inlined_call_operand.vmem [shape: f32[2,8,32], index: 0, kind: input, shape index: {}]
  %s1 = inlined_call_operand.vmem [shape: f32[4,32], index: 1, kind: input, shape index: {}]
  %s2 = inlined_call_operand.vmem [shape: bf16[4,32], index: 2, kind: input, shape index: {}]
  %s3 = inlined_call_operand.vmem [shape: bf16[32,64], index: 3, kind: input, shape index: {}]
  %s4 = inlined_call_operand.vmem [shape: bf16[32,32], index: 4, kind: input, shape index: {}]
  %s5 = inlined_call_operand.vmem [shape: bf16[32,32], index: 5, kind: input, shape index: {}]
  %s6 = inlined_call_operand.vmem [shape: bf16[32,64], index: 6, kind: input, shape index: {}]
  %s7 = inlined_call_operand.vmem [shape: bf16[32,32], index: 7, kind: input, shape index: {}]
  %s8 = inlined_call_operand.vmem [shape: f32[8,64], index: 8, kind: input, shape index: {}]
  %s9 = inlined_call_operand.hbm [shape: f32[2,8,32], index: 9, kind: output, shape index: {}]
  %s10 = sld [smem:[#allocation0]]
  $region85: #{global_latent_attention_forward.1} parent=0
    _
  %s12 = ssub.s32 1, %s10
  %s13 = scalar_select 0, %s12, %s10
  $region1: #{global_latent_attention_forward.1} parent=0
    #allocation7 [shape = 'u8[8192]{0}', space=vmem, size = 0x2000, scoped, tag = 'output window, operand 0']
    #allocation8 [shape = 's32[2]{0}', space=sflag, size = 0x8, scoped, tag = 'scoped memory for global_latent_attention_forward.1']
    %14 = vsyncpa [#allocation8], 0
    %s15 = scalar_lea.sflag [#allocation8], 1
    %16 = vsyncpa %s15, 0
    loop: start=0, step=1, limit=6
    $region2: #{global_latent_attention_forward.1} parent=1 // loop_pre_header
      _
    $region3: #{global_latent_attention_forward.1} parent=1 // loop_header
      %s18 = sphi 0, %s22
      %p19 = scmp.ge.s32.totalorder %s18, 6
      %s25 = sphi 0, %s37
      %s26 = sphi 0, %s33
      %s27 = sphi 0, %s25
      %s28 = sphi 0, %s26
      %s29 = sphi 0, %s27
      %s30 = sphi 0, %s28
      %s40 = sphi 0, %s42
      %s43 = sphi 0, %s40
      %s44 = sphi 0, %s43
      %s60 = sphi 0, %s44
      %s64 = sphi 0, %s64
      %s66 = sphi 0, %s64
      %s67 = sphi 0, %s66
      %s81 = sphi 0, %s67
      %s85 = sphi 0, %s85
      %s87 = sphi 0, %s85
      %s88 = sphi 0, %s87
      %s102 = sphi 0, %s88
      %s106 = sphi 0, %s106
      %s108 = sphi 0, %s106
      %s109 = sphi 0, %s108
      %s123 = sphi 0, %s109
      %s127 = sphi 0, %s127
      %s129 = sphi 0, %s127
      %s130 = sphi 0, %s129
      %s144 = sphi 0, %s130
      %s148 = sphi 0, %s148
      %s150 = sphi 0, %s148
      %s151 = sphi 0, %s150
      %s165 = sphi 0, %s151
      %s169 = sphi 0, %s169
      %s171 = sphi 0, %s169
      %s172 = sphi 0, %s171
      %s186 = sphi 0, %s172
      %s190 = sphi 0, %s190
      %s192 = sphi 0, %s190
      %s193 = sphi 0, %s192
      %s207 = sphi 0, %s193
      %s211 = sphi 0, %s211
      %s213 = sphi 0, %s211
      %s214 = sphi 0, %s213
      %s228 = sphi 0, %s214
      %s242 = sphi 0, %s244
      %s245 = sphi 0, %s242
      %s246 = sphi 0, %s245
      %s262 = sphi 0, %s246
    $region4: #{global_latent_attention_forward.1} parent=1 // loop_header_branch
      %21 = sbr.rel (%p19) target = $region8
    $region5: #{global_latent_attention_forward.1} parent=1 // loop_body
      %s23 = ssub.s32 %s18, 1
      %s24 = ssub.s32 %s18, 2
      %s31 = sadd.s32 1, %s26
      %p32 = scmp.ge.s32.totalorder %s31, 2
      %s33 = scalar_select %p32, 0, %s31
      %s34 = sadd.s32 1, %s25
      %s35 = scalar_select %p32, %s34, %s25
      %p36 = scmp.ge.s32.totalorder %s35, 2
      %s37 = scalar_select %p36, 0, %s35
      %s38 = ssub.s32 %s25, %s37
      %p39 = scmp.eq.s32.totalorder %s38, 0
      %s41 = sadd.s32 %s40, 1
      %s42 = scalar_select %p39, %s40, %s41
      %p45 = pneg %p39
      %p46 = scmp.eq.s32.totalorder %s18, 3
      %p47 = por %p45, %p46
      %p48 = scmp.ne.s32.totalorder %s40, %s43
      %p49 = scmp.eq.s32.totalorder %s18, 0
      %p50 = por %p48, %p49
      %p51 = scmp.ne.s32.totalorder %s40, %s43
      %p52 = scmp.eq.s32.totalorder %s23, 3
      %p53 = por %p51, %p52
      %p54 = scmp.ne.s32.totalorder %s43, %s44
      %p55 = scmp.eq.s32.totalorder %s23, 0
      %p56 = por %p54, %p55
      %p57 = scmp.ne.s32.totalorder %s43, %s44
      %p58 = scmp.eq.s32.totalorder %s24, 3
      %p59 = por %p57, %p58
      %p61 = scmp.ne.s32.totalorder %s44, %s60
      %p62 = scmp.eq.s32.totalorder %s24, 0
      %p63 = por %p61, %p62
      %s65 = sadd.s32 %s64, 1
      %p68 = scmp.eq.s32.totalorder %s18, 3
      %p69 = scmp.ne.s32.totalorder %s64, %s66
      %p70 = scmp.eq.s32.totalorder %s18, 0
      %p71 = por %p69, %p70
      %p72 = scmp.ne.s32.totalorder %s64, %s66
      %p73 = scmp.eq.s32.totalorder %s23, 3
      %p74 = por %p72, %p73
      %p75 = scmp.ne.s32.totalorder %s66, %s67
      %p76 = scmp.eq.s32.totalorder %s23, 0
      %p77 = por %p75, %p76
      %p78 = scmp.ne.s32.totalorder %s66, %s67
      %p79 = scmp.eq.s32.totalorder %s24, 3
      %p80 = por %p78, %p79
      %p82 = scmp.ne.s32.totalorder %s67, %s81
      %p83 = scmp.eq.s32.totalorder %s24, 0
      %p84 = por %p82, %p83
      %s86 = sadd.s32 %s85, 1
      %p89 = scmp.eq.s32.totalorder %s18, 3
      %p90 = scmp.ne.s32.totalorder %s85, %s87
      %p91 = scmp.eq.s32.totalorder %s18, 0
      %p92 = por %p90, %p91
      %p93 = scmp.ne.s32.totalorder %s85, %s87
      %p94 = scmp.eq.s32.totalorder %s23, 3
      %p95 = por %p93, %p94
      %p96 = scmp.ne.s32.totalorder %s87, %s88
      %p97 = scmp.eq.s32.totalorder %s23, 0
      %p98 = por %p96, %p97
      %p99 = scmp.ne.s32.totalorder %s87, %s88
      %p100 = scmp.eq.s32.totalorder %s24, 3
      %p101 = por %p99, %p100
      %p103 = scmp.ne.s32.totalorder %s88, %s102
      %p104 = scmp.eq.s32.totalorder %s24, 0
      %p105 = por %p103, %p104
      %s107 = sadd.s32 %s106, 1
      %p110 = scmp.eq.s32.totalorder %s18, 3
      %p111 = scmp.ne.s32.totalorder %s106, %s108
      %p112 = scmp.eq.s32.totalorder %s18, 0
      %p113 = por %p111, %p112
      %p114 = scmp.ne.s32.totalorder %s106, %s108
      %p115 = scmp.eq.s32.totalorder %s23, 3
      %p116 = por %p114, %p115
      %p117 = scmp.ne.s32.totalorder %s108, %s109
      %p118 = scmp.eq.s32.totalorder %s23, 0
      %p119 = por %p117, %p118
      %p120 = scmp.ne.s32.totalorder %s108, %s109
      %p121 = scmp.eq.s32.totalorder %s24, 3
      %p122 = por %p120, %p121
      %p124 = scmp.ne.s32.totalorder %s109, %s123
      %p125 = scmp.eq.s32.totalorder %s24, 0
      %p126 = por %p124, %p125
      %s128 = sadd.s32 %s127, 1
      %p131 = scmp.eq.s32.totalorder %s18, 3
      %p132 = scmp.ne.s32.totalorder %s127, %s129
      %p133 = scmp.eq.s32.totalorder %s18, 0
      %p134 = por %p132, %p133
      %p135 = scmp.ne.s32.totalorder %s127, %s129
      %p136 = scmp.eq.s32.totalorder %s23, 3
      %p137 = por %p135, %p136
      %p138 = scmp.ne.s32.totalorder %s129, %s130
      %p139 = scmp.eq.s32.totalorder %s23, 0
      %p140 = por %p138, %p139
      %p141 = scmp.ne.s32.totalorder %s129, %s130
      %p142 = scmp.eq.s32.totalorder %s24, 3
      %p143 = por %p141, %p142
      %p145 = scmp.ne.s32.totalorder %s130, %s144
      %p146 = scmp.eq.s32.totalorder %s24, 0
      %p147 = por %p145, %p146
      %s149 = sadd.s32 %s148, 1
      %p152 = scmp.eq.s32.totalorder %s18, 3
      %p153 = scmp.ne.s32.totalorder %s148, %s150
      %p154 = scmp.eq.s32.totalorder %s18, 0
      %p155 = por %p153, %p154
      %p156 = scmp.ne.s32.totalorder %s148, %s150
      %p157 = scmp.eq.s32.totalorder %s23, 3
      %p158 = por %p156, %p157
      %p159 = scmp.ne.s32.totalorder %s150, %s151
      %p160 = scmp.eq.s32.totalorder %s23, 0
      %p161 = por %p159, %p160
      %p162 = scmp.ne.s32.totalorder %s150, %s151
      %p163 = scmp.eq.s32.totalorder %s24, 3
      %p164 = por %p162, %p163
      %p166 = scmp.ne.s32.totalorder %s151, %s165
      %p167 = scmp.eq.s32.totalorder %s24, 0
      %p168 = por %p166, %p167
      %s170 = sadd.s32 %s169, 1
      %p173 = scmp.eq.s32.totalorder %s18, 3
      %p174 = scmp.ne.s32.totalorder %s169, %s171
      %p175 = scmp.eq.s32.totalorder %s18, 0
      %p176 = por %p174, %p175
      %p177 = scmp.ne.s32.totalorder %s169, %s171
      %p178 = scmp.eq.s32.totalorder %s23, 3
      %p179 = por %p177, %p178
      %p180 = scmp.ne.s32.totalorder %s171, %s172
      %p181 = scmp.eq.s32.totalorder %s23, 0
      %p182 = por %p180, %p181
      %p183 = scmp.ne.s32.totalorder %s171, %s172
      %p184 = scmp.eq.s32.totalorder %s24, 3
      %p185 = por %p183, %p184
      %p187 = scmp.ne.s32.totalorder %s172, %s186
      %p188 = scmp.eq.s32.totalorder %s24, 0
      %p189 = por %p187, %p188
      %s191 = sadd.s32 %s190, 1
      %p194 = scmp.eq.s32.totalorder %s18, 3
      %p195 = scmp.ne.s32.totalorder %s190, %s192
      %p196 = scmp.eq.s32.totalorder %s18, 0
      %p197 = por %p195, %p196
      %p198 = scmp.ne.s32.totalorder %s190, %s192
      %p199 = scmp.eq.s32.totalorder %s23, 3
      %p200 = por %p198, %p199
      %p201 = scmp.ne.s32.totalorder %s192, %s193
      %p202 = scmp.eq.s32.totalorder %s23, 0
      %p203 = por %p201, %p202
      %p204 = scmp.ne.s32.totalorder %s192, %s193
      %p205 = scmp.eq.s32.totalorder %s24, 3
      %p206 = por %p204, %p205
      %p208 = scmp.ne.s32.totalorder %s193, %s207
      %p209 = scmp.eq.s32.totalorder %s24, 0
      %p210 = por %p208, %p209
      %s212 = sadd.s32 %s211, 1
      %p215 = scmp.eq.s32.totalorder %s18, 3
      %p216 = scmp.ne.s32.totalorder %s211, %s213
      %p217 = scmp.eq.s32.totalorder %s18, 0
      %p218 = por %p216, %p217
      %p219 = scmp.ne.s32.totalorder %s211, %s213
      %p220 = scmp.eq.s32.totalorder %s23, 3
      %p221 = por %p219, %p220
      %p222 = scmp.ne.s32.totalorder %s213, %s214
      %p223 = scmp.eq.s32.totalorder %s23, 0
      %p224 = por %p222, %p223
      %p225 = scmp.ne.s32.totalorder %s213, %s214
      %p226 = scmp.eq.s32.totalorder %s24, 3
      %p227 = por %p225, %p226
      %p229 = scmp.ne.s32.totalorder %s214, %s228
      %p230 = scmp.eq.s32.totalorder %s24, 0
      %p231 = por %p229, %p230
      %p232 = scmp.lt.s32.totalorder %s26, 1
      %s233 = ssub.s32 %s26, 1
      %s234 = scalar_select %p232, 0, %s233
      %p235 = scmp.lt.s32.totalorder %s33, 1
      %s236 = ssub.s32 %s33, 1
      %s237 = scalar_select %p235, 0, %s236
      %s238 = ssub.s32 %s25, %s37
      %s239 = ssub.s32 %s234, %s237
      %s240 = sor.u32 %s238, %s239
      %p241 = scmp.eq.s32.totalorder %s240, 0
      %s243 = sadd.s32 %s242, 1
      %s244 = scalar_select %p241, %s242, %s243
      %p247 = pneg %p241
      %p248 = scmp.eq.s32.totalorder %s18, 3
      %p249 = por %p247, %p248
      %p250 = scmp.ne.s32.totalorder %s242, %s245
      %p251 = scmp.eq.s32.totalorder %s18, 0
      %p252 = por %p250, %p251
      %p253 = scmp.ne.s32.totalorder %s242, %s245
      %p254 = scmp.eq.s32.totalorder %s23, 3
      %p255 = por %p253, %p254
      %p256 = scmp.ne.s32.totalorder %s245, %s246
      %p257 = scmp.eq.s32.totalorder %s23, 0
      %p258 = por %p256, %p257
      %p259 = scmp.ne.s32.totalorder %s245, %s246
      %p260 = scmp.eq.s32.totalorder %s24, 3
      %p261 = por %p259, %p260
      %p263 = scmp.ne.s32.totalorder %s246, %s262
      %p264 = scmp.eq.s32.totalorder %s24, 0
      %p265 = por %p263, %p264
      %p266 = scmp.le.s32.totalorder 1, %s18
      %p267 = scmp.lt.s32.totalorder %s18, 5
      %p268 = pnand %p266, %p267
      %p269 = pneg %p268
      // Predicated region
      $region9: #{global_latent_attention_forward.1} parent=5 // pred_check
        _
      $region10: #{global_latent_attention_forward.1} parent=5 // pred_check_branch
        %271 = sbr.rel (%p268) target = $region12
      $region11: #{global_latent_attention_forward.1} parent=5 // pred_region
        %s272 = ssub.s32 %s18, 1
        // Predicated region
        $region13: #{global_latent_attention_forward.1} parent=11 // pred_check
          %p273 = pneg %p77
        $region14: #{global_latent_attention_forward.1} parent=11 // pred_check_branch
          %275 = sbr.rel (%p273) target = $region16
        $region15: #{global_latent_attention_forward.1} parent=11 // pred_region
          _
        $region16: #{global_latent_attention_forward.1} parent=11 // pred_fallthru
          _
        // Predicated region
        $region17: #{global_latent_attention_forward.1} parent=11 // pred_check
          %p276 = pneg %p98
        $region18: #{global_latent_attention_forward.1} parent=11 // pred_check_branch
          %278 = sbr.rel (%p276) target = $region20
        $region19: #{global_latent_attention_forward.1} parent=11 // pred_region
          _
        $region20: #{global_latent_attention_forward.1} parent=11 // pred_fallthru
          _
        // Predicated region
        $region21: #{global_latent_attention_forward.1} parent=11 // pred_check
          %p279 = pneg %p119
        $region22: #{global_latent_attention_forward.1} parent=11 // pred_check_branch
          %281 = sbr.rel (%p279) target = $region24
        $region23: #{global_latent_attention_forward.1} parent=11 // pred_region
          _
        $region24: #{global_latent_attention_forward.1} parent=11 // pred_fallthru
          _
        // Predicated region
        $region25: #{global_latent_attention_forward.1} parent=11 // pred_check
          %p282 = pneg %p140
        $region26: #{global_latent_attention_forward.1} parent=11 // pred_check_branch
          %284 = sbr.rel (%p282) target = $region28
        $region27: #{global_latent_attention_forward.1} parent=11 // pred_region
          _
        $region28: #{global_latent_attention_forward.1} parent=11 // pred_fallthru
          _
        // Predicated region
        $region29: #{global_latent_attention_forward.1} parent=11 // pred_check
          %p285 = pneg %p161
        $region30: #{global_latent_attention_forward.1} parent=11 // pred_check_branch
          %287 = sbr.rel (%p285) target = $region32
        $region31: #{global_latent_attention_forward.1} parent=11 // pred_region
          _
        $region32: #{global_latent_attention_forward.1} parent=11 // pred_fallthru
          _
        // Predicated region
        $region33: #{global_latent_attention_forward.1} parent=11 // pred_check
          %p288 = pneg %p182
        $region34: #{global_latent_attention_forward.1} parent=11 // pred_check_branch
          %290 = sbr.rel (%p288) target = $region36
        $region35: #{global_latent_attention_forward.1} parent=11 // pred_region
          _
        $region36: #{global_latent_attention_forward.1} parent=11 // pred_fallthru
          _
        // Predicated region
        $region37: #{global_latent_attention_forward.1} parent=11 // pred_check
          %p291 = pneg %p203
        $region38: #{global_latent_attention_forward.1} parent=11 // pred_check_branch
          %293 = sbr.rel (%p291) target = $region40
        $region39: #{global_latent_attention_forward.1} parent=11 // pred_region
          _
        $region40: #{global_latent_attention_forward.1} parent=11 // pred_fallthru
          _
        // Predicated region
        $region41: #{global_latent_attention_forward.1} parent=11 // pred_check
          %p294 = pneg %p224
        $region42: #{global_latent_attention_forward.1} parent=11 // pred_check_branch
          %296 = sbr.rel (%p294) target = $region44
        $region43: #{global_latent_attention_forward.1} parent=11 // pred_region
          _
        $region44: #{global_latent_attention_forward.1} parent=11 // pred_fallthru
          _
      $region12: #{global_latent_attention_forward.1} parent=5 // pred_fallthru
        _
      %p297 = scmp.lt.s32.totalorder %s18, 4
      // Predicated region
      $region45: #{global_latent_attention_forward.1} parent=5 // pred_check
        %p298 = pneg %p297
      $region46: #{global_latent_attention_forward.1} parent=5 // pred_check_branch
        %300 = sbr.rel (%p298) target = $region48
      $region47: #{global_latent_attention_forward.1} parent=5 // pred_region
        // Predicated region
        $region49: #{global_latent_attention_forward.1} parent=47 // pred_check
          %p301 = pneg %p50
        $region50: #{global_latent_attention_forward.1} parent=47 // pred_check_branch
          %303 = sbr.rel (%p301) target = $region52
        $region51: #{global_latent_attention_forward.1} parent=47 // pred_region
          %p304 = scmp.lt.s32.totalorder %s25, 1
          %s305 = scalar_select %p304, %s25, 1
          %s306 = smul.addr %s305, 8
          %s307 = scalar_lea.vmem %s0, %s306
        $region52: #{global_latent_attention_forward.1} parent=47 // pred_fallthru
          _
      $region48: #{global_latent_attention_forward.1} parent=5 // pred_fallthru
        _
      %p308 = scmp.le.s32.totalorder 1, %s18
      %p309 = scmp.lt.s32.totalorder %s18, 5
      %p310 = pnand %p308, %p309
      %p311 = pneg %p310
      // Predicated region
      $region53: #{global_latent_attention_forward.1} parent=5 // pred_check
        _
      $region54: #{global_latent_attention_forward.1} parent=5 // pred_check_branch
        %313 = sbr.rel (%p310) target = $region56
      $region55: #{global_latent_attention_forward.1} parent=5 // pred_region
        %s314 = ssub.s32 %s18, 1
        %p315 = scmp.lt.s32.totalorder %s27, 1
        %s316 = scalar_select %p315, %s27, 1
        %s317 = smul.addr %s316, 8
        %s318 = scalar_lea.vmem %s0, %s317
        %p319 = pneg %p56
        %p320 = pneg %p53
        %p321 = pneg %p77
        %p322 = pneg %p74
        %p323 = pneg %p98
        %p324 = pneg %p95
        %p325 = pneg %p119
        %p326 = pneg %p116
        %p327 = pneg %p140
        %p328 = pneg %p137
        %p329 = pneg %p161
        %p330 = pneg %p158
        %p331 = pneg %p182
        %p332 = pneg %p179
        %p333 = pneg %p203
        %p334 = pneg %p200
        %p335 = pneg %p224
        %p336 = pneg %p221
        %p337 = pneg %p258
        %p338 = pneg %p255
        %s339 = sand.u32 %s245, 1
        %s340 = scalar_lea.sflag [#allocation8], %s339
        %s341 = sand.u32 %s245, 1
        %s342 = smul.addr %s341, 8
        %s343 = scalar_lea.vmem [#allocation7], %s342
        %p344 = scmp.lt.s32.totalorder %s27, 1
        %s345 = scalar_select %p344, %s27, 1
        %s346 = smul.addr %s345, 8
        %s347 = scalar_lea.vmem %s0, %s346
        %p348 = scmp.lt.s32.totalorder %s28, 1
        %s349 = ssub.s32 %s28, 1
        %s350 = scalar_select %p348, 0, %s349
        %v352 = vld [vmem:[%s8] sm:$0xff]
        %p353 = scmp.eq.s32.totalorder %s28, 0
        // Predicated region
        $region57: #{global_latent_attention_forward.1} parent=55 // pred_check
          %p354 = pneg %p353
        $region58: #{global_latent_attention_forward.1} parent=55 // pred_check_branch
          %356 = sbr.rel (%p354) target = $region60
        $region59: #{global_latent_attention_forward.1} parent=55 // pred_region
          %vm357 = vcmask 3072
          %358 = vst.msk [vmem:[#allocation2] sm:$0xf] %vm357, -inf
          %359 = vst.msk [vmem:[#allocation2 + $0x4] sm:$0xf] %vm357, -inf
          %360 = vst.msk [vmem:[#allocation2 + $0x8] sm:$0xf] %vm357, -inf
          %361 = vst.msk [vmem:[#allocation2 + $0xc] sm:$0xf] %vm357, -inf
          %362 = vst.msk [vmem:[#allocation3] sm:$0xf] %vm357, 0.0
          %363 = vst.msk [vmem:[#allocation3 + $0x4] sm:$0xf] %vm357, 0.0
          %364 = vst.msk [vmem:[#allocation3 + $0x8] sm:$0xf] %vm357, 0.0
          %365 = vst.msk [vmem:[#allocation3 + $0xc] sm:$0xf] %vm357, 0.0
          %vm366 = vcmask 257024
          %367 = vst.msk [vmem:[#allocation4] sm:$0xf] %vm366, 0.0
        $region60: #{global_latent_attention_forward.1} parent=55 // pred_fallthru
          _
        %p368 = scmp.lt.s32.totalorder %s28, 1
        // Predicated region
        $region61: #{global_latent_attention_forward.1} parent=55 // pred_check
          %p369 = pneg %p368
        $region62: #{global_latent_attention_forward.1} parent=55 // pred_check_branch
          %371 = sbr.rel (%p369) target = $region64
        $region63: #{global_latent_attention_forward.1} parent=55 // pred_region
          %v372 = vld [vmem:[%s347] sm:$0xff]
          %v373 = vpack.c.bf16 %v372, %v372
          %v374 = vld [vmem:[%s3] sm:$0xf]
          %v375 = vld [vmem:[%s3 + $0x4] sm:$0xf]
          %v376 = vld [vmem:[%s3 + $0x8] sm:$0xf]
          %v377 = vld [vmem:[%s3 + $0xc] sm:$0xf]
          %v378 = vperm.slane %v352, 0
          %v383 = vunpack.c.l.b16 %v374
          %v384 = vunpack.c.l.b16 %v375
          %v385 = vunpack.c.l.b16 %v376
          %v386 = vunpack.c.l.b16 %v377
          %v387 = vpack.c.b16 %v384, %v383
          %v388 = vpack.c.b16 %v386, %v385
          %vm391 = vcmask 261120
          %v393 = vsel %vm391, %v373, 0
          %395 = vmatpush.bf16.msra.mxu0 0
          %396 = vmatpush.bf16.msra.mxu0 0
          %397 = vmatpush.bf16.msra.mxu0 0
          %398 = vmatpush.bf16.msra.mxu0 0
          %399 = vmatpush.bf16.msra.mxu0 0
          %400 = vmatpush.bf16.msra.mxu0 0
          %401 = vmatpush.bf16.msra.mxu0 %v388
          %402 = vmatpush.bf16.msra.mxu0 %v387
          %403 = vmatmul.bf16.gmra.mxu0 %v393
          %v404 = vpop.f32.mrf.mxu0
          %v405 = vadd.f32 %v378, %v404
          %v406 = vpop.f32.mrf.mxu0
          %407 = vdwg.mxu0
          %v408 = vpack.c.bf16 %v405, %v405
          %v409 = vld [vmem:[%s2] sm:$0x3]
          %vm410 = vcmask 64512
          %v412 = vsel %vm410, %v409, 0
          %v415 = vsel %vm410, %v408, 0
          %417 = vmatpush.bf16.xpose.msra.mxu0 0
          %418 = vmatpush.bf16.xpose.msra.mxu0 0
          %419 = vmatpush.bf16.xpose.msra.mxu0 0
          %420 = vmatpush.bf16.xpose.msra.mxu0 0
          %421 = vmatpush.bf16.xpose.msra.mxu0 0
          %422 = vmatpush.bf16.xpose.msra.mxu0 0
          %423 = vmatpush.bf16.xpose.msra.mxu0 0
          %424 = vmatpush.bf16.xpose.msra.mxu0 %v415
          %425 = vmatmul.bf16.gmra.mxu0 %v412
          %v426 = vpop.f32.mrf.mxu0
          %v427 = vadd.f32 0.0, %v426
          %v428 = vpop.f32.mrf.mxu0
          %429 = vdwg.mxu0
          %v430 = vmul.f32 %v427, 0.35355338
          %v431 = vld [vmem:[#allocation2] sm:$0xf]
          %vm432 = vcmask 60416
          %v433 = vsel %vm432, %v430, -inf
          %434 = vmax.xlane.f32.xlu0 %v433
          %v435 = vpop.xlane.xlu0 %434
          %v436 = vmax.f32 %v431, %v435
          %v437 = vsub.f32 %v431, %v436
          %v438 = vmul.f32 %v437, 1.442695
          %v439 = vpow.pop %v438
          %441 = vset.pattern.permute.xlu0 0
          %442 = vperm.xlu0 %441, %v436
          %v443 = vpop.permute.xlu0 %442
          %v445 = vsub.f32 %v430, %v443
          %v446 = vmul.f32 %v445, 1.442695
          %v447 = vpow.pop %v446
          %v448 = vld [vmem:[#allocation3] sm:$0xf]
          %v449 = vmul.f32 %v439, %v448
          %v450 = vsel %vm432, %v447, 0.0
          %451 = vadd.xlane.f32.xlu0 %v450
          %v452 = vpop.xlane.xlu0 %451
          %v453 = vadd.f32 %v449, %v452
          %vm454 = vcmask 3072
          %455 = vst.msk [vmem:[#allocation3] sm:$0xf] %vm454, %v453
          %v456 = vld [vmem:[#allocation4] sm:$0xf]
          %458 = vset.pattern.permute.xlu0 0
          %459 = vperm.xlu0 %458, %v439
          %v460 = vpop.permute.xlu0 %459
          %v462 = vmul.f32 %v460, %v456
          %v463 = vpack.c.bf16 %v447, %v447
          %v465 = vunpack.c.l.b16 %v408
          %v466 = vpack.c.b16 %v465, %v465
          %467 = vrot.lane.b32.xlu0 %v466, 96
          %v468 = vpop.permute.xlu0 %467
          %v470 = vsel %vm410, %v463, 0
          %vm472 = vcmask 1043456
          %v474 = vsel %vm472, %v468, 0
          %476 = vmatpush.bf16.msra.mxu0 0
          %477 = vmatpush.bf16.msra.mxu0 0
          %478 = vmatpush.bf16.msra.mxu0 0
          %479 = vmatpush.bf16.msra.mxu0 0
          %480 = vmatpush.bf16.msra.mxu0 0
          %481 = vmatpush.bf16.msra.mxu0 0
          %482 = vmatpush.bf16.msra.mxu0 0
          %483 = vmatpush.bf16.msra.mxu0 %v474
          %484 = vmatmul.bf16.gmra.mxu0 %v470
          %v485 = vpop.f32.mrf.mxu0
          %v486 = vadd.f32 0.0, %v485
          %v487 = vpop.f32.mrf.mxu0
          %488 = vdwg.mxu0
          %v489 = vadd.f32 %v462, %v486
          %490 = vst.msk [vmem:[#allocation4] sm:$0xf] %vm432, %v489
          %491 = vst.msk [vmem:[#allocation2] sm:$0xf] %vm454, %v436
          %492 = vst [vmem:[#allocation1] ss:$4 sm:$0xff] %v409
          %v493 = vld.sshfl [vmem:[#allocation1] sm:$0xff pattern:$0x73625140]
          %495 = vrot.lane.b32.xlu0 %v493, 120
          %v496 = vpop.permute.xlu0 %495
          %497 = vrot.lane.b32.xlu0 %v466, 120
          %v498 = vpop.permute.xlu0 %497
          %v500 = vsel %vm410, %v496, 0
          %v503 = vsel %vm410, %v498, 0
          %505 = vmatpush.bf16.xpose.msra.mxu0 0
          %506 = vmatpush.bf16.xpose.msra.mxu0 0
          %507 = vmatpush.bf16.xpose.msra.mxu0 0
          %508 = vmatpush.bf16.xpose.msra.mxu0 0
          %509 = vmatpush.bf16.xpose.msra.mxu0 0
          %510 = vmatpush.bf16.xpose.msra.mxu0 0
          %511 = vmatpush.bf16.xpose.msra.mxu0 0
          %512 = vmatpush.bf16.xpose.msra.mxu0 %v503
          %513 = vmatmul.bf16.gmra.mxu0 %v500
          %v514 = vpop.f32.mrf.mxu0
          %v515 = vadd.f32 0.0, %v514
          %v516 = vpop.f32.mrf.mxu0
          %517 = vdwg.mxu0
          %v518 = vmul.f32 %v515, 0.35355338
          %s519 = scalar_lea.vmem [#allocation2], 4
          %v520 = vld [vmem:[%s519] sm:$0xf]
          %v521 = vsel %vm432, %v518, -inf
          %522 = vmax.xlane.f32.xlu0 %v521
          %v523 = vpop.xlane.xlu0 %522
          %v524 = vmax.f32 %v520, %v523
          %v525 = vsub.f32 %v520, %v524
          %v526 = vmul.f32 %v525, 1.442695
          %v527 = vpow.pop %v526
          %529 = vset.pattern.permute.xlu0 0
          %530 = vperm.xlu0 %529, %v524
          %v531 = vpop.permute.xlu0 %530
          %v533 = vsub.f32 %v518, %v531
          %v534 = vmul.f32 %v533, 1.442695
          %v535 = vpow.pop %v534
          %s536 = scalar_lea.vmem [#allocation3], 4
          %v537 = vld [vmem:[%s536] sm:$0xf]
          %v538 = vmul.f32 %v527, %v537
          %v539 = vsel %vm432, %v535, 0.0
          %540 = vadd.xlane.f32.xlu0 %v539
          %v541 = vpop.xlane.xlu0 %540
          %v542 = vadd.f32 %v538, %v541
          %543 = vst.msk [vmem:[%s536] sm:$0xf] %vm454, %v542
          %v544 = vld [vmem:[#allocation4] sm:$0xf]
          %546 = vset.pattern.permute.xlu0 0
          %547 = vperm.xlu0 %546, %v527
          %v548 = vpop.permute.xlu0 %547
          %v550 = vmul.f32 %v548, %v544
          %v551 = vpack.c.bf16 %v535, %v535
          %552 = vrot.lane.b32.xlu0 %v466, 88
          %v553 = vpop.permute.xlu0 %552
          %v555 = vsel %vm410, %v551, 0
          %v558 = vsel %vm472, %v553, 0
          %560 = vmatpush.bf16.msra.mxu0 0
          %561 = vmatpush.bf16.msra.mxu0 0
          %562 = vmatpush.bf16.msra.mxu0 0
          %563 = vmatpush.bf16.msra.mxu0 0
          %564 = vmatpush.bf16.msra.mxu0 0
          %565 = vmatpush.bf16.msra.mxu0 0
          %566 = vmatpush.bf16.msra.mxu0 0
          %567 = vmatpush.bf16.msra.mxu0 %v558
          %568 = vmatmul.bf16.gmra.mxu0 %v555
          %v569 = vpop.f32.mrf.mxu0
          %v570 = vadd.f32 0.0, %v569
          %v571 = vpop.f32.mrf.mxu0
          %572 = vdwg.mxu0
          %574 = vrot.lane.b32.xlu0 %v570, 8
          %v575 = vpop.permute.xlu0 %574
          %v577 = vadd.f32 %v550, %v575
          %vm578 = vcmask 126016
          %579 = vst.msk [vmem:[#allocation4] sm:$0xf] %vm578, %v577
          %580 = vst.msk [vmem:[%s519] sm:$0xf] %vm454, %v524
          %581 = vst [vmem:[#allocation1] ss:$4 sm:$0xff] %v409
          %v582 = vld.sshfl [vmem:[#allocation1] sm:$0xff pattern:$0x73625140]
          %584 = vrot.lane.b32.xlu0 %v582, 112
          %v585 = vpop.permute.xlu0 %584
          %586 = vrot.lane.b32.xlu0 %v466, 112
          %v587 = vpop.permute.xlu0 %586
          %v589 = vsel %vm410, %v585, 0
          %v592 = vsel %vm410, %v587, 0
          %594 = vmatpush.bf16.xpose.msra.mxu0 0
          %595 = vmatpush.bf16.xpose.msra.mxu0 0
          %596 = vmatpush.bf16.xpose.msra.mxu0 0
          %597 = vmatpush.bf16.xpose.msra.mxu0 0
          %598 = vmatpush.bf16.xpose.msra.mxu0 0
          %599 = vmatpush.bf16.xpose.msra.mxu0 0
          %600 = vmatpush.bf16.xpose.msra.mxu0 0
          %601 = vmatpush.bf16.xpose.msra.mxu0 %v592
          %602 = vmatmul.bf16.gmra.mxu0 %v589
          %v603 = vpop.f32.mrf.mxu0
          %v604 = vadd.f32 0.0, %v603
          %v605 = vpop.f32.mrf.mxu0
          %606 = vdwg.mxu0
          %v607 = vmul.f32 %v604, 0.35355338
          %s608 = scalar_lea.vmem [#allocation2], 8
          %v609 = vld [vmem:[%s608] sm:$0xf]
          %v610 = vsel %vm432, %v607, -inf
          %611 = vmax.xlane.f32.xlu0 %v610
          %v612 = vpop.xlane.xlu0 %611
          %v613 = vmax.f32 %v609, %v612
          %v614 = vsub.f32 %v609, %v613
          %v615 = vmul.f32 %v614, 1.442695
          %v616 = vpow.pop %v615
          %618 = vset.pattern.permute.xlu0 0
          %619 = vperm.xlu0 %618, %v613
          %v620 = vpop.permute.xlu0 %619
          %v622 = vsub.f32 %v607, %v620
          %v623 = vmul.f32 %v622, 1.442695
          %v624 = vpow.pop %v623
          %s625 = scalar_lea.vmem [#allocation3], 8
          %v626 = vld [vmem:[%s625] sm:$0xf]
          %v627 = vmul.f32 %v616, %v626
          %v628 = vsel %vm432, %v624, 0.0
          %629 = vadd.xlane.f32.xlu0 %v628
          %v630 = vpop.xlane.xlu0 %629
          %v631 = vadd.f32 %v627, %v630
          %632 = vst.msk [vmem:[%s625] sm:$0xf] %vm454, %v631
          %v633 = vld [vmem:[#allocation4] sm:$0xf]
          %635 = vset.pattern.permute.xlu0 0
          %636 = vperm.xlu0 %635, %v616
          %v637 = vpop.permute.xlu0 %636
          %v639 = vmul.f32 %v637, %v633
          %v640 = vpack.c.bf16 %v624, %v624
          %641 = vrot.lane.b32.xlu0 %v466, 80
          %v642 = vpop.permute.xlu0 %641
          %v644 = vsel %vm410, %v640, 0
          %v647 = vsel %vm472, %v642, 0
          %649 = vmatpush.bf16.msra.mxu0 0
          %650 = vmatpush.bf16.msra.mxu0 0
          %651 = vmatpush.bf16.msra.mxu0 0
          %652 = vmatpush.bf16.msra.mxu0 0
          %653 = vmatpush.bf16.msra.mxu0 0
          %654 = vmatpush.bf16.msra.mxu0 0
          %655 = vmatpush.bf16.msra.mxu0 0
          %656 = vmatpush.bf16.msra.mxu0 %v647
          %657 = vmatmul.bf16.gmra.mxu0 %v644
          %v658 = vpop.f32.mrf.mxu0
          %v659 = vadd.f32 0.0, %v658
          %v660 = vpop.f32.mrf.mxu0
          %661 = vdwg.mxu0
          %663 = vrot.lane.b32.xlu0 %v659, 16
          %v664 = vpop.permute.xlu0 %663
          %v666 = vadd.f32 %v639, %v664
          %vm667 = vcmask 191616
          %668 = vst.msk [vmem:[#allocation4] sm:$0xf] %vm667, %v666
          %669 = vst.msk [vmem:[%s608] sm:$0xf] %vm454, %v613
          %670 = vst [vmem:[#allocation1] ss:$4 sm:$0xff] %v409
          %v671 = vld.sshfl [vmem:[#allocation1] sm:$0xff pattern:$0x73625140]
          %673 = vrot.lane.b32.xlu0 %v671, 104
          %v674 = vpop.permute.xlu0 %673
          %675 = vrot.lane.b32.xlu0 %v466, 104
          %v676 = vpop.permute.xlu0 %675
          %v678 = vsel %vm410, %v674, 0
          %v681 = vsel %vm410, %v676, 0
          %683 = vmatpush.bf16.xpose.msra.mxu0 0
          %684 = vmatpush.bf16.xpose.msra.mxu0 0
          %685 = vmatpush.bf16.xpose.msra.mxu0 0
          %686 = vmatpush.bf16.xpose.msra.mxu0 0
          %687 = vmatpush.bf16.xpose.msra.mxu0 0
          %688 = vmatpush.bf16.xpose.msra.mxu0 0
          %689 = vmatpush.bf16.xpose.msra.mxu0 0
          %690 = vmatpush.bf16.xpose.msra.mxu0 %v681
          %691 = vmatmul.bf16.gmra.mxu0 %v678
          %v692 = vpop.f32.mrf.mxu0
          %v693 = vadd.f32 0.0, %v692
          %v694 = vpop.f32.mrf.mxu0
          %695 = vdwg.mxu0
          %v696 = vmul.f32 %v693, 0.35355338
          %s697 = scalar_lea.vmem [#allocation2], 12
          %v698 = vld [vmem:[%s697] sm:$0xf]
          %v699 = vsel %vm432, %v696, -inf
          %700 = vmax.xlane.f32.xlu0 %v699
          %v701 = vpop.xlane.xlu0 %700
          %v702 = vmax.f32 %v698, %v701
          %v703 = vsub.f32 %v698, %v702
          %v704 = vmul.f32 %v703, 1.442695
          %v705 = vpow.pop %v704
          %707 = vset.pattern.permute.xlu0 0
          %708 = vperm.xlu0 %707, %v702
          %v709 = vpop.permute.xlu0 %708
          %v711 = vsub.f32 %v696, %v709
          %v712 = vmul.f32 %v711, 1.442695
          %v713 = vpow.pop %v712
          %s714 = scalar_lea.vmem [#allocation3], 12
          %v715 = vld [vmem:[%s714] sm:$0xf]
          %v716 = vmul.f32 %v705, %v715
          %v717 = vsel %vm432, %v713, 0.0
          %718 = vadd.xlane.f32.xlu0 %v717
          %v719 = vpop.xlane.xlu0 %718
          %v720 = vadd.f32 %v716, %v719
          %721 = vst.msk [vmem:[%s714] sm:$0xf] %vm454, %v720
          %v722 = vld [vmem:[#allocation4] sm:$0xf]
          %724 = vset.pattern.permute.xlu0 0
          %725 = vperm.xlu0 %724, %v705
          %v726 = vpop.permute.xlu0 %725
          %v728 = vmul.f32 %v726, %v722
          %v729 = vpack.c.bf16 %v713, %v713
          %730 = vrot.lane.b32.xlu0 %v466, 72
          %v731 = vpop.permute.xlu0 %730
          %v733 = vsel %vm410, %v729, 0
          %v736 = vsel %vm472, %v731, 0
          %738 = vmatpush.bf16.msra.mxu0 0
          %739 = vmatpush.bf16.msra.mxu0 0
          %740 = vmatpush.bf16.msra.mxu0 0
          %741 = vmatpush.bf16.msra.mxu0 0
          %742 = vmatpush.bf16.msra.mxu0 0
          %743 = vmatpush.bf16.msra.mxu0 0
          %744 = vmatpush.bf16.msra.mxu0 0
          %745 = vmatpush.bf16.msra.mxu0 %v736
          %746 = vmatmul.bf16.gmra.mxu0 %v733
          %v747 = vpop.f32.mrf.mxu0
          %v748 = vadd.f32 0.0, %v747
          %v749 = vpop.f32.mrf.mxu0
          %750 = vdwg.mxu0
          %752 = vrot.lane.b32.xlu0 %v748, 24
          %v753 = vpop.permute.xlu0 %752
          %v755 = vadd.f32 %v728, %v753
          %vm756 = vcmask 257216
          %757 = vst.msk [vmem:[#allocation4] sm:$0xf] %vm756, %v755
          %758 = vst.msk [vmem:[%s697] sm:$0xf] %vm454, %v702
        $region64: #{global_latent_attention_forward.1} parent=55 // pred_fallthru
          _
        // Predicated region
        $region65: #{global_latent_attention_forward.1} parent=55 // pred_check
          %p759 = pneg %p353
        $region66: #{global_latent_attention_forward.1} parent=55 // pred_check_branch
          %761 = sbr.rel (%p759) target = $region68
        $region67: #{global_latent_attention_forward.1} parent=55 // pred_region
          %v762 = vld [vmem:[#allocation3] sm:$0xf]
          %v763 = vrcp.pop %v762
          %v764 = vmul.f32 %v762, %v763
          %v765 = vsub.f32 2.0, %v764
          %v766 = vmul.f32 %v763, %v765
          %v767 = vld [vmem:[#allocation4] sm:$0xf]
          %769 = vset.pattern.permute.xlu0 0
          %770 = vperm.xlu0 %769, %v766
          %v771 = vpop.permute.xlu0 %770
          %v773 = vmul.f32 %v767, %v771
          %vm774 = vcmask 60416
          %775 = vst.msk [vmem:[#allocation4] sm:$0xf] %vm774, %v773
          %s776 = scalar_lea.vmem [#allocation3], 4
          %v777 = vld [vmem:[%s776] sm:$0xf]
          %v778 = vrcp.pop %v777
          %v779 = vmul.f32 %v777, %v778
          %v780 = vsub.f32 2.0, %v779
          %v781 = vmul.f32 %v778, %v780
          %v782 = vld [vmem:[#allocation4] sm:$0xf]
          %784 = vset.pattern.permute.xlu0 0
          %785 = vperm.xlu0 %784, %v781
          %v786 = vpop.permute.xlu0 %785
          %v788 = vmul.f32 %v782, %v786
          %vm789 = vcmask 126016
          %790 = vst.msk [vmem:[#allocation4] sm:$0xf] %vm789, %v788
          %s791 = scalar_lea.vmem [#allocation3], 8
          %v792 = vld [vmem:[%s791] sm:$0xf]
          %v793 = vrcp.pop %v792
          %v794 = vmul.f32 %v792, %v793
          %v795 = vsub.f32 2.0, %v794
          %v796 = vmul.f32 %v793, %v795
          %v797 = vld [vmem:[#allocation4] sm:$0xf]
          %799 = vset.pattern.permute.xlu0 0
          %800 = vperm.xlu0 %799, %v796
          %v801 = vpop.permute.xlu0 %800
          %v803 = vmul.f32 %v797, %v801
          %vm804 = vcmask 191616
          %805 = vst.msk [vmem:[#allocation4] sm:$0xf] %vm804, %v803
          %s806 = scalar_lea.vmem [#allocation3], 12
          %v807 = vld [vmem:[%s806] sm:$0xf]
          %v808 = vrcp.pop %v807
          %v809 = vmul.f32 %v807, %v808
          %v810 = vsub.f32 2.0, %v809
          %v811 = vmul.f32 %v808, %v810
          %v812 = vld [vmem:[#allocation4] sm:$0xf]
          %814 = vset.pattern.permute.xlu0 0
          %815 = vperm.xlu0 %814, %v811
          %v816 = vpop.permute.xlu0 %815
          %v818 = vmul.f32 %v812, %v816
          %vm819 = vcmask 257216
          %820 = vst.msk [vmem:[#allocation4] sm:$0xf] %vm819, %v818
          %v821 = vld [vmem:[#allocation4] sm:$0xf]
          %v822 = vpack.c.bf16 %v821, %v821
          %v823 = vld [vmem:[%s5] sm:$0xf]
          %v824 = vld [vmem:[%s5 + $0x4] sm:$0xf]
          %v825 = vld [vmem:[%s5 + $0x8] sm:$0xf]
          %v826 = vld [vmem:[%s5 + $0xc] sm:$0xf]
          %v827 = vperm.slane %v352, 2
          %v832 = vunpack.c.l.b16 %v823
          %v833 = vunpack.c.l.b16 %v824
          %v834 = vunpack.c.l.b16 %v825
          %v835 = vunpack.c.l.b16 %v826
          %v836 = vpack.c.b16 %v833, %v832
          %v837 = vpack.c.b16 %v835, %v834
          %vm840 = vcmask 261120
          %v842 = vsel %vm840, %v822, 0
          %844 = vmatpush.bf16.msra.mxu0 0
          %845 = vmatpush.bf16.msra.mxu0 0
          %846 = vmatpush.bf16.msra.mxu0 0
          %847 = vmatpush.bf16.msra.mxu0 0
          %848 = vmatpush.bf16.msra.mxu0 0
          %849 = vmatpush.bf16.msra.mxu0 0
          %850 = vmatpush.bf16.msra.mxu0 %v837
          %851 = vmatpush.bf16.msra.mxu0 %v836
          %852 = vmatmul.bf16.gmra.mxu0 %v842
          %v853 = vpop.f32.mrf.mxu0
          %v854 = vadd.f32 %v827, %v853
          %v855 = vpop.f32.mrf.mxu0
          %856 = vdwg.mxu0
          %v857 = vld [vmem:[%s1] sm:$0xf]
          %v858 = vadd.f32 %v857, %v854
          %vm859 = vcmask 257024
          %v860 = vsel %vm859, %v858, 0.0
          %861 = vadd.xlane.f32.xlu0 %v860
          %v862 = vpop.xlane.xlu0 %861
          %v863 = vrcp.pop 32.0
          %v864 = vmul.f32 32.0, %v863
          %v865 = vsub.f32 1.0, %v864
          %v866 = vmul.f32 %v863, %v865
          %v867 = vadd.f32 %v863, %v866
          %vm868 = vweird.f32 %v863
          %v869 = vsel %vm868, %v863, %v867
          %v870 = vmul.f32 %v862, %v869
          %v871 = vsub.f32 %v858, %v870
          %v872 = vmul.f32 %v871, %v871
          %v873 = vsel %vm859, %v872, 0.0
          %874 = vadd.xlane.f32.xlu0 %v873
          %v875 = vpop.xlane.xlu0 %874
          %v876 = vmul.f32 %v875, %v869
          %v877 = vadd.f32 %v876, 1e-05
          %v878 = vrsqrt.pop %v877
          %v879 = vmul.f32 %v878, %v877
          %v880 = vmul.f32 %v879, %v878
          %v881 = vmul.f32 0.5, %v880
          %v882 = vsub.f32 1.5, %v881
          %v883 = vmul.f32 %v878, %v882
          %vm884 = vweird.f32 %v877
          %vm885 = vweird.f32 %v878
          %vm886 = vmor %vm884, %vm885
          %v887 = vsel %vm886, %v878, %v883
          %v888 = vmul.f32 %v871, %v887
          %v889 = vperm.slane %v352, 3
          %v890 = vmul.f32 %v888, %v889
          %v891 = vperm.slane %v352, 4
          %v892 = vadd.f32 %v890, %v891
          %v893 = vpack.c.bf16 %v892, %v892
          %v894 = vld [vmem:[%s6] sm:$0xf]
          %v895 = vld [vmem:[%s6 + $0x4] sm:$0xf]
          %v896 = vld [vmem:[%s6 + $0x8] sm:$0xf]
          %v897 = vld [vmem:[%s6 + $0xc] sm:$0xf]
          %v898 = vperm.slane %v352, 1
          %v903 = vunpack.c.l.b16 %v894
          %v904 = vunpack.c.l.b16 %v895
          %v905 = vunpack.c.l.b16 %v896
          %v906 = vunpack.c.l.b16 %v897
          %v907 = vpack.c.b16 %v904, %v903
          %v908 = vpack.c.b16 %v906, %v905
          %v912 = vsel %vm840, %v893, 0
          %914 = vmatpush.bf16.msra.mxu0 0
          %915 = vmatpush.bf16.msra.mxu0 0
          %916 = vmatpush.bf16.msra.mxu0 0
          %917 = vmatpush.bf16.msra.mxu0 0
          %918 = vmatpush.bf16.msra.mxu0 0
          %919 = vmatpush.bf16.msra.mxu0 0
          %920 = vmatpush.bf16.msra.mxu0 %v908
          %921 = vmatpush.bf16.msra.mxu0 %v907
          %922 = vmatmul.bf16.gmra.mxu0 %v912
          %v923 = vpop.f32.mrf.mxu0
          %v924 = vadd.f32 %v898, %v923
          %v925 = vpop.f32.mrf.mxu0
          %926 = vdwg.mxu0
          %v927 = vpack.c.bf16 %v924, %v924
          %vm928 = vcmask 517120
          %929 = vst.msk [vmem:[#allocation5] sm:$0x3] %vm928, %v927
        $region68: #{global_latent_attention_forward.1} parent=55 // pred_fallthru
          _
        %p930 = scmp.ge.s32.totalorder %s28, 1
        // Predicated region
        $region69: #{global_latent_attention_forward.1} parent=55 // pred_check
          %p931 = pneg %p930
        $region70: #{global_latent_attention_forward.1} parent=55 // pred_check_branch
          %933 = sbr.rel (%p931) target = $region72
        $region71: #{global_latent_attention_forward.1} parent=55 // pred_region
          %v934 = vld [vmem:[%s347] sm:$0xff]
          %v935 = vpack.c.bf16 %v934, %v934
          %v936 = vld [vmem:[%s4] sm:$0xf]
          %v937 = vld [vmem:[%s4 + $0x4] sm:$0xf]
          %v938 = vld [vmem:[%s4 + $0x8] sm:$0xf]
          %v939 = vld [vmem:[%s4 + $0xc] sm:$0xf]
          %v940 = vperm.slane %v352, 5
          %v945 = vunpack.c.l.b16 %v936
          %v946 = vunpack.c.l.b16 %v937
          %v947 = vunpack.c.l.b16 %v938
          %v948 = vunpack.c.l.b16 %v939
          %v949 = vpack.c.b16 %v946, %v945
          %v950 = vpack.c.b16 %v948, %v947
          %vm953 = vcmask 261120
          %v955 = vsel %vm953, %v935, 0
          %957 = vmatpush.bf16.msra.mxu0 0
          %958 = vmatpush.bf16.msra.mxu0 0
          %959 = vmatpush.bf16.msra.mxu0 0
          %960 = vmatpush.bf16.msra.mxu0 0
          %961 = vmatpush.bf16.msra.mxu0 0
          %962 = vmatpush.bf16.msra.mxu0 0
          %963 = vmatpush.bf16.msra.mxu0 %v950
          %964 = vmatpush.bf16.msra.mxu0 %v949
          %965 = vmatmul.bf16.gmra.mxu0 %v955
          %v966 = vpop.f32.mrf.mxu0
          %v967 = vadd.f32 %v940, %v966
          %v968 = vpop.f32.mrf.mxu0
          %969 = vdwg.mxu0
          %v970 = vpack.c.bf16 %v967, %v967
          %v971 = vld [vmem:[#allocation5] sm:$0x3]
          %vm972 = vcmask 64512
          %v974 = vsel %vm972, %v970, 0
          %v977 = vsel %vm972, %v971, 0
          %979 = vmatpush.bf16.xpose.msra.mxu0 0
          %980 = vmatpush.bf16.xpose.msra.mxu0 0
          %981 = vmatpush.bf16.xpose.msra.mxu0 0
          %982 = vmatpush.bf16.xpose.msra.mxu0 0
          %983 = vmatpush.bf16.xpose.msra.mxu0 0
          %984 = vmatpush.bf16.xpose.msra.mxu0 0
          %985 = vmatpush.bf16.xpose.msra.mxu0 0
          %986 = vmatpush.bf16.xpose.msra.mxu0 %v977
          %987 = vmatmul.bf16.gmra.mxu0 %v974
          %v988 = vpop.f32.mrf.mxu0
          %v989 = vadd.f32 0.0, %v988
          %v990 = vpop.f32.mrf.mxu0
          %991 = vdwg.mxu0
          %v992 = vmul.f32 %v989, 0.35355338
          %vm993 = vcmask 31744
          %v994 = vsel %vm993, %v992, -inf
          %995 = vmax.xlane.f32.xlu0 %v994
          %v996 = vpop.xlane.xlu0 %995
          %v997 = vsub.f32 %v992, %v996
          %v998 = vmul.f32 %v997, 1.442695
          %v999 = vpow.pop %v998
          %v1000 = vsel %vm993, %v999, 0.0
          %1001 = vadd.xlane.f32.xlu0 %v1000
          %v1002 = vpop.xlane.xlu0 %1001
          %v1003 = vrcp.pop %v1002
          %v1004 = vmul.f32 %v1002, %v1003
          %v1005 = vsub.f32 2.0, %v1004
          %v1006 = vmul.f32 %v1003, %v1005
          %v1007 = vmul.f32 %v999, %v1006
          %v1008 = vpack.c.bf16 %v1007, %v1007
          %1009 = vst [vmem:[#allocation1] ss:$4 sm:$0xff] %v971
          %v1010 = vld.sshfl [vmem:[#allocation1] sm:$0xff pattern:$0x73625140]
          %1012 = vrot.lane.b32.xlu0 %v1010, 96
          %v1013 = vpop.permute.xlu0 %1012
          %v1015 = vsel %vm993, %v1008, 0
          %vm1017 = vcmask 1041408
          %v1019 = vsel %vm1017, %v1013, 0
          %1021 = vmatpush.bf16.msra.mxu0 0
          %1022 = vmatpush.bf16.msra.mxu0 0
          %1023 = vmatpush.bf16.msra.mxu0 0
          %1024 = vmatpush.bf16.msra.mxu0 0
          %1025 = vmatpush.bf16.msra.mxu0 0
          %1026 = vmatpush.bf16.msra.mxu0 0
          %1027 = vmatpush.bf16.msra.mxu0 0
          %1028 = vmatpush.bf16.msra.mxu0 %v1019
          %1029 = vmatmul.bf16.gmra.mxu0 %v1015
          %v1030 = vpop.f32.mrf.mxu0
          %v1031 = vadd.f32 0.0, %v1030
          %v1032 = vpop.f32.mrf.mxu0
          %1033 = vdwg.mxu0
          %1034 = vst.msk [vmem:[#allocation6] sm:$0xff] %vm972, %v1031
          %v1036 = vunpack.c.l.b16 %v970
          %v1037 = vpack.c.b16 %v1036, %v1036
          %1038 = vrot.lane.b32.xlu0 %v1037, 120
          %v1039 = vpop.permute.xlu0 %1038
          %1040 = vst [vmem:[#allocation1] ss:$4 sm:$0xff] %v971
          %v1041 = vld.sshfl [vmem:[#allocation1] sm:$0xff pattern:$0x73625140]
          %1043 = vrot.lane.b32.xlu0 %v1041, 120
          %v1044 = vpop.permute.xlu0 %1043
          %v1046 = vsel %vm972, %v1039, 0
          %v1049 = vsel %vm972, %v1044, 0
          %1051 = vmatpush.bf16.xpose.msra.mxu0 0
          %1052 = vmatpush.bf16.xpose.msra.mxu0 0
          %1053 = vmatpush.bf16.xpose.msra.mxu0 0
          %1054 = vmatpush.bf16.xpose.msra.mxu0 0
          %1055 = vmatpush.bf16.xpose.msra.mxu0 0
          %1056 = vmatpush.bf16.xpose.msra.mxu0 0
          %1057 = vmatpush.bf16.xpose.msra.mxu0 0
          %1058 = vmatpush.bf16.xpose.msra.mxu0 %v1049
          %1059 = vmatmul.bf16.gmra.mxu0 %v1046
          %v1060 = vpop.f32.mrf.mxu0
          %v1061 = vadd.f32 0.0, %v1060
          %v1062 = vpop.f32.mrf.mxu0
          %1063 = vdwg.mxu0
          %v1064 = vmul.f32 %v1061, 0.35355338
          %v1065 = vsel %vm993, %v1064, -inf
          %1066 = vmax.xlane.f32.xlu0 %v1065
          %v1067 = vpop.xlane.xlu0 %1066
          %v1068 = vsub.f32 %v1064, %v1067
          %v1069 = vmul.f32 %v1068, 1.442695
          %v1070 = vpow.pop %v1069
          %v1071 = vsel %vm993, %v1070, 0.0
          %1072 = vadd.xlane.f32.xlu0 %v1071
          %v1073 = vpop.xlane.xlu0 %1072
          %v1074 = vrcp.pop %v1073
          %v1075 = vmul.f32 %v1073, %v1074
          %v1076 = vsub.f32 2.0, %v1075
          %v1077 = vmul.f32 %v1074, %v1076
          %v1078 = vmul.f32 %v1070, %v1077
          %v1079 = vpack.c.bf16 %v1078, %v1078
          %1080 = vst [vmem:[#allocation1] ss:$4 sm:$0xff] %v971
          %v1081 = vld.sshfl [vmem:[#allocation1] sm:$0xff pattern:$0x73625140]
          %1083 = vrot.lane.b32.xlu0 %v1081, 88
          %v1084 = vpop.permute.xlu0 %1083
          %v1086 = vsel %vm993, %v1079, 0
          %v1089 = vsel %vm1017, %v1084, 0
          %1091 = vmatpush.bf16.msra.mxu0 0
          %1092 = vmatpush.bf16.msra.mxu0 0
          %1093 = vmatpush.bf16.msra.mxu0 0
          %1094 = vmatpush.bf16.msra.mxu0 0
          %1095 = vmatpush.bf16.msra.mxu0 0
          %1096 = vmatpush.bf16.msra.mxu0 0
          %1097 = vmatpush.bf16.msra.mxu0 0
          %1098 = vmatpush.bf16.msra.mxu0 %v1089
          %1099 = vmatmul.bf16.gmra.mxu0 %v1086
          %v1100 = vpop.f32.mrf.mxu0
          %v1101 = vadd.f32 0.0, %v1100
          %v1102 = vpop.f32.mrf.mxu0
          %1103 = vdwg.mxu0
          %1105 = vrot.lane.b32.xlu0 %v1101, 8
          %v1106 = vpop.permute.xlu0 %1105
          %vm1108 = vcmask 130112
          %1109 = vst.msk [vmem:[#allocation6] sm:$0xff] %vm1108, %v1106
          %1110 = vrot.lane.b32.xlu0 %v1037, 112
          %v1111 = vpop.permute.xlu0 %1110
          %1112 = vst [vmem:[#allocation1] ss:$4 sm:$0xff] %v971
          %v1113 = vld.sshfl [vmem:[#allocation1] sm:$0xff pattern:$0x73625140]
          %1115 = vrot.lane.b32.xlu0 %v1113, 112
          %v1116 = vpop.permute.xlu0 %1115
          %v1118 = vsel %vm972, %v1111, 0
          %v1121 = vsel %vm972, %v1116, 0
          %1123 = vmatpush.bf16.xpose.msra.mxu0 0
          %1124 = vmatpush.bf16.xpose.msra.mxu0 0
          %1125 = vmatpush.bf16.xpose.msra.mxu0 0
          %1126 = vmatpush.bf16.xpose.msra.mxu0 0
          %1127 = vmatpush.bf16.xpose.msra.mxu0 0
          %1128 = vmatpush.bf16.xpose.msra.mxu0 0
          %1129 = vmatpush.bf16.xpose.msra.mxu0 0
          %1130 = vmatpush.bf16.xpose.msra.mxu0 %v1121
          %1131 = vmatmul.bf16.gmra.mxu0 %v1118
          %v1132 = vpop.f32.mrf.mxu0
          %v1133 = vadd.f32 0.0, %v1132
          %v1134 = vpop.f32.mrf.mxu0
          %1135 = vdwg.mxu0
          %v1136 = vmul.f32 %v1133, 0.35355338
          %v1137 = vsel %vm993, %v1136, -inf
          %1138 = vmax.xlane.f32.xlu0 %v1137
          %v1139 = vpop.xlane.xlu0 %1138
          %v1140 = vsub.f32 %v1136, %v1139
          %v1141 = vmul.f32 %v1140, 1.442695
          %v1142 = vpow.pop %v1141
          %v1143 = vsel %vm993, %v1142, 0.0
          %1144 = vadd.xlane.f32.xlu0 %v1143
          %v1145 = vpop.xlane.xlu0 %1144
          %v1146 = vrcp.pop %v1145
          %v1147 = vmul.f32 %v1145, %v1146
          %v1148 = vsub.f32 2.0, %v1147
          %v1149 = vmul.f32 %v1146, %v1148
          %v1150 = vmul.f32 %v1142, %v1149
          %v1151 = vpack.c.bf16 %v1150, %v1150
          %1152 = vst [vmem:[#allocation1] ss:$4 sm:$0xff] %v971
          %v1153 = vld.sshfl [vmem:[#allocation1] sm:$0xff pattern:$0x73625140]
          %1155 = vrot.lane.b32.xlu0 %v1153, 80
          %v1156 = vpop.permute.xlu0 %1155
          %v1158 = vsel %vm993, %v1151, 0
          %v1161 = vsel %vm1017, %v1156, 0
          %1163 = vmatpush.bf16.msra.mxu0 0
          %1164 = vmatpush.bf16.msra.mxu0 0
          %1165 = vmatpush.bf16.msra.mxu0 0
          %1166 = vmatpush.bf16.msra.mxu0 0
          %1167 = vmatpush.bf16.msra.mxu0 0
          %1168 = vmatpush.bf16.msra.mxu0 0
          %1169 = vmatpush.bf16.msra.mxu0 0
          %1170 = vmatpush.bf16.msra.mxu0 %v1161
          %1171 = vmatmul.bf16.gmra.mxu0 %v1158
          %v1172 = vpop.f32.mrf.mxu0
          %v1173 = vadd.f32 0.0, %v1172
          %v1174 = vpop.f32.mrf.mxu0
          %1175 = vdwg.mxu0
          %1177 = vrot.lane.b32.xlu0 %v1173, 16
          %v1178 = vpop.permute.xlu0 %1177
          %vm1180 = vcmask 195712
          %1181 = vst.msk [vmem:[#allocation6] sm:$0xff] %vm1180, %v1178
          %1182 = vrot.lane.b32.xlu0 %v1037, 104
          %v1183 = vpop.permute.xlu0 %1182
          %1184 = vst [vmem:[#allocation1] ss:$4 sm:$0xff] %v971
          %v1185 = vld.sshfl [vmem:[#allocation1] sm:$0xff pattern:$0x73625140]
          %1187 = vrot.lane.b32.xlu0 %v1185, 104
          %v1188 = vpop.permute.xlu0 %1187
          %v1190 = vsel %vm972, %v1183, 0
          %v1193 = vsel %vm972, %v1188, 0
          %1195 = vmatpush.bf16.xpose.msra.mxu0 0
          %1196 = vmatpush.bf16.xpose.msra.mxu0 0
          %1197 = vmatpush.bf16.xpose.msra.mxu0 0
          %1198 = vmatpush.bf16.xpose.msra.mxu0 0
          %1199 = vmatpush.bf16.xpose.msra.mxu0 0
          %1200 = vmatpush.bf16.xpose.msra.mxu0 0
          %1201 = vmatpush.bf16.xpose.msra.mxu0 0
          %1202 = vmatpush.bf16.xpose.msra.mxu0 %v1193
          %1203 = vmatmul.bf16.gmra.mxu0 %v1190
          %v1204 = vpop.f32.mrf.mxu0
          %v1205 = vadd.f32 0.0, %v1204
          %v1206 = vpop.f32.mrf.mxu0
          %1207 = vdwg.mxu0
          %v1208 = vmul.f32 %v1205, 0.35355338
          %v1209 = vsel %vm993, %v1208, -inf
          %1210 = vmax.xlane.f32.xlu0 %v1209
          %v1211 = vpop.xlane.xlu0 %1210
          %v1212 = vsub.f32 %v1208, %v1211
          %v1213 = vmul.f32 %v1212, 1.442695
          %v1214 = vpow.pop %v1213
          %v1215 = vsel %vm993, %v1214, 0.0
          %1216 = vadd.xlane.f32.xlu0 %v1215
          %v1217 = vpop.xlane.xlu0 %1216
          %v1218 = vrcp.pop %v1217
          %v1219 = vmul.f32 %v1217, %v1218
          %v1220 = vsub.f32 2.0, %v1219
          %v1221 = vmul.f32 %v1218, %v1220
          %v1222 = vmul.f32 %v1214, %v1221
          %v1223 = vpack.c.bf16 %v1222, %v1222
          %1224 = vst [vmem:[#allocation1] ss:$4 sm:$0xff] %v971
          %v1225 = vld.sshfl [vmem:[#allocation1] sm:$0xff pattern:$0x73625140]
          %1227 = vrot.lane.b32.xlu0 %v1225, 72
          %v1228 = vpop.permute.xlu0 %1227
          %v1230 = vsel %vm993, %v1223, 0
          %v1233 = vsel %vm1017, %v1228, 0
          %1235 = vmatpush.bf16.msra.mxu0 0
          %1236 = vmatpush.bf16.msra.mxu0 0
          %1237 = vmatpush.bf16.msra.mxu0 0
          %1238 = vmatpush.bf16.msra.mxu0 0
          %1239 = vmatpush.bf16.msra.mxu0 0
          %1240 = vmatpush.bf16.msra.mxu0 0
          %1241 = vmatpush.bf16.msra.mxu0 0
          %1242 = vmatpush.bf16.msra.mxu0 %v1233
          %1243 = vmatmul.bf16.gmra.mxu0 %v1230
          %v1244 = vpop.f32.mrf.mxu0
          %v1245 = vadd.f32 0.0, %v1244
          %v1246 = vpop.f32.mrf.mxu0
          %1247 = vdwg.mxu0
          %1249 = vrot.lane.b32.xlu0 %v1245, 24
          %v1250 = vpop.permute.xlu0 %1249
          %vm1252 = vcmask 261312
          %1253 = vst.msk [vmem:[#allocation6] sm:$0xff] %vm1252, %v1250
          %v1254 = vld [vmem:[#allocation6] sm:$0xff]
          %v1255 = vpack.c.bf16 %v1254, %v1254
          %v1256 = vld [vmem:[%s7] sm:$0xf]
          %v1257 = vld [vmem:[%s7 + $0x4] sm:$0xf]
          %v1258 = vld [vmem:[%s7 + $0x8] sm:$0xf]
          %v1259 = vld [vmem:[%s7 + $0xc] sm:$0xf]
          %v1260 = vperm.slane %v352, 6
          %v1265 = vunpack.c.l.b16 %v1256
          %v1266 = vunpack.c.l.b16 %v1257
          %v1267 = vunpack.c.l.b16 %v1258
          %v1268 = vunpack.c.l.b16 %v1259
          %v1269 = vpack.c.b16 %v1266, %v1265
          %v1270 = vpack.c.b16 %v1268, %v1267
          %v1274 = vsel %vm953, %v1255, 0
          %1276 = vmatpush.bf16.msra.mxu0 0
          %1277 = vmatpush.bf16.msra.mxu0 0
          %1278 = vmatpush.bf16.msra.mxu0 0
          %1279 = vmatpush.bf16.msra.mxu0 0
          %1280 = vmatpush.bf16.msra.mxu0 0
          %1281 = vmatpush.bf16.msra.mxu0 0
          %1282 = vmatpush.bf16.msra.mxu0 %v1270
          %1283 = vmatpush.bf16.msra.mxu0 %v1269
          %1284 = vmatmul.bf16.gmra.mxu0 %v1274
          %v1285 = vpop.f32.mrf.mxu0
          %v1286 = vadd.f32 %v1260, %v1285
          %v1287 = vpop.f32.mrf.mxu0
          %1288 = vdwg.mxu0
          %1289 = vst.msk [vmem:[%s343] sm:$0xff] %vm953, %v1286
        $region72: #{global_latent_attention_forward.1} parent=55 // pred_fallthru
          _
        %s1290 = sand.u32 %s245, 1
        %s1291 = scalar_lea.sflag [#allocation8], %s1290
        %s1292 = sand.u32 %s245, 1
        %s1293 = smul.addr %s1292, 8
        %s1294 = scalar_lea.vmem [#allocation7], %s1293
        // Predicated region
        $region73: #{global_latent_attention_forward.1} parent=55 // pred_check
          %p1295 = pneg %p255
        $region74: #{global_latent_attention_forward.1} parent=55 // pred_check_branch
          %1297 = sbr.rel (%p1295) target = $region76
        $region75: #{global_latent_attention_forward.1} parent=55 // pred_region
          %p1298 = scmp.lt.s32.totalorder %s28, 1
          %s1299 = ssub.s32 %s28, 1
          %s1300 = scalar_select %p1298, 0, %s1299
          %1302 = vsyncadd %s1291, 0
          %s1303 = sadd.s32 %s1300, %s27
          %s1304 = smul.addr %s1303, 8
          %s1305 = scalar_lea.hbm %s9, %s1304
          %s1307 = sshll.u32 %s1294, 4
          %s1308 = int_to_ptr.vmem [resolvable:$true] %s1307
          %s1309 = sshll.u32 %s1305, 4
          %s1310 = int_to_ptr.hbm [resolvable:$true] %s1309
          %1312 = dma.vmem_to_hbm [thread:$0]  %s1308, 128, %s1310, %s1291
        $region76: #{global_latent_attention_forward.1} parent=55 // pred_fallthru
          _
      $region56: #{global_latent_attention_forward.1} parent=5 // pred_fallthru
        _
      %p1313 = scmp.le.s32.totalorder 2, %s18
      // Predicated region
      $region77: #{global_latent_attention_forward.1} parent=5 // pred_check
        %p1314 = pneg %p1313
      $region78: #{global_latent_attention_forward.1} parent=5 // pred_check_branch
        %1316 = sbr.rel (%p1314) target = $region80
      $region79: #{global_latent_attention_forward.1} parent=5 // pred_region
        %s1317 = ssub.s32 %s18, 2
        // Predicated region
        $region81: #{global_latent_attention_forward.1} parent=79 // pred_check
          %p1318 = pneg %p261
        $region82: #{global_latent_attention_forward.1} parent=79 // pred_check_branch
          %1320 = sbr.rel (%p1318) target = $region84
        $region83: #{global_latent_attention_forward.1} parent=79 // pred_region
          %s1321 = sand.u32 %s246, 1
          %s1322 = scalar_lea.sflag [#allocation8], %s1321
          %s1323 = sand.u32 %s246, 1
          %s1324 = smul.addr %s1323, 8
          %s1325 = scalar_lea.vmem [#allocation7], %s1324
          %1327 = dma.done %s1322, 128
        $region84: #{global_latent_attention_forward.1} parent=79 // pred_fallthru
          _
      $region80: #{global_latent_attention_forward.1} parent=5 // pred_fallthru
        _
    $region6: #{global_latent_attention_forward.1} parent=1 // loop_footer
      %s22 = sadd.s32 1, %s18
    $region7: #{global_latent_attention_forward.1} parent=1 // loop_footer_branch
      %17 = sbr.rel target = $region3
    $region8: #{global_latent_attention_forward.1} parent=1 // loop_exit
      _
    %1328 = vsyncpa [#allocation8], 1
    %s1329 = scalar_lea.sflag [#allocation8], 1
    %1330 = vsyncpa %s1329, 1

</llo_original>
